<compile_context>
chip_gen: v5e
topology: v5e:2x2
jax: 0.10.0
libtpu: 0.0.40
codegen_flags: <defaults>
</compile_context>

<pallas_src>
import numpy as np

import jax
import jax.numpy as jnp
from jax.experimental import pallas as pl
from jax.experimental.pallas import tpu as pltpu


# --------------------------------- fused kernel ----------------------------------

def _bottleneck_kernel(x_ref, w1t_ref, bn1b_ref,
                       w2s_ref, s3t_ref, bn2b_ref,
                       w3t_ref, bn3b_ref,
                       ca_w1t_ref, ca_w2t_ref, sa_t_ref,
                       o_ref, zrow_ref):
    f32, bf16 = jnp.float32, jnp.bfloat16
    P = s3t_ref.shape[1]
    planes = w1t_ref.shape[0]

    x = x_ref[0]                                    # (Cin, P) float32 -- also the residual

    # conv1 (1x1, bn1 scale folded into rows of w1t) + bias + relu   -> (planes, P)
    y = jnp.dot(w1t_ref[...], x.astype(bf16), preferred_element_type=f32)
    y = jnp.maximum(y + bn1b_ref[...], 0.0)

    # conv2 (3x3, pad=1, bn2 scale folded):
    #   one (9*planes, planes) @ (planes, P) channel-mix matmul for all 9 taps,
    #   sublane-slice regroup of the tap blocks into a lane-stacked (planes, 9*P) bf16
    #   scratch, then ONE wide-K (K = 9*P) matmul against the stacked transposed shift
    #   matrices (zero padding folded into the shift matrices).
    z = jnp.dot(w2s_ref[...], y.astype(bf16), preferred_element_type=f32)   # (9*planes, P)
    zb = z.astype(bf16)
    for t in range(9):                              # static unroll: 9 cheap vreg copies
        zrow_ref[:, t * P:(t + 1) * P] = zb[t * planes:(t + 1) * planes, :]
    y = jnp.dot(zrow_ref[...], s3t_ref[...], preferred_element_type=f32)    # (planes, P)
    y = jnp.maximum(y + bn2b_ref[...], 0.0)

    # conv3 (1x1, bn3 scale folded) + bias (no relu)                 -> (C4, P)
    y = jnp.dot(w3t_ref[...], y.astype(bf16), preferred_element_type=f32)
    y = y + bn3b_ref[...]

    # channel attention: avg/max pools batched as two columns -> MLP runs once (2 matmuls)
    pools = jnp.concatenate([jnp.mean(y, axis=1, keepdims=True),
                             jnp.max(y, axis=1, keepdims=True)], axis=1)    # (C4, 2)
    h = jnp.dot(ca_w1t_ref[...], pools.astype(bf16), preferred_element_type=f32)
    h = jnp.maximum(h, 0.0)                                                  # (Cr, 2)
    z2 = jnp.dot(ca_w2t_ref[...], h.astype(bf16), preferred_element_type=f32)  # (C4, 2)
    ca = jax.nn.sigmoid(z2[:, 0:1] + z2[:, 1:2])                             # (C4, 1)
    y = y * ca

    # spatial attention: 7x7 conv over [mean_c, max_c] as ONE (1, 2P) @ (2P, P) matmul
    maps = jnp.concatenate([jnp.mean(y, axis=0, keepdims=True),
                            jnp.max(y, axis=0, keepdims=True)], axis=1)      # (1, 2P)
    sa = jax.nn.sigmoid(jnp.dot(maps.astype(bf16), sa_t_ref[...],
                                preferred_element_type=f32))                 # (1, P)

    # apply attention, add identity residual, final relu; output stays channels-first
    o_ref[0] = jnp.maximum(y * sa + x, 0.0)         # (C4, P)


# --------------------------- shift-matrix construction ---------------------------

def _shift_matrices(H, W, ksize):
    """S[t, p, q] = 1 where output pixel p=(i,j) reads input pixel q=(i+dy-pad, j+dx-pad)
    for tap t = dy*ksize + dx; out-of-range taps are simply absent (zero padding)."""
    pad = ksize // 2
    P = H * W
    S = np.zeros((ksize * ksize, P, P), np.float32)
    for dy in range(ksize):
        for dx in range(ksize):
            t = dy * ksize + dx
            for i in range(H):
                si = i + dy - pad
                if si < 0 or si >= H:
                    continue
                for j in range(W):
                    sj = j + dx - pad
                    if sj < 0 or sj >= W:
                        continue
                    S[t, i * W + j, si * W + sj] = 1.0
    return S


_SHIFT_CACHE = {}


def _shift_basis(H, W):
    key = (H, W)
    if key not in _SHIFT_CACHE:
        P = H * W
        s3 = _shift_matrices(H, W, 3)
        # stacked transposed 3x3 shift matrices: (9*P, P), row-block t = S3[t]^T
        s3t = jnp.asarray(np.transpose(s3, (0, 2, 1)).reshape(9 * P, P), dtype=jnp.bfloat16)
        s7 = jnp.asarray(_shift_matrices(H, W, 7), dtype=jnp.float32)      # (49, P, P)
        _SHIFT_CACHE[key] = (s3t, s7)
    return _SHIFT_CACHE[key]


# --------------------------------- full forward ----------------------------------

@jax.jit
def _forward_impl(x_nchw, params, s3t, s7):
    N, Cin, H, W = x_nchw.shape
    P = H * W
    planes = params["w1"].shape[1]
    C4 = 4 * planes
    Cr = params["ca_w1"].shape[1]
    assert Cin == C4, "identity residual requires inplanes == planes * 4 (stride=1, no downsample)"
    bf16, f32 = jnp.bfloat16, jnp.float32

    x = x_nchw.astype(f32).reshape(N, Cin, P)   # channels-first pixel columns (free reshape)

    # ---- fold BN scales into the transposed weights (per output channel = per row) ----
    w1t = (jnp.transpose(params["w1"]) * params["bn1_scale"][:, None]).astype(bf16)   # (planes, Cin)
    # w2 layout (ky,kx,cin,cout), tap t = ky*3+kx must match _shift_matrices ordering.
    w2t = jnp.transpose(params["w2"].reshape(9, planes, planes), (0, 2, 1))            # (9, out, in)
    w2s = (w2t * params["bn2_scale"][None, :, None]).reshape(9 * planes, planes).astype(bf16)
    w3t = (jnp.transpose(params["w3"]) * params["bn3_scale"][:, None]).astype(bf16)    # (C4, planes)
    ca_w1t = jnp.transpose(params["ca_w1"]).astype(bf16)                               # (Cr, C4)
    ca_w2t = jnp.transpose(params["ca_w2"]).astype(bf16)                               # (C4, Cr)
    # fold the 7x7 spatial-attention weights into ONE stacked (2P, P) conv matrix.
    # sa_w layout (ky,kx,cin) with tap t = ky*7+kx; row index of sa_fold = cin*P + q.
    sa_fold = jnp.einsum("tk,tpq->kqp",
                         params["sa_w"].reshape(49, 2).astype(f32),
                         s7).reshape(2 * P, P).astype(bf16)
    col = lambda v: v.reshape(-1, 1).astype(f32)

    out = pl.pallas_call(
        _bottleneck_kernel,
        out_shape=jax.ShapeDtypeStruct((N, C4, P), f32),
        grid=(N,),
        in_specs=[
            pl.BlockSpec((1, Cin, P), lambda b: (b, 0, 0)),
            pl.BlockSpec((planes, Cin), lambda b: (0, 0)),
            pl.BlockSpec((planes, 1), lambda b: (0, 0)),
            pl.BlockSpec((9 * planes, planes), lambda b: (0, 0)),
            pl.BlockSpec((9 * P, P), lambda b: (0, 0)),
            pl.BlockSpec((planes, 1), lambda b: (0, 0)),
            pl.BlockSpec((C4, planes), lambda b: (0, 0)),
            pl.BlockSpec((C4, 1), lambda b: (0, 0)),
            pl.BlockSpec((Cr, C4), lambda b: (0, 0)),
            pl.BlockSpec((C4, Cr), lambda b: (0, 0)),
            pl.BlockSpec((2 * P, P), lambda b: (0, 0)),
        ],
        out_specs=pl.BlockSpec((1, C4, P), lambda b: (b, 0, 0)),
        scratch_shapes=[pltpu.VMEM((planes, 9 * P), bf16)],
        compiler_params=pltpu.CompilerParams(dimension_semantics=("parallel",)),
    )(x, w1t, col(params["bn1_bias"]),
      w2s, s3t, col(params["bn2_bias"]),
      w3t, col(params["bn3_bias"]),
      ca_w1t, ca_w2t, sa_fold)

    return out.reshape(N, C4, H, W)


def bottleneck_forward(x_nchw, params):
    """NCHW in / NCHW out, matching the PyTorch Bottleneck forward (inference-mode BN)."""
    _, _, H, W = x_nchw.shape
    s3t, s7 = _shift_basis(H, W)          # device-cached constants keyed on (H, W)
    return _forward_impl(x_nchw, params, s3t, s7)


# ------------------------------ params / reference -------------------------------

def make_params(key, inplanes, planes):
    C4 = planes * 4
    Cr = C4 // 16                     # ChannelAttention hidden dim (in_planes // 16)
    assert Cr >= 1 and inplanes == C4
    ks = jax.random.split(key, 9)

    def n(k, shape, s):
        return s * jax.random.normal(k, shape, jnp.float32)

    def bn_affine(k, C):
        kg, kb, km, kv = jax.random.split(k, 4)
        gamma = 1.0 + 0.1 * jax.random.normal(kg, (C,), jnp.float32)
        beta = 0.1 * jax.random.normal(kb, (C,), jnp.float32)
        mean = 0.1 * jax.random.normal(km, (C,), jnp.float32)
        var = 0.5 + 0.5 * jnp.abs(jax.random.normal(kv, (C,), jnp.float32))
        scale = gamma * jax.lax.rsqrt(var + 1e-5)
        bias = beta - mean * scale
        return scale, bias

    bn1_s, bn1_b = bn_affine(ks[0], planes)
    bn2_s, bn2_b = bn_affine(ks[1], planes)
    bn3_s, bn3_b = bn_affine(ks[2], C4)
    return dict(
        w1=n(ks[3], (inplanes, planes), 0.1),
        w2=n(ks[4], (3, 3, planes, planes), 0.1),
        w3=n(ks[5], (planes, C4), 0.1),
        ca_w1=n(ks[6], (C4, Cr), 0.2),
        ca_w2=n(ks[7], (Cr, C4), 0.2),
        sa_w=n(ks[8], (7, 7, 2), 0.1),
        bn1_scale=bn1_s, bn1_bias=bn1_b,
        bn2_scale=bn2_s, bn2_bias=bn2_b,
        bn3_scale=bn3_s, bn3_bias=bn3_b,
    )


def reference_forward(x_nchw, p):
    """Pure-JAX (float32) reference of the same math, used to validate the fused kernel."""
    x = jnp.transpose(x_nchw, (0, 2, 3, 1)).astype(jnp.float32)
    N, H, W, _ = x.shape
    planes = p["w1"].shape[1]
    out = jnp.einsum("nhwc,co->nhwo", x, p["w1"])
    out = jnp.maximum(out * p["bn1_scale"] + p["bn1_bias"], 0.0)
    op = jnp.pad(out, ((0, 0), (1, 1), (1, 1), (0, 0)))
    acc = jnp.zeros((N, H, W, planes), jnp.float32)
    for dy in range(3):
        for dx in range(3):
            acc = acc + jnp.einsum("nhwc,co->nhwo",
                                   op[:, dy:dy + H, dx:dx + W, :], p["w2"][dy, dx])
    out = jnp.maximum(acc * p["bn2_scale"] + p["bn2_bias"], 0.0)
    out = jnp.einsum("nhwc,co->nhwo", out, p["w3"]) * p["bn3_scale"] + p["bn3_bias"]
    # channel attention
    avg = jnp.mean(out, axis=(1, 2))
    mx = jnp.max(out, axis=(1, 2))
    mlp = lambda v: jnp.maximum(v @ p["ca_w1"], 0.0) @ p["ca_w2"]
    ca = jax.nn.sigmoid(mlp(avg) + mlp(mx))
    out = out * ca[:, None, None, :]
    # spatial attention
    maps = jnp.stack([jnp.mean(out, axis=-1), jnp.max(out, axis=-1)], axis=-1)
    mp = jnp.pad(maps, ((0, 0), (3, 3), (3, 3), (0, 0)))
    sacc = jnp.zeros((N, H, W), jnp.float32)
    for dy in range(7):
        for dx in range(7):
            sacc = sacc + mp[:, dy:dy + H, dx:dx + W, 0] * p["sa_w"][dy, dx, 0] \
                        + mp[:, dy:dy + H, dx:dx + W, 1] * p["sa_w"][dy, dx, 1]
    out = out * jax.nn.sigmoid(sacc)[..., None] + x
    out = jnp.maximum(out, 0.0)
    return jnp.transpose(out, (0, 3, 1, 2))


if __name__ == "__main__":
    key = jax.random.PRNGKey(0)
    inplanes, planes = 16, 4          # identity residual requires inplanes == planes * 4
    N, H, W = 2, 16, 16
    kx, kp = jax.random.split(key)
    x_nchw = jax.random.normal(kx, (N, inplanes, H, W), jnp.float32)
    params = make_params(kp, inplanes, planes)

    out = jax.block_until_ready(bottleneck_forward(x_nchw, params))

    assert out.shape == (N, planes * 4, H, W)
    assert bool(jnp.all(jnp.isfinite(out)))
    ref = reference_forward(x_nchw, params)
    max_err = float(jnp.max(jnp.abs(out - ref)))
    assert bool(jnp.allclose(out, ref, atol=2e-2, rtol=2e-2)), \
        f"mismatch vs JAX reference (max abs err {max_err:.4f})"
    print("KERNEL_OK")
</pallas_src>

<mosaic_0001>
module attributes {stable_mosaic.version = 11 : i64} {
  func.func @_bottleneck_kernel(%arg0: i32, %arg1: memref<1x16x256xf32, #tpu.memory_space<vmem>>, %arg2: memref<4x16xbf16, #tpu.memory_space<vmem>>, %arg3: memref<4x1xf32, #tpu.memory_space<vmem>>, %arg4: memref<36x4xbf16, #tpu.memory_space<vmem>>, %arg5: memref<2304x256xbf16, #tpu.memory_space<vmem>>, %arg6: memref<4x1xf32, #tpu.memory_space<vmem>>, %arg7: memref<16x4xbf16, #tpu.memory_space<vmem>>, %arg8: memref<16x1xf32, #tpu.memory_space<vmem>>, %arg9: memref<1x16xbf16, #tpu.memory_space<vmem>>, %arg10: memref<16x1xbf16, #tpu.memory_space<vmem>>, %arg11: memref<512x256xbf16, #tpu.memory_space<vmem>>, %arg12: memref<1x16x256xf32, #tpu.memory_space<vmem>>, %arg13: memref<4x2304xbf16, #tpu.memory_space<vmem>>) attributes {dimension_semantics = [#tpu.dimension_semantics<parallel>], iteration_bounds = array<i64: 2>, scalar_prefetch = 0 : i64, scratch_operands = 1 : i64, tpu.core_type = #tpu.core_type<tc>, window_params = [{transform_indices = @transform_0, window_bounds = array<i64: 1, 16, 256>}, {pipeline_mode = #tpu.pipeline_mode<synchronous>, transform_indices = @transform_1, window_bounds = array<i64: 4, 16>}, {pipeline_mode = #tpu.pipeline_mode<synchronous>, transform_indices = @transform_2, window_bounds = array<i64: 4, 1>}, {pipeline_mode = #tpu.pipeline_mode<synchronous>, transform_indices = @transform_3, window_bounds = array<i64: 36, 4>}, {pipeline_mode = #tpu.pipeline_mode<synchronous>, transform_indices = @transform_4, window_bounds = array<i64: 2304, 256>}, {pipeline_mode = #tpu.pipeline_mode<synchronous>, transform_indices = @transform_5, window_bounds = array<i64: 4, 1>}, {pipeline_mode = #tpu.pipeline_mode<synchronous>, transform_indices = @transform_6, window_bounds = array<i64: 16, 4>}, {pipeline_mode = #tpu.pipeline_mode<synchronous>, transform_indices = @transform_7, window_bounds = array<i64: 16, 1>}, {pipeline_mode = #tpu.pipeline_mode<synchronous>, transform_indices = @transform_8, window_bounds = array<i64: 1, 16>}, {pipeline_mode = #tpu.pipeline_mode<synchronous>, transform_indices = @transform_9, window_bounds = array<i64: 16, 1>}, {pipeline_mode = #tpu.pipeline_mode<synchronous>, transform_indices = @transform_10, window_bounds = array<i64: 512, 256>}, {transform_indices = @transform_11, window_bounds = array<i64: 1, 16, 256>}]} {
    %c0 = arith.constant 0 : index
    %c0_0 = arith.constant 0 : index
    %c0_1 = arith.constant 0 : index
    %0 = vector.load %arg1[%c0, %c0_0, %c0_1] : memref<1x16x256xf32, #tpu.memory_space<vmem>>, vector<1x16x256xf32>
    %1 = vector.shape_cast %0 : vector<1x16x256xf32> to vector<16x256xf32>
    %c0_2 = arith.constant 0 : index
    %c0_3 = arith.constant 0 : index
    %2 = vector.load %arg2[%c0_2, %c0_3] : memref<4x16xbf16, #tpu.memory_space<vmem>>, vector<4x16xbf16>
    %3 = arith.truncf %1 : vector<16x256xf32> to vector<16x256xbf16>
    %cst = arith.constant dense<0.000000e+00> : vector<4x256xf32>
    %4 = tpu.matmul %2, %3, %cst {dimension_numbers = #tpu.dot_dimension_numbers<[1], [0], [0], [1], [0, 0, 1, 1], [], []>} : vector<4x16xbf16>, vector<16x256xbf16>, vector<4x256xf32> -> vector<4x256xf32>
    %c0_4 = arith.constant 0 : index
    %c0_5 = arith.constant 0 : index
    %5 = vector.load %arg3[%c0_4, %c0_5] : memref<4x1xf32, #tpu.memory_space<vmem>>, vector<4x1xf32>
    %6 = vector.broadcast %5 : vector<4x1xf32> to vector<4x256xf32>
    %7 = arith.addf %4, %6 : vector<4x256xf32>
    %cst_6 = arith.constant 0.000000e+00 : f32
    %8 = vector.broadcast %cst_6 : f32 to vector<4x256xf32>
    %9 = arith.maximumf %7, %8 : vector<4x256xf32>
    %c0_7 = arith.constant 0 : index
    %c0_8 = arith.constant 0 : index
    %10 = vector.load %arg4[%c0_7, %c0_8] : memref<36x4xbf16, #tpu.memory_space<vmem>>, vector<36x4xbf16>
    %11 = arith.truncf %9 : vector<4x256xf32> to vector<4x256xbf16>
    %cst_9 = arith.constant dense<0.000000e+00> : vector<36x256xf32>
    %12 = tpu.matmul %10, %11, %cst_9 {dimension_numbers = #tpu.dot_dimension_numbers<[1], [0], [0], [1], [0, 0, 1, 1], [], []>} : vector<36x4xbf16>, vector<4x256xbf16>, vector<36x256xf32> -> vector<36x256xf32>
    %13 = arith.truncf %12 : vector<36x256xf32> to vector<36x256xbf16>
    %14 = vector.extract_strided_slice %13 {offsets = [0, 0], sizes = [4, 256], strides = [1, 1]} : vector<36x256xbf16> to vector<4x256xbf16>
    %c0_10 = arith.constant 0 : index
    %c0_11 = arith.constant 0 : index
    %15 = vector.load %arg13[%c0_10, %c0_11] : memref<4x2304xbf16, #tpu.memory_space<vmem>>, vector<4x256xbf16>
    tpu.vector_store %arg13[%c0_10, %c0_11], %14 {strides = array<i32>} : memref<4x2304xbf16, #tpu.memory_space<vmem>>, vector<4x256xbf16>,
    %16 = vector.extract_strided_slice %13 {offsets = [4, 0], sizes = [4, 256], strides = [1, 1]} : vector<36x256xbf16> to vector<4x256xbf16>
    %c0_12 = arith.constant 0 : index
    %c256 = arith.constant 256 : index
    %17 = vector.load %arg13[%c0_12, %c256] : memref<4x2304xbf16, #tpu.memory_space<vmem>>, vector<4x256xbf16>
    tpu.vector_store %arg13[%c0_12, %c256], %16 {strides = array<i32>} : memref<4x2304xbf16, #tpu.memory_space<vmem>>, vector<4x256xbf16>,
    %18 = vector.extract_strided_slice %13 {offsets = [8, 0], sizes = [4, 256], strides = [1, 1]} : vector<36x256xbf16> to vector<4x256xbf16>
    %c0_13 = arith.constant 0 : index
    %c512 = arith.constant 512 : index
    %19 = vector.load %arg13[%c0_13, %c512] : memref<4x2304xbf16, #tpu.memory_space<vmem>>, vector<4x256xbf16>
    tpu.vector_store %arg13[%c0_13, %c512], %18 {strides = array<i32>} : memref<4x2304xbf16, #tpu.memory_space<vmem>>, vector<4x256xbf16>,
    %20 = vector.extract_strided_slice %13 {offsets = [12, 0], sizes = [4, 256], strides = [1, 1]} : vector<36x256xbf16> to vector<4x256xbf16>
    %c0_14 = arith.constant 0 : index
    %c768 = arith.constant 768 : index
    %21 = vector.load %arg13[%c0_14, %c768] : memref<4x2304xbf16, #tpu.memory_space<vmem>>, vector<4x256xbf16>
    tpu.vector_store %arg13[%c0_14, %c768], %20 {strides = array<i32>} : memref<4x2304xbf16, #tpu.memory_space<vmem>>, vector<4x256xbf16>,
    %22 = vector.extract_strided_slice %13 {offsets = [16, 0], sizes = [4, 256], strides = [1, 1]} : vector<36x256xbf16> to vector<4x256xbf16>
    %c0_15 = arith.constant 0 : index
    %c1024 = arith.constant 1024 : index
    %23 = vector.load %arg13[%c0_15, %c1024] : memref<4x2304xbf16, #tpu.memory_space<vmem>>, vector<4x256xbf16>
    tpu.vector_store %arg13[%c0_15, %c1024], %22 {strides = array<i32>} : memref<4x2304xbf16, #tpu.memory_space<vmem>>, vector<4x256xbf16>,
    %24 = vector.extract_strided_slice %13 {offsets = [20, 0], sizes = [4, 256], strides = [1, 1]} : vector<36x256xbf16> to vector<4x256xbf16>
    %c0_16 = arith.constant 0 : index
    %c1280 = arith.constant 1280 : index
    %25 = vector.load %arg13[%c0_16, %c1280] : memref<4x2304xbf16, #tpu.memory_space<vmem>>, vector<4x256xbf16>
    tpu.vector_store %arg13[%c0_16, %c1280], %24 {strides = array<i32>} : memref<4x2304xbf16, #tpu.memory_space<vmem>>, vector<4x256xbf16>,
    %26 = vector.extract_strided_slice %13 {offsets = [24, 0], sizes = [4, 256], strides = [1, 1]} : vector<36x256xbf16> to vector<4x256xbf16>
    %c0_17 = arith.constant 0 : index
    %c1536 = arith.constant 1536 : index
    %27 = vector.load %arg13[%c0_17, %c1536] : memref<4x2304xbf16, #tpu.memory_space<vmem>>, vector<4x256xbf16>
    tpu.vector_store %arg13[%c0_17, %c1536], %26 {strides = array<i32>} : memref<4x2304xbf16, #tpu.memory_space<vmem>>, vector<4x256xbf16>,
    %28 = vector.extract_strided_slice %13 {offsets = [28, 0], sizes = [4, 256], strides = [1, 1]} : vector<36x256xbf16> to vector<4x256xbf16>
    %c0_18 = arith.constant 0 : index
    %c1792 = arith.constant 1792 : index
    %29 = vector.load %arg13[%c0_18, %c1792] : memref<4x2304xbf16, #tpu.memory_space<vmem>>, vector<4x256xbf16>
    tpu.vector_store %arg13[%c0_18, %c1792], %28 {strides = array<i32>} : memref<4x2304xbf16, #tpu.memory_space<vmem>>, vector<4x256xbf16>,
    %30 = vector.extract_strided_slice %13 {offsets = [32, 0], sizes = [4, 256], strides = [1, 1]} : vector<36x256xbf16> to vector<4x256xbf16>
    %c0_19 = arith.constant 0 : index
    %c2048 = arith.constant 2048 : index
    %31 = vector.load %arg13[%c0_19, %c2048] : memref<4x2304xbf16, #tpu.memory_space<vmem>>, vector<4x256xbf16>
    tpu.vector_store %arg13[%c0_19, %c2048], %30 {strides = array<i32>} : memref<4x2304xbf16, #tpu.memory_space<vmem>>, vector<4x256xbf16>,
    %c0_20 = arith.constant 0 : index
    %c0_21 = arith.constant 0 : index
    %32 = vector.load %arg13[%c0_20, %c0_21] : memref<4x2304xbf16, #tpu.memory_space<vmem>>, vector<4x2304xbf16>
    %c0_22 = arith.constant 0 : index
    %c0_23 = arith.constant 0 : index
    %33 = vector.load %arg5[%c0_22, %c0_23] : memref<2304x256xbf16, #tpu.memory_space<vmem>>, vector<2304x256xbf16>
    %cst_24 = arith.constant dense<0.000000e+00> : vector<4x256xf32>
    %34 = tpu.matmul %32, %33, %cst_24 {dimension_numbers = #tpu.dot_dimension_numbers<[1], [0], [0], [1], [0, 0, 1, 1], [], []>} : vector<4x2304xbf16>, vector<2304x256xbf16>, vector<4x256xf32> -> vector<4x256xf32>
    %c0_25 = arith.constant 0 : index
    %c0_26 = arith.constant 0 : index
    %35 = vector.load %arg6[%c0_25, %c0_26] : memref<4x1xf32, #tpu.memory_space<vmem>>, vector<4x1xf32>
    %36 = vector.broadcast %35 : vector<4x1xf32> to vector<4x256xf32>
    %37 = arith.addf %34, %36 : vector<4x256xf32>
    %cst_27 = arith.constant 0.000000e+00 : f32
    %38 = vector.broadcast %cst_27 : f32 to vector<4x256xf32>
    %39 = arith.maximumf %37, %38 : vector<4x256xf32>
    %c0_28 = arith.constant 0 : index
    %c0_29 = arith.constant 0 : index
    %40 = vector.load %arg7[%c0_28, %c0_29] : memref<16x4xbf16, #tpu.memory_space<vmem>>, vector<16x4xbf16>
    %41 = arith.truncf %39 : vector<4x256xf32> to vector<4x256xbf16>
    %cst_30 = arith.constant dense<0.000000e+00> : vector<16x256xf32>
    %42 = tpu.matmul %40, %41, %cst_30 {dimension_numbers = #tpu.dot_dimension_numbers<[1], [0], [0], [1], [0, 0, 1, 1], [], []>} : vector<16x4xbf16>, vector<4x256xbf16>, vector<16x256xf32> -> vector<16x256xf32>
    %c0_31 = arith.constant 0 : index
    %c0_32 = arith.constant 0 : index
    %43 = vector.load %arg8[%c0_31, %c0_32] : memref<16x1xf32, #tpu.memory_space<vmem>>, vector<16x1xf32>
    %44 = vector.broadcast %43 : vector<16x1xf32> to vector<16x256xf32>
    %45 = arith.addf %42, %44 : vector<16x256xf32>
    %cst_33 = arith.constant dense<0.000000e+00> : vector<16xf32>
    %46 = vector.multi_reduction <add>, %45, %cst_33 [1] : vector<16x256xf32> to vector<16xf32>
    %47 = vector.shape_cast %46 : vector<16xf32> to vector<16x1xf32>
    %cst_34 = arith.constant 2.560000e+02 : f32
    %48 = vector.broadcast %cst_34 : f32 to vector<16x1xf32>
    %49 = arith.divf %47, %48 : vector<16x1xf32>
    %cst_35 = arith.constant dense<0xFF800000> : vector<16xf32>
    %50 = vector.multi_reduction <maximumf>, %45, %cst_35 [1] : vector<16x256xf32> to vector<16xf32>
    %51 = vector.shape_cast %50 : vector<16xf32> to vector<16x1xf32>
    %52 = tpu.concatenate %49, %51 in 1 : vector<16x1xf32>, vector<16x1xf32> -> vector<16x2xf32>
    %c0_36 = arith.constant 0 : index
    %c0_37 = arith.constant 0 : index
    %53 = vector.load %arg9[%c0_36, %c0_37] : memref<1x16xbf16, #tpu.memory_space<vmem>>, vector<1x16xbf16>
    %54 = arith.truncf %52 : vector<16x2xf32> to vector<16x2xbf16>
    %cst_38 = arith.constant dense<0.000000e+00> : vector<1x2xf32>
    %55 = tpu.matmul %53, %54, %cst_38 {dimension_numbers = #tpu.dot_dimension_numbers<[1], [0], [0], [1], [0, 0, 1, 1], [], []>} : vector<1x16xbf16>, vector<16x2xbf16>, vector<1x2xf32> -> vector<1x2xf32>
    %cst_39 = arith.constant 0.000000e+00 : f32
    %56 = vector.broadcast %cst_39 : f32 to vector<1x2xf32>
    %57 = arith.maximumf %55, %56 : vector<1x2xf32>
    %c0_40 = arith.constant 0 : index
    %c0_41 = arith.constant 0 : index
    %58 = vector.load %arg10[%c0_40, %c0_41] : memref<16x1xbf16, #tpu.memory_space<vmem>>, vector<16x1xbf16>
    %59 = arith.truncf %57 : vector<1x2xf32> to vector<1x2xbf16>
    %cst_42 = arith.constant dense<0.000000e+00> : vector<16x2xf32>
    %60 = tpu.matmul %58, %59, %cst_42 {dimension_numbers = #tpu.dot_dimension_numbers<[1], [0], [0], [1], [0, 0, 1, 1], [], []>} : vector<16x1xbf16>, vector<1x2xbf16>, vector<16x2xf32> -> vector<16x2xf32>
    %61 = vector.extract_strided_slice %60 {offsets = [0, 0], sizes = [16, 1], strides = [1, 1]} : vector<16x2xf32> to vector<16x1xf32>
    %62 = vector.extract_strided_slice %60 {offsets = [0, 1], sizes = [16, 1], strides = [1, 1]} : vector<16x2xf32> to vector<16x1xf32>
    %63 = arith.addf %61, %62 : vector<16x1xf32>
    %64 = arith.negf %63 : vector<16x1xf32>
    %65 = math.exp %64 : vector<16x1xf32>
    %cst_43 = arith.constant 1.000000e+00 : f32
    %66 = vector.broadcast %cst_43 : f32 to vector<16x1xf32>
    %67 = arith.addf %66, %65 : vector<16x1xf32>
    %68 = arith.divf %66, %67 : vector<16x1xf32>
    %69 = vector.broadcast %68 : vector<16x1xf32> to vector<16x256xf32>
    %70 = arith.mulf %45, %69 : vector<16x256xf32>
    %cst_44 = arith.constant dense<0.000000e+00> : vector<256xf32>
    %71 = vector.multi_reduction <add>, %70, %cst_44 [0] : vector<16x256xf32> to vector<256xf32>
    %72 = vector.shape_cast %71 : vector<256xf32> to vector<1x256xf32>
    %cst_45 = arith.constant 1.600000e+01 : f32
    %73 = vector.broadcast %cst_45 : f32 to vector<1x256xf32>
    %74 = arith.divf %72, %73 : vector<1x256xf32>
    %cst_46 = arith.constant dense<0xFF800000> : vector<256xf32>
    %75 = vector.multi_reduction <maximumf>, %70, %cst_46 [0] : vector<16x256xf32> to vector<256xf32>
    %76 = vector.shape_cast %75 : vector<256xf32> to vector<1x256xf32>
    %77 = tpu.concatenate %74, %76 in 1 : vector<1x256xf32>, vector<1x256xf32> -> vector<1x512xf32>
    %78 = arith.truncf %77 : vector<1x512xf32> to vector<1x512xbf16>
    %c0_47 = arith.constant 0 : index
    %c0_48 = arith.constant 0 : index
    %79 = vector.load %arg11[%c0_47, %c0_48] : memref<512x256xbf16, #tpu.memory_space<vmem>>, vector<512x256xbf16>
    %cst_49 = arith.constant dense<0.000000e+00> : vector<1x256xf32>
    %80 = tpu.matmul %78, %79, %cst_49 {dimension_numbers = #tpu.dot_dimension_numbers<[1], [0], [0], [1], [0, 0, 1, 1], [], []>} : vector<1x512xbf16>, vector<512x256xbf16>, vector<1x256xf32> -> vector<1x256xf32>
    %81 = arith.negf %80 : vector<1x256xf32>
    %82 = math.exp %81 : vector<1x256xf32>
    %cst_50 = arith.constant 1.000000e+00 : f32
    %83 = vector.broadcast %cst_50 : f32 to vector<1x256xf32>
    %84 = arith.addf %83, %82 : vector<1x256xf32>
    %85 = arith.divf %83, %84 : vector<1x256xf32>
    %86 = vector.broadcast %85 : vector<1x256xf32> to vector<16x256xf32>
    %87 = arith.mulf %70, %86 : vector<16x256xf32>
    %88 = arith.addf %87, %1 : vector<16x256xf32>
    %cst_51 = arith.constant 0.000000e+00 : f32
    %89 = vector.broadcast %cst_51 : f32 to vector<16x256xf32>
    %90 = arith.maximumf %88, %89 : vector<16x256xf32>
    %c0_52 = arith.constant 0 : index
    %c0_53 = arith.constant 0 : index
    %c0_54 = arith.constant 0 : index
    %91 = vector.load %arg12[%c0_52, %c0_53, %c0_54] : memref<1x16x256xf32, #tpu.memory_space<vmem>>, vector<1x16x256xf32>
    %92 = vector.shape_cast %91 : vector<1x16x256xf32> to vector<16x256xf32>
    %93 = vector.shape_cast %90 : vector<16x256xf32> to vector<1x16x256xf32>
    tpu.vector_store %arg12[%c0_52, %c0_53, %c0_54], %93 {strides = array<i32>} : memref<1x16x256xf32, #tpu.memory_space<vmem>>, vector<1x16x256xf32>,
    return
  }
  func.func @transform_0(%arg0: i32) -> (i32, i32, i32) {
    %c0_i32 = arith.constant 0 : i32
    %c0_i32_0 = arith.constant 0 : i32
    %c0_i32_1 = arith.constant 0 : i32
    return %arg0, %c0_i32, %c0_i32_0 : i32, i32, i32
  }
  func.func @transform_1(%arg0: i32) -> (i32, i32) {
    %c0_i32 = arith.constant 0 : i32
    %c0_i32_0 = arith.constant 0 : i32
    %c0_i32_1 = arith.constant 0 : i32
    return %c0_i32, %c0_i32_0 : i32, i32
  }
  func.func @transform_2(%arg0: i32) -> (i32, i32) {
    %c0_i32 = arith.constant 0 : i32
    %c0_i32_0 = arith.constant 0 : i32
    %c0_i32_1 = arith.constant 0 : i32
    return %c0_i32, %c0_i32_0 : i32, i32
  }
  func.func @transform_3(%arg0: i32) -> (i32, i32) {
    %c0_i32 = arith.constant 0 : i32
    %c0_i32_0 = arith.constant 0 : i32
    %c0_i32_1 = arith.constant 0 : i32
    return %c0_i32, %c0_i32_0 : i32, i32
  }
  func.func @transform_4(%arg0: i32) -> (i32, i32) {
    %c0_i32 = arith.constant 0 : i32
    %c0_i32_0 = arith.constant 0 : i32
    %c0_i32_1 = arith.constant 0 : i32
    return %c0_i32, %c0_i32_0 : i32, i32
  }
  func.func @transform_5(%arg0: i32) -> (i32, i32) {
    %c0_i32 = arith.constant 0 : i32
    %c0_i32_0 = arith.constant 0 : i32
    %c0_i32_1 = arith.constant 0 : i32
    return %c0_i32, %c0_i32_0 : i32, i32
  }
  func.func @transform_6(%arg0: i32) -> (i32, i32) {
    %c0_i32 = arith.constant 0 : i32
    %c0_i32_0 = arith.constant 0 : i32
    %c0_i32_1 = arith.constant 0 : i32
    return %c0_i32, %c0_i32_0 : i32, i32
  }
  func.func @transform_7(%arg0: i32) -> (i32, i32) {
    %c0_i32 = arith.constant 0 : i32
    %c0_i32_0 = arith.constant 0 : i32
    %c0_i32_1 = arith.constant 0 : i32
    return %c0_i32, %c0_i32_0 : i32, i32
  }
  func.func @transform_8(%arg0: i32) -> (i32, i32) {
    %c0_i32 = arith.constant 0 : i32
    %c0_i32_0 = arith.constant 0 : i32
    %c0_i32_1 = arith.constant 0 : i32
    return %c0_i32, %c0_i32_0 : i32, i32
  }
  func.func @transform_9(%arg0: i32) -> (i32, i32) {
    %c0_i32 = arith.constant 0 : i32
    %c0_i32_0 = arith.constant 0 : i32
    %c0_i32_1 = arith.constant 0 : i32
    return %c0_i32, %c0_i32_0 : i32, i32
  }
  func.func @transform_10(%arg0: i32) -> (i32, i32) {
    %c0_i32 = arith.constant 0 : i32
    %c0_i32_0 = arith.constant 0 : i32
    %c0_i32_1 = arith.constant 0 : i32
    return %c0_i32, %c0_i32_0 : i32, i32
  }
  func.func @transform_11(%arg0: i32) -> (i32, i32, i32) {
    %c0_i32 = arith.constant 0 : i32
    %c0_i32_0 = arith.constant 0 : i32
    %c0_i32_1 = arith.constant 0 : i32
    return %arg0, %c0_i32, %c0_i32_0 : i32, i32, i32
  }
}

</mosaic_0001>

<llo_original>
// kernel: _forward_impl.1
$region0: #{_forward_impl.1}
  #allocation0 [shape = 'u32[]', space=smem, size = 0x4, offset = 0x4, fixed_abs, tag = 'smem constant byte address 0x4 - core index']
  #allocation1 [shape = 'u32[72,128]{1,0:T(1,128)}', space=vmem, size = 0x9000, scoped, tag = 'internal scratch']
  #allocation2 [shape = 'bf16[4,2304]{1,0:T(4,128)(2,1)}', space=vmem, size = 0x4800, scoped, tag = 'scratch operand']
  %s0 = inlined_call_operand.vmem [shape: f32[2,16,256], index: 0, kind: input, shape index: {}]
  %s1 = inlined_call_operand.vmem [shape: bf16[4,16], index: 1, kind: input, shape index: {}]
  %s2 = inlined_call_operand.vmem [shape: f32[4,1], index: 2, kind: input, shape index: {}]
  %s3 = inlined_call_operand.vmem [shape: bf16[36,4], index: 3, kind: input, shape index: {}]
  %s4 = inlined_call_operand.vmem [shape: bf16[2304,256], index: 4, kind: input, shape index: {}]
  %s5 = inlined_call_operand.vmem [shape: f32[4,1], index: 5, kind: input, shape index: {}]
  %s6 = inlined_call_operand.vmem [shape: bf16[16,4], index: 6, kind: input, shape index: {}]
  %s7 = inlined_call_operand.vmem [shape: f32[16,1], index: 7, kind: input, shape index: {}]
  %s8 = inlined_call_operand.vmem [shape: bf16[1,16], index: 8, kind: input, shape index: {}]
  %s9 = inlined_call_operand.vmem [shape: bf16[16,1], index: 9, kind: input, shape index: {}]
  %s10 = inlined_call_operand.vmem [shape: bf16[512,256], index: 10, kind: input, shape index: {}]
  %s11 = inlined_call_operand.vmem [shape: f32[2,16,256], index: 11, kind: output, shape index: {}]
  %s12 = sld [smem:[#allocation0]]
  $region77: #{_forward_impl.1} parent=0
    _
  %s14 = ssub.s32 1, %s12
  %s15 = scalar_select 0, %s14, %s12
  loop: start=0, step=1, limit=4
  $region2: #{_forward_impl.1} parent=0 // loop_pre_header
    _
  $region3: #{_forward_impl.1} parent=0 // loop_header
    %s17 = sphi 0, %s21
    %p18 = scmp.ge.s32.totalorder %s17, 4
    %s27 = sphi 0, %s29
    %s30 = sphi 0, %s27
    %s31 = sphi 0, %s30
    %s47 = sphi 0, %s31
    %s51 = sphi 0, %s51
    %s53 = sphi 0, %s51
    %s54 = sphi 0, %s53
    %s68 = sphi 0, %s54
    %s72 = sphi 0, %s72
    %s74 = sphi 0, %s72
    %s75 = sphi 0, %s74
    %s89 = sphi 0, %s75
    %s93 = sphi 0, %s93
    %s95 = sphi 0, %s93
    %s96 = sphi 0, %s95
    %s110 = sphi 0, %s96
    %s114 = sphi 0, %s114
    %s116 = sphi 0, %s114
    %s117 = sphi 0, %s116
    %s131 = sphi 0, %s117
    %s135 = sphi 0, %s135
    %s137 = sphi 0, %s135
    %s138 = sphi 0, %s137
    %s152 = sphi 0, %s138
    %s156 = sphi 0, %s156
    %s158 = sphi 0, %s156
    %s159 = sphi 0, %s158
    %s173 = sphi 0, %s159
    %s177 = sphi 0, %s177
    %s179 = sphi 0, %s177
    %s180 = sphi 0, %s179
    %s194 = sphi 0, %s180
    %s198 = sphi 0, %s198
    %s200 = sphi 0, %s198
    %s201 = sphi 0, %s200
    %s215 = sphi 0, %s201
    %s219 = sphi 0, %s219
    %s221 = sphi 0, %s219
    %s222 = sphi 0, %s221
    %s236 = sphi 0, %s222
    %s240 = sphi 0, %s240
    %s242 = sphi 0, %s240
    %s243 = sphi 0, %s242
    %s257 = sphi 0, %s243
    %s263 = sphi 0, %s265
    %s266 = sphi 0, %s263
    %s267 = sphi 0, %s266
    %s283 = sphi 0, %s267
  $region4: #{_forward_impl.1} parent=0 // loop_header_branch
    %20 = sbr.rel (%p18) target = $region8
  $region5: #{_forward_impl.1} parent=0 // loop_body
    %s22 = ssub.s32 %s17, 1
    %s23 = ssub.s32 %s17, 2
    %s24 = sadd.s32 %s17, 1
    %s25 = ssub.s32 %s17, %s24
    %p26 = scmp.eq.s32.totalorder %s25, 0
    %s28 = sadd.s32 %s27, 1
    %s29 = scalar_select %p26, %s27, %s28
    %p32 = pneg %p26
    %p33 = scmp.eq.s32.totalorder %s17, 1
    %p34 = por %p32, %p33
    %p35 = scmp.ne.s32.totalorder %s27, %s30
    %p36 = scmp.eq.s32.totalorder %s17, 0
    %p37 = por %p35, %p36
    %p38 = scmp.ne.s32.totalorder %s27, %s30
    %p39 = scmp.eq.s32.totalorder %s22, 1
    %p40 = por %p38, %p39
    %p41 = scmp.ne.s32.totalorder %s30, %s31
    %p42 = scmp.eq.s32.totalorder %s22, 0
    %p43 = por %p41, %p42
    %p44 = scmp.ne.s32.totalorder %s30, %s31
    %p45 = scmp.eq.s32.totalorder %s23, 1
    %p46 = por %p44, %p45
    %p48 = scmp.ne.s32.totalorder %s31, %s47
    %p49 = scmp.eq.s32.totalorder %s23, 0
    %p50 = por %p48, %p49
    %s52 = sadd.s32 %s51, 1
    %p55 = scmp.eq.s32.totalorder %s17, 1
    %p56 = scmp.ne.s32.totalorder %s51, %s53
    %p57 = scmp.eq.s32.totalorder %s17, 0
    %p58 = por %p56, %p57
    %p59 = scmp.ne.s32.totalorder %s51, %s53
    %p60 = scmp.eq.s32.totalorder %s22, 1
    %p61 = por %p59, %p60
    %p62 = scmp.ne.s32.totalorder %s53, %s54
    %p63 = scmp.eq.s32.totalorder %s22, 0
    %p64 = por %p62, %p63
    %p65 = scmp.ne.s32.totalorder %s53, %s54
    %p66 = scmp.eq.s32.totalorder %s23, 1
    %p67 = por %p65, %p66
    %p69 = scmp.ne.s32.totalorder %s54, %s68
    %p70 = scmp.eq.s32.totalorder %s23, 0
    %p71 = por %p69, %p70
    %s73 = sadd.s32 %s72, 1
    %p76 = scmp.eq.s32.totalorder %s17, 1
    %p77 = scmp.ne.s32.totalorder %s72, %s74
    %p78 = scmp.eq.s32.totalorder %s17, 0
    %p79 = por %p77, %p78
    %p80 = scmp.ne.s32.totalorder %s72, %s74
    %p81 = scmp.eq.s32.totalorder %s22, 1
    %p82 = por %p80, %p81
    %p83 = scmp.ne.s32.totalorder %s74, %s75
    %p84 = scmp.eq.s32.totalorder %s22, 0
    %p85 = por %p83, %p84
    %p86 = scmp.ne.s32.totalorder %s74, %s75
    %p87 = scmp.eq.s32.totalorder %s23, 1
    %p88 = por %p86, %p87
    %p90 = scmp.ne.s32.totalorder %s75, %s89
    %p91 = scmp.eq.s32.totalorder %s23, 0
    %p92 = por %p90, %p91
    %s94 = sadd.s32 %s93, 1
    %p97 = scmp.eq.s32.totalorder %s17, 1
    %p98 = scmp.ne.s32.totalorder %s93, %s95
    %p99 = scmp.eq.s32.totalorder %s17, 0
    %p100 = por %p98, %p99
    %p101 = scmp.ne.s32.totalorder %s93, %s95
    %p102 = scmp.eq.s32.totalorder %s22, 1
    %p103 = por %p101, %p102
    %p104 = scmp.ne.s32.totalorder %s95, %s96
    %p105 = scmp.eq.s32.totalorder %s22, 0
    %p106 = por %p104, %p105
    %p107 = scmp.ne.s32.totalorder %s95, %s96
    %p108 = scmp.eq.s32.totalorder %s23, 1
    %p109 = por %p107, %p108
    %p111 = scmp.ne.s32.totalorder %s96, %s110
    %p112 = scmp.eq.s32.totalorder %s23, 0
    %p113 = por %p111, %p112
    %s115 = sadd.s32 %s114, 1
    %p118 = scmp.eq.s32.totalorder %s17, 1
    %p119 = scmp.ne.s32.totalorder %s114, %s116
    %p120 = scmp.eq.s32.totalorder %s17, 0
    %p121 = por %p119, %p120
    %p122 = scmp.ne.s32.totalorder %s114, %s116
    %p123 = scmp.eq.s32.totalorder %s22, 1
    %p124 = por %p122, %p123
    %p125 = scmp.ne.s32.totalorder %s116, %s117
    %p126 = scmp.eq.s32.totalorder %s22, 0
    %p127 = por %p125, %p126
    %p128 = scmp.ne.s32.totalorder %s116, %s117
    %p129 = scmp.eq.s32.totalorder %s23, 1
    %p130 = por %p128, %p129
    %p132 = scmp.ne.s32.totalorder %s117, %s131
    %p133 = scmp.eq.s32.totalorder %s23, 0
    %p134 = por %p132, %p133
    %s136 = sadd.s32 %s135, 1
    %p139 = scmp.eq.s32.totalorder %s17, 1
    %p140 = scmp.ne.s32.totalorder %s135, %s137
    %p141 = scmp.eq.s32.totalorder %s17, 0
    %p142 = por %p140, %p141
    %p143 = scmp.ne.s32.totalorder %s135, %s137
    %p144 = scmp.eq.s32.totalorder %s22, 1
    %p145 = por %p143, %p144
    %p146 = scmp.ne.s32.totalorder %s137, %s138
    %p147 = scmp.eq.s32.totalorder %s22, 0
    %p148 = por %p146, %p147
    %p149 = scmp.ne.s32.totalorder %s137, %s138
    %p150 = scmp.eq.s32.totalorder %s23, 1
    %p151 = por %p149, %p150
    %p153 = scmp.ne.s32.totalorder %s138, %s152
    %p154 = scmp.eq.s32.totalorder %s23, 0
    %p155 = por %p153, %p154
    %s157 = sadd.s32 %s156, 1
    %p160 = scmp.eq.s32.totalorder %s17, 1
    %p161 = scmp.ne.s32.totalorder %s156, %s158
    %p162 = scmp.eq.s32.totalorder %s17, 0
    %p163 = por %p161, %p162
    %p164 = scmp.ne.s32.totalorder %s156, %s158
    %p165 = scmp.eq.s32.totalorder %s22, 1
    %p166 = por %p164, %p165
    %p167 = scmp.ne.s32.totalorder %s158, %s159
    %p168 = scmp.eq.s32.totalorder %s22, 0
    %p169 = por %p167, %p168
    %p170 = scmp.ne.s32.totalorder %s158, %s159
    %p171 = scmp.eq.s32.totalorder %s23, 1
    %p172 = por %p170, %p171
    %p174 = scmp.ne.s32.totalorder %s159, %s173
    %p175 = scmp.eq.s32.totalorder %s23, 0
    %p176 = por %p174, %p175
    %s178 = sadd.s32 %s177, 1
    %p181 = scmp.eq.s32.totalorder %s17, 1
    %p182 = scmp.ne.s32.totalorder %s177, %s179
    %p183 = scmp.eq.s32.totalorder %s17, 0
    %p184 = por %p182, %p183
    %p185 = scmp.ne.s32.totalorder %s177, %s179
    %p186 = scmp.eq.s32.totalorder %s22, 1
    %p187 = por %p185, %p186
    %p188 = scmp.ne.s32.totalorder %s179, %s180
    %p189 = scmp.eq.s32.totalorder %s22, 0
    %p190 = por %p188, %p189
    %p191 = scmp.ne.s32.totalorder %s179, %s180
    %p192 = scmp.eq.s32.totalorder %s23, 1
    %p193 = por %p191, %p192
    %p195 = scmp.ne.s32.totalorder %s180, %s194
    %p196 = scmp.eq.s32.totalorder %s23, 0
    %p197 = por %p195, %p196
    %s199 = sadd.s32 %s198, 1
    %p202 = scmp.eq.s32.totalorder %s17, 1
    %p203 = scmp.ne.s32.totalorder %s198, %s200
    %p204 = scmp.eq.s32.totalorder %s17, 0
    %p205 = por %p203, %p204
    %p206 = scmp.ne.s32.totalorder %s198, %s200
    %p207 = scmp.eq.s32.totalorder %s22, 1
    %p208 = por %p206, %p207
    %p209 = scmp.ne.s32.totalorder %s200, %s201
    %p210 = scmp.eq.s32.totalorder %s22, 0
    %p211 = por %p209, %p210
    %p212 = scmp.ne.s32.totalorder %s200, %s201
    %p213 = scmp.eq.s32.totalorder %s23, 1
    %p214 = por %p212, %p213
    %p216 = scmp.ne.s32.totalorder %s201, %s215
    %p217 = scmp.eq.s32.totalorder %s23, 0
    %p218 = por %p216, %p217
    %s220 = sadd.s32 %s219, 1
    %p223 = scmp.eq.s32.totalorder %s17, 1
    %p224 = scmp.ne.s32.totalorder %s219, %s221
    %p225 = scmp.eq.s32.totalorder %s17, 0
    %p226 = por %p224, %p225
    %p227 = scmp.ne.s32.totalorder %s219, %s221
    %p228 = scmp.eq.s32.totalorder %s22, 1
    %p229 = por %p227, %p228
    %p230 = scmp.ne.s32.totalorder %s221, %s222
    %p231 = scmp.eq.s32.totalorder %s22, 0
    %p232 = por %p230, %p231
    %p233 = scmp.ne.s32.totalorder %s221, %s222
    %p234 = scmp.eq.s32.totalorder %s23, 1
    %p235 = por %p233, %p234
    %p237 = scmp.ne.s32.totalorder %s222, %s236
    %p238 = scmp.eq.s32.totalorder %s23, 0
    %p239 = por %p237, %p238
    %s241 = sadd.s32 %s240, 1
    %p244 = scmp.eq.s32.totalorder %s17, 1
    %p245 = scmp.ne.s32.totalorder %s240, %s242
    %p246 = scmp.eq.s32.totalorder %s17, 0
    %p247 = por %p245, %p246
    %p248 = scmp.ne.s32.totalorder %s240, %s242
    %p249 = scmp.eq.s32.totalorder %s22, 1
    %p250 = por %p248, %p249
    %p251 = scmp.ne.s32.totalorder %s242, %s243
    %p252 = scmp.eq.s32.totalorder %s22, 0
    %p253 = por %p251, %p252
    %p254 = scmp.ne.s32.totalorder %s242, %s243
    %p255 = scmp.eq.s32.totalorder %s23, 1
    %p256 = por %p254, %p255
    %p258 = scmp.ne.s32.totalorder %s243, %s257
    %p259 = scmp.eq.s32.totalorder %s23, 0
    %p260 = por %p258, %p259
    %s261 = ssub.s32 %s17, %s24
    %p262 = scmp.eq.s32.totalorder %s261, 0
    %s264 = sadd.s32 %s263, 1
    %s265 = scalar_select %p262, %s263, %s264
    %p268 = pneg %p262
    %p269 = scmp.eq.s32.totalorder %s17, 1
    %p270 = por %p268, %p269
    %p271 = scmp.ne.s32.totalorder %s263, %s266
    %p272 = scmp.eq.s32.totalorder %s17, 0
    %p273 = por %p271, %p272
    %p274 = scmp.ne.s32.totalorder %s263, %s266
    %p275 = scmp.eq.s32.totalorder %s22, 1
    %p276 = por %p274, %p275
    %p277 = scmp.ne.s32.totalorder %s266, %s267
    %p278 = scmp.eq.s32.totalorder %s22, 0
    %p279 = por %p277, %p278
    %p280 = scmp.ne.s32.totalorder %s266, %s267
    %p281 = scmp.eq.s32.totalorder %s23, 1
    %p282 = por %p280, %p281
    %p284 = scmp.ne.s32.totalorder %s267, %s283
    %p285 = scmp.eq.s32.totalorder %s23, 0
    %p286 = por %p284, %p285
    %p287 = scmp.le.s32.totalorder 1, %s17
    %p288 = scmp.lt.s32.totalorder %s17, 3
    %p289 = pnand %p287, %p288
    %p290 = pneg %p289
    // Predicated region
    $region9: #{_forward_impl.1} parent=5 // pred_check
      _
    $region10: #{_forward_impl.1} parent=5 // pred_check_branch
      %292 = sbr.rel (%p289) target = $region12
    $region11: #{_forward_impl.1} parent=5 // pred_region
      %s293 = ssub.s32 %s17, 1
      // Predicated region
      $region13: #{_forward_impl.1} parent=11 // pred_check
        %p294 = pneg %p64
      $region14: #{_forward_impl.1} parent=11 // pred_check_branch
        %296 = sbr.rel (%p294) target = $region16
      $region15: #{_forward_impl.1} parent=11 // pred_region
        _
      $region16: #{_forward_impl.1} parent=11 // pred_fallthru
        _
      // Predicated region
      $region17: #{_forward_impl.1} parent=11 // pred_check
        %p297 = pneg %p85
      $region18: #{_forward_impl.1} parent=11 // pred_check_branch
        %299 = sbr.rel (%p297) target = $region20
      $region19: #{_forward_impl.1} parent=11 // pred_region
        _
      $region20: #{_forward_impl.1} parent=11 // pred_fallthru
        _
      // Predicated region
      $region21: #{_forward_impl.1} parent=11 // pred_check
        %p300 = pneg %p106
      $region22: #{_forward_impl.1} parent=11 // pred_check_branch
        %302 = sbr.rel (%p300) target = $region24
      $region23: #{_forward_impl.1} parent=11 // pred_region
        _
      $region24: #{_forward_impl.1} parent=11 // pred_fallthru
        _
      // Predicated region
      $region25: #{_forward_impl.1} parent=11 // pred_check
        %p303 = pneg %p127
      $region26: #{_forward_impl.1} parent=11 // pred_check_branch
        %305 = sbr.rel (%p303) target = $region28
      $region27: #{_forward_impl.1} parent=11 // pred_region
        _
      $region28: #{_forward_impl.1} parent=11 // pred_fallthru
        _
      // Predicated region
      $region29: #{_forward_impl.1} parent=11 // pred_check
        %p306 = pneg %p148
      $region30: #{_forward_impl.1} parent=11 // pred_check_branch
        %308 = sbr.rel (%p306) target = $region32
      $region31: #{_forward_impl.1} parent=11 // pred_region
        _
      $region32: #{_forward_impl.1} parent=11 // pred_fallthru
        _
      // Predicated region
      $region33: #{_forward_impl.1} parent=11 // pred_check
        %p309 = pneg %p169
      $region34: #{_forward_impl.1} parent=11 // pred_check_branch
        %311 = sbr.rel (%p309) target = $region36
      $region35: #{_forward_impl.1} parent=11 // pred_region
        _
      $region36: #{_forward_impl.1} parent=11 // pred_fallthru
        _
      // Predicated region
      $region37: #{_forward_impl.1} parent=11 // pred_check
        %p312 = pneg %p190
      $region38: #{_forward_impl.1} parent=11 // pred_check_branch
        %314 = sbr.rel (%p312) target = $region40
      $region39: #{_forward_impl.1} parent=11 // pred_region
        _
      $region40: #{_forward_impl.1} parent=11 // pred_fallthru
        _
      // Predicated region
      $region41: #{_forward_impl.1} parent=11 // pred_check
        %p315 = pneg %p211
      $region42: #{_forward_impl.1} parent=11 // pred_check_branch
        %317 = sbr.rel (%p315) target = $region44
      $region43: #{_forward_impl.1} parent=11 // pred_region
        _
      $region44: #{_forward_impl.1} parent=11 // pred_fallthru
        _
      // Predicated region
      $region45: #{_forward_impl.1} parent=11 // pred_check
        %p318 = pneg %p232
      $region46: #{_forward_impl.1} parent=11 // pred_check_branch
        %320 = sbr.rel (%p318) target = $region48
      $region47: #{_forward_impl.1} parent=11 // pred_region
        _
      $region48: #{_forward_impl.1} parent=11 // pred_fallthru
        _
      // Predicated region
      $region49: #{_forward_impl.1} parent=11 // pred_check
        %p321 = pneg %p253
      $region50: #{_forward_impl.1} parent=11 // pred_check_branch
        %323 = sbr.rel (%p321) target = $region52
      $region51: #{_forward_impl.1} parent=11 // pred_region
        _
      $region52: #{_forward_impl.1} parent=11 // pred_fallthru
        _
    $region12: #{_forward_impl.1} parent=5 // pred_fallthru
      _
    %p324 = scmp.lt.s32.totalorder %s17, 2
    // Predicated region
    $region53: #{_forward_impl.1} parent=5 // pred_check
      %p325 = pneg %p324
    $region54: #{_forward_impl.1} parent=5 // pred_check_branch
      %327 = sbr.rel (%p325) target = $region56
    $region55: #{_forward_impl.1} parent=5 // pred_region
      // Predicated region
      $region57: #{_forward_impl.1} parent=55 // pred_check
        %p328 = pneg %p37
      $region58: #{_forward_impl.1} parent=55 // pred_check_branch
        %330 = sbr.rel (%p328) target = $region60
      $region59: #{_forward_impl.1} parent=55 // pred_region
        %p331 = scmp.lt.s32.totalorder %s17, 1
        %s332 = scalar_select %p331, %s17, 1
        %s333 = smul.addr %s332, 4
        %s334 = smul.addr %s333, 8
        %s335 = scalar_lea.vmem %s0, %s334
      $region60: #{_forward_impl.1} parent=55 // pred_fallthru
        _
    $region56: #{_forward_impl.1} parent=5 // pred_fallthru
      _
    %p336 = scmp.le.s32.totalorder 1, %s17
    %p337 = scmp.lt.s32.totalorder %s17, 3
    %p338 = pnand %p336, %p337
    %p339 = pneg %p338
    // Predicated region
    $region61: #{_forward_impl.1} parent=5 // pred_check
      _
    $region62: #{_forward_impl.1} parent=5 // pred_check_branch
      %341 = sbr.rel (%p338) target = $region64
    $region63: #{_forward_impl.1} parent=5 // pred_region
      %s342 = ssub.s32 %s17, 1
      %p343 = scmp.lt.s32.totalorder %s22, 1
      %s344 = scalar_select %p343, %s22, 1
      %s345 = smul.addr %s344, 4
      %s346 = smul.addr %s345, 8
      %s347 = scalar_lea.vmem %s0, %s346
      %p348 = pneg %p43
      %p349 = pneg %p40
      %p350 = pneg %p64
      %p351 = pneg %p61
      %p352 = pneg %p85
      %p353 = pneg %p82
      %p354 = pneg %p106
      %p355 = pneg %p103
      %p356 = pneg %p127
      %p357 = pneg %p124
      %p358 = pneg %p148
      %p359 = pneg %p145
      %p360 = pneg %p169
      %p361 = pneg %p166
      %p362 = pneg %p190
      %p363 = pneg %p187
      %p364 = pneg %p211
      %p365 = pneg %p208
      %p366 = pneg %p232
      %p367 = pneg %p229
      %p368 = pneg %p253
      %p369 = pneg %p250
      %p370 = pneg %p279
      %p371 = pneg %p276
      %p372 = scmp.lt.s32.totalorder %s22, 1
      %s373 = scalar_select %p372, %s22, 1
      %s374 = smul.addr %s373, 4
      %s375 = smul.addr %s374, 8
      %s376 = scalar_lea.vmem %s11, %s375
      %p377 = scmp.lt.s32.totalorder %s22, 1
      %s378 = scalar_select %p377, %s22, 1
      %s379 = smul.addr %s378, 4
      %s380 = smul.addr %s379, 8
      %s381 = scalar_lea.vmem %s0, %s380
      %p382 = scmp.lt.s32.totalorder %s22, 1
      %s383 = scalar_select %p382, %s22, 1
      %s384 = smul.addr %s383, 4
      %s385 = smul.addr %s384, 8
      %s386 = scalar_lea.vmem %s11, %s385
      %v388 = vld [vmem:[%s381] sm:$0xff]
      %v389 = vld [vmem:[%s381 + $0x8] sm:$0xff]
      %v390 = vld [vmem:[%s381 + $0x10] sm:$0xff]
      %v391 = vld [vmem:[%s381 + $0x18] sm:$0xff]
      %v392 = vld [vmem:[%s1] sm:$0x3]
      %v393 = vpack.c.bf16 %v390, %v388
      %v394 = vpack.c.bf16 %v391, %v389
      %v395 = vld [vmem:[%s2] sm:$0xf]
      %397 = vset.pattern.permute.xlu0 0
      %398 = vperm.xlu0 %397, %v395
      %v399 = vpop.permute.xlu0 %398
      %vm401 = vcmask 130048
      %v403 = vsel %vm401, %v392, 0
      %405 = vmatpush.bf16.msra.mxu0 0
      %406 = vmatpush.bf16.msra.mxu0 0
      %407 = vmatpush.bf16.msra.mxu0 0
      %408 = vmatpush.bf16.msra.mxu0 0
      %409 = vmatpush.bf16.msra.mxu0 0
      %410 = vmatpush.bf16.msra.mxu0 0
      %411 = vmatpush.bf16.msra.mxu0 0
      %412 = vmatpush.bf16.msra.mxu0 %v393
      %413 = vmatmul.bf16.gmra.mxu0 %v403
      %v414 = vpop.f32.mrf.mxu0
      %v415 = vadd.f32 %v399, %v414
      %v416 = vpop.f32.mrf.mxu0
      %417 = vdwg.mxu0
      %418 = vmatpush.bf16.msra.mxu0 0
      %419 = vmatpush.bf16.msra.mxu0 0
      %420 = vmatpush.bf16.msra.mxu0 0
      %421 = vmatpush.bf16.msra.mxu0 0
      %422 = vmatpush.bf16.msra.mxu0 0
      %423 = vmatpush.bf16.msra.mxu0 0
      %424 = vmatpush.bf16.msra.mxu0 0
      %425 = vmatpush.bf16.msra.mxu0 %v394
      %426 = vmatmul.bf16.gmra.mxu0 %v403
      %v427 = vpop.f32.mrf.mxu0
      %v428 = vadd.f32 %v399, %v427
      %v429 = vpop.f32.mrf.mxu0
      %430 = vdwg.mxu0
      %v431 = vmax.f32 %v415, 0.0
      %v432 = vmax.f32 %v428, 0.0
      %v433 = vld [vmem:[%s3] sm:$0xf]
      %v434 = vld [vmem:[%s3 + $0x4] sm:$0xf]
      %v435 = vld [vmem:[%s3 + $0x8] sm:$0xf]
      %v436 = vld [vmem:[%s3 + $0xc] sm:$0xf]
      %v437 = vld [vmem:[%s3 + $0x10] sm:$0x3]
      %v438 = vpack.c.bf16 %v431, %v431
      %v439 = vpack.c.bf16 %v432, %v432
      %v445 = vunpack.c.l.b16 %v433
      %v446 = vunpack.c.l.b16 %v434
      %v447 = vunpack.c.l.b16 %v435
      %v448 = vunpack.c.l.b16 %v436
      %v449 = vunpack.c.l.b16 %v437
      %v450 = vpack.c.b16 %v446, %v445
      %v451 = vpack.c.b16 %v448, %v447
      %v452 = vpack.c.b16 %v449, %v449
      %vm453 = vcmask 31744
      %v455 = vsel %vm453, %v450, 0
      %v458 = vsel %vm453, %v451, 0
      %v461 = vsel %vm453, %v452, 0
      %vm463 = vcmask 1041408
      %v465 = vsel %vm463, %v438, 0
      %v468 = vsel %vm463, %v439, 0
      %470 = vmatpush.bf16.msra.mxu0 0
      %471 = vmatpush.bf16.msra.mxu0 0
      %472 = vmatpush.bf16.msra.mxu0 0
      %473 = vmatpush.bf16.msra.mxu0 0
      %474 = vmatpush.bf16.msra.mxu0 0
      %475 = vmatpush.bf16.msra.mxu0 0
      %476 = vmatpush.bf16.msra.mxu0 0
      %477 = vmatpush.bf16.msra.mxu0 %v465
      %478 = vmatmul.bf16.gmra.mxu0 %v455
      %v479 = vpop.f32.mrf.mxu0
      %v480 = vadd.f32 0.0, %v479
      %v481 = vpop.f32.mrf.mxu0
      %v482 = vadd.f32 0.0, %v481
      %483 = vmatmul.bf16.gmra.mxu0 %v458
      %v484 = vpop.f32.mrf.mxu0
      %v485 = vadd.f32 0.0, %v484
      %v486 = vpop.f32.mrf.mxu0
      %v487 = vadd.f32 0.0, %v486
      %488 = vmatmul.bf16.gmra.mxu0 %v461
      %v489 = vpop.f32.mrf.mxu0
      %v490 = vadd.f32 0.0, %v489
      %v491 = vpop.f32.mrf.mxu0
      %492 = vdwg.mxu0
      %493 = vmatpush.bf16.msra.mxu0 0
      %494 = vmatpush.bf16.msra.mxu0 0
      %495 = vmatpush.bf16.msra.mxu0 0
      %496 = vmatpush.bf16.msra.mxu0 0
      %497 = vmatpush.bf16.msra.mxu0 0
      %498 = vmatpush.bf16.msra.mxu0 0
      %499 = vmatpush.bf16.msra.mxu0 0
      %500 = vmatpush.bf16.msra.mxu0 %v468
      %501 = vmatmul.bf16.gmra.mxu0 %v455
      %v502 = vpop.f32.mrf.mxu0
      %v503 = vadd.f32 0.0, %v502
      %v504 = vpop.f32.mrf.mxu0
      %v505 = vadd.f32 0.0, %v504
      %506 = vmatmul.bf16.gmra.mxu0 %v458
      %v507 = vpop.f32.mrf.mxu0
      %v508 = vadd.f32 0.0, %v507
      %v509 = vpop.f32.mrf.mxu0
      %v510 = vadd.f32 0.0, %v509
      %511 = vmatmul.bf16.gmra.mxu0 %v461
      %v512 = vpop.f32.mrf.mxu0
      %v513 = vadd.f32 0.0, %v512
      %v514 = vpop.f32.mrf.mxu0
      %515 = vdwg.mxu0
      %v516 = vpack.c.bf16 %v503, %v480
      %v517 = vpack.c.bf16 %v505, %v482
      %v518 = vpack.c.bf16 %v508, %v485
      %v519 = vpack.c.bf16 %v510, %v487
      %v520 = vpack.c.bf16 %v513, %v490
      %v522 = vrot.slane %v516, 2
      %v525 = vsel %vm463, %v516, %v522
      %527 = vst [vmem:[#allocation2] sm:$0xf] %v525
      %528 = vst.sshfl [vmem:[#allocation1] sm:$0xff pattern:$0x75643120] %v516
      %s529 = scalar_lea.vmem [#allocation1], 1
      %v530 = vld [vmem:[%s529] ss:$2 sm:$0xff]
      %532 = vst [vmem:[#allocation2 + $0x4] sm:$0xf] %v530
      %v534 = vrot.slane %v517, 2
      %v537 = vsel %vm463, %v517, %v534
      %539 = vst [vmem:[#allocation2 + $0x8] sm:$0xf] %v537
      %540 = vst.sshfl [vmem:[#allocation1] sm:$0xff pattern:$0x75643120] %v517
      %s541 = scalar_lea.vmem [#allocation1], 1
      %v542 = vld [vmem:[%s541] ss:$2 sm:$0xff]
      %544 = vst [vmem:[#allocation2 + $0xc] sm:$0xf] %v542
      %v546 = vrot.slane %v518, 2
      %v549 = vsel %vm463, %v518, %v546
      %551 = vst [vmem:[#allocation2 + $0x10] sm:$0xf] %v549
      %552 = vst.sshfl [vmem:[#allocation1] sm:$0xff pattern:$0x75643120] %v518
      %s553 = scalar_lea.vmem [#allocation1], 1
      %v554 = vld [vmem:[%s553] ss:$2 sm:$0xff]
      %556 = vst [vmem:[#allocation2 + $0x14] sm:$0xf] %v554
      %v558 = vrot.slane %v519, 2
      %v561 = vsel %vm463, %v519, %v558
      %563 = vst [vmem:[#allocation2 + $0x18] sm:$0xf] %v561
      %564 = vst.sshfl [vmem:[#allocation1] sm:$0xff pattern:$0x75643120] %v519
      %s565 = scalar_lea.vmem [#allocation1], 1
      %v566 = vld [vmem:[%s565] ss:$2 sm:$0xff]
      %568 = vst [vmem:[#allocation2 + $0x1c] sm:$0xf] %v566
      %v570 = vrot.slane %v520, 2
      %v573 = vsel %vm463, %v520, %v570
      %575 = vst [vmem:[#allocation2 + $0x20] sm:$0xf] %v573
      %v576 = vld [vmem:[#allocation2] sm:$0xff]
      %v577 = vld [vmem:[#allocation2 + $0x8] sm:$0xff]
      %v578 = vld [vmem:[#allocation2 + $0x10] sm:$0xff]
      %v579 = vld [vmem:[#allocation2 + $0x18] sm:$0xff]
      %v580 = vld [vmem:[#allocation2 + $0x20] sm:$0xf]
      %v581 = vld [vmem:[%s4] sm:$0xff]
      %v582 = vld [vmem:[%s4 + $0x8] sm:$0xff]
      %v583 = vld [vmem:[%s4 + $0x10] sm:$0xff]
      %v584 = vld [vmem:[%s4 + $0x18] sm:$0xff]
      %v585 = vld [vmem:[%s4 + $0x20] sm:$0xff]
      %v586 = vld [vmem:[%s4 + $0x28] sm:$0xff]
      %v587 = vld [vmem:[%s4 + $0x30] sm:$0xff]
      %v588 = vld [vmem:[%s4 + $0x38] sm:$0xff]
      %v589 = vld [vmem:[%s4 + $0x40] sm:$0xff]
      %v590 = vld [vmem:[%s4 + $0x48] sm:$0xff]
      %v591 = vld [vmem:[%s4 + $0x50] sm:$0xff]
      %v592 = vld [vmem:[%s4 + $0x58] sm:$0xff]
      %v593 = vld [vmem:[%s4 + $0x60] sm:$0xff]
      %v594 = vld [vmem:[%s4 + $0x68] sm:$0xff]
      %v595 = vld [vmem:[%s4 + $0x70] sm:$0xff]
      %v596 = vld [vmem:[%s4 + $0x78] sm:$0xff]
      %v597 = vld [vmem:[%s4 + $0x80] sm:$0xff]
      %v598 = vld [vmem:[%s4 + $0x88] sm:$0xff]
      %v599 = vld [vmem:[%s4 + $0x90] sm:$0xff]
      %v600 = vld [vmem:[%s4 + $0x98] sm:$0xff]
      %v601 = vld [vmem:[%s4 + $0xa0] sm:$0xff]
      %v602 = vld [vmem:[%s4 + $0xa8] sm:$0xff]
      %v603 = vld [vmem:[%s4 + $0xb0] sm:$0xff]
      %v604 = vld [vmem:[%s4 + $0xb8] sm:$0xff]
      %v605 = vld [vmem:[%s4 + $0xc0] sm:$0xff]
      %v606 = vld [vmem:[%s4 + $0xc8] sm:$0xff]
      %v607 = vld [vmem:[%s4 + $0xd0] sm:$0xff]
      %v608 = vld [vmem:[%s4 + $0xd8] sm:$0xff]
      %v609 = vld [vmem:[%s4 + $0xe0] sm:$0xff]
      %v610 = vld [vmem:[%s4 + $0xe8] sm:$0xff]
      %v611 = vld [vmem:[%s4 + $0xf0] sm:$0xff]
      %v612 = vld [vmem:[%s4 + $0xf8] sm:$0xff]
      %v613 = vld [vmem:[%s4 + $0x100] sm:$0xff]
      %v614 = vld [vmem:[%s4 + $0x108] sm:$0xff]
      %v615 = vld [vmem:[%s4 + $0x110] sm:$0xff]
      %v616 = vld [vmem:[%s4 + $0x118] sm:$0xff]
      %v617 = vld [vmem:[%s4 + $0x120] sm:$0xff]
      %v618 = vld [vmem:[%s4 + $0x128] sm:$0xff]
      %v619 = vld [vmem:[%s4 + $0x130] sm:$0xff]
      %v620 = vld [vmem:[%s4 + $0x138] sm:$0xff]
      %v621 = vld [vmem:[%s4 + $0x140] sm:$0xff]
      %v622 = vld [vmem:[%s4 + $0x148] sm:$0xff]
      %v623 = vld [vmem:[%s4 + $0x150] sm:$0xff]
      %v624 = vld [vmem:[%s4 + $0x158] sm:$0xff]
      %v625 = vld [vmem:[%s4 + $0x160] sm:$0xff]
      %v626 = vld [vmem:[%s4 + $0x168] sm:$0xff]
      %v627 = vld [vmem:[%s4 + $0x170] sm:$0xff]
      %v628 = vld [vmem:[%s4 + $0x178] sm:$0xff]
      %v629 = vld [vmem:[%s4 + $0x180] sm:$0xff]
      %v630 = vld [vmem:[%s4 + $0x188] sm:$0xff]
      %v631 = vld [vmem:[%s4 + $0x190] sm:$0xff]
      %v632 = vld [vmem:[%s4 + $0x198] sm:$0xff]
      %v633 = vld [vmem:[%s4 + $0x1a0] sm:$0xff]
      %v634 = vld [vmem:[%s4 + $0x1a8] sm:$0xff]
      %v635 = vld [vmem:[%s4 + $0x1b0] sm:$0xff]
      %v636 = vld [vmem:[%s4 + $0x1b8] sm:$0xff]
      %v637 = vld [vmem:[%s4 + $0x1c0] sm:$0xff]
      %v638 = vld [vmem:[%s4 + $0x1c8] sm:$0xff]
      %v639 = vld [vmem:[%s4 + $0x1d0] sm:$0xff]
      %v640 = vld [vmem:[%s4 + $0x1d8] sm:$0xff]
      %v641 = vld [vmem:[%s4 + $0x1e0] sm:$0xff]
      %v642 = vld [vmem:[%s4 + $0x1e8] sm:$0xff]
      %v643 = vld [vmem:[%s4 + $0x1f0] sm:$0xff]
      %v644 = vld [vmem:[%s4 + $0x1f8] sm:$0xff]
      %v645 = vld [vmem:[%s4 + $0x200] sm:$0xff]
      %v646 = vld [vmem:[%s4 + $0x208] sm:$0xff]
      %v647 = vld [vmem:[%s4 + $0x210] sm:$0xff]
      %v648 = vld [vmem:[%s4 + $0x218] sm:$0xff]
      %v649 = vld [vmem:[%s4 + $0x220] sm:$0xff]
      %v650 = vld [vmem:[%s4 + $0x228] sm:$0xff]
      %v651 = vld [vmem:[%s4 + $0x230] sm:$0xff]
      %v652 = vld [vmem:[%s4 + $0x238] sm:$0xff]
      %v653 = vld [vmem:[%s4 + $0x240] sm:$0xff]
      %v654 = vld [vmem:[%s4 + $0x248] sm:$0xff]
      %v655 = vld [vmem:[%s4 + $0x250] sm:$0xff]
      %v656 = vld [vmem:[%s4 + $0x258] sm:$0xff]
      %v657 = vld [vmem:[%s4 + $0x260] sm:$0xff]
      %v658 = vld [vmem:[%s4 + $0x268] sm:$0xff]
      %v659 = vld [vmem:[%s4 + $0x270] sm:$0xff]
      %v660 = vld [vmem:[%s4 + $0x278] sm:$0xff]
      %v661 = vld [vmem:[%s4 + $0x280] sm:$0xff]
      %v662 = vld [vmem:[%s4 + $0x288] sm:$0xff]
      %v663 = vld [vmem:[%s4 + $0x290] sm:$0xff]
      %v664 = vld [vmem:[%s4 + $0x298] sm:$0xff]
      %v665 = vld [vmem:[%s4 + $0x2a0] sm:$0xff]
      %v666 = vld [vmem:[%s4 + $0x2a8] sm:$0xff]
      %v667 = vld [vmem:[%s4 + $0x2b0] sm:$0xff]
      %v668 = vld [vmem:[%s4 + $0x2b8] sm:$0xff]
      %v669 = vld [vmem:[%s4 + $0x2c0] sm:$0xff]
      %v670 = vld [vmem:[%s4 + $0x2c8] sm:$0xff]
      %v671 = vld [vmem:[%s4 + $0x2d0] sm:$0xff]
      %v672 = vld [vmem:[%s4 + $0x2d8] sm:$0xff]
      %v673 = vld [vmem:[%s4 + $0x2e0] sm:$0xff]
      %v674 = vld [vmem:[%s4 + $0x2e8] sm:$0xff]
      %v675 = vld [vmem:[%s4 + $0x2f0] sm:$0xff]
      %v676 = vld [vmem:[%s4 + $0x2f8] sm:$0xff]
      %v677 = vld [vmem:[%s4 + $0x300] sm:$0xff]
      %v678 = vld [vmem:[%s4 + $0x308] sm:$0xff]
      %v679 = vld [vmem:[%s4 + $0x310] sm:$0xff]
      %v680 = vld [vmem:[%s4 + $0x318] sm:$0xff]
      %v681 = vld [vmem:[%s4 + $0x320] sm:$0xff]
      %v682 = vld [vmem:[%s4 + $0x328] sm:$0xff]
      %v683 = vld [vmem:[%s4 + $0x330] sm:$0xff]
      %v684 = vld [vmem:[%s4 + $0x338] sm:$0xff]
      %v685 = vld [vmem:[%s4 + $0x340] sm:$0xff]
      %v686 = vld [vmem:[%s4 + $0x348] sm:$0xff]
      %v687 = vld [vmem:[%s4 + $0x350] sm:$0xff]
      %v688 = vld [vmem:[%s4 + $0x358] sm:$0xff]
      %v689 = vld [vmem:[%s4 + $0x360] sm:$0xff]
      %v690 = vld [vmem:[%s4 + $0x368] sm:$0xff]
      %v691 = vld [vmem:[%s4 + $0x370] sm:$0xff]
      %v692 = vld [vmem:[%s4 + $0x378] sm:$0xff]
      %v693 = vld [vmem:[%s4 + $0x380] sm:$0xff]
      %v694 = vld [vmem:[%s4 + $0x388] sm:$0xff]
      %v695 = vld [vmem:[%s4 + $0x390] sm:$0xff]
      %v696 = vld [vmem:[%s4 + $0x398] sm:$0xff]
      %v697 = vld [vmem:[%s4 + $0x3a0] sm:$0xff]
      %v698 = vld [vmem:[%s4 + $0x3a8] sm:$0xff]
      %v699 = vld [vmem:[%s4 + $0x3b0] sm:$0xff]
      %v700 = vld [vmem:[%s4 + $0x3b8] sm:$0xff]
      %v701 = vld [vmem:[%s4 + $0x3c0] sm:$0xff]
      %v702 = vld [vmem:[%s4 + $0x3c8] sm:$0xff]
      %v703 = vld [vmem:[%s4 + $0x3d0] sm:$0xff]
      %v704 = vld [vmem:[%s4 + $0x3d8] sm:$0xff]
      %v705 = vld [vmem:[%s4 + $0x3e0] sm:$0xff]
      %v706 = vld [vmem:[%s4 + $0x3e8] sm:$0xff]
      %v707 = vld [vmem:[%s4 + $0x3f0] sm:$0xff]
      %v708 = vld [vmem:[%s4 + $0x3f8] sm:$0xff]
      %v709 = vld [vmem:[%s4 + $0x400] sm:$0xff]
      %v710 = vld [vmem:[%s4 + $0x408] sm:$0xff]
      %v711 = vld [vmem:[%s4 + $0x410] sm:$0xff]
      %v712 = vld [vmem:[%s4 + $0x418] sm:$0xff]
      %v713 = vld [vmem:[%s4 + $0x420] sm:$0xff]
      %v714 = vld [vmem:[%s4 + $0x428] sm:$0xff]
      %v715 = vld [vmem:[%s4 + $0x430] sm:$0xff]
      %v716 = vld [vmem:[%s4 + $0x438] sm:$0xff]
      %v717 = vld [vmem:[%s4 + $0x440] sm:$0xff]
      %v718 = vld [vmem:[%s4 + $0x448] sm:$0xff]
      %v719 = vld [vmem:[%s4 + $0x450] sm:$0xff]
      %v720 = vld [vmem:[%s4 + $0x458] sm:$0xff]
      %v721 = vld [vmem:[%s4 + $0x460] sm:$0xff]
      %v722 = vld [vmem:[%s4 + $0x468] sm:$0xff]
      %v723 = vld [vmem:[%s4 + $0x470] sm:$0xff]
      %v724 = vld [vmem:[%s4 + $0x478] sm:$0xff]
      %v725 = vld [vmem:[%s4 + $0x480] sm:$0xff]
      %v726 = vld [vmem:[%s4 + $0x488] sm:$0xff]
      %v727 = vld [vmem:[%s4 + $0x490] sm:$0xff]
      %v728 = vld [vmem:[%s4 + $0x498] sm:$0xff]
      %v729 = vld [vmem:[%s4 + $0x4a0] sm:$0xff]
      %v730 = vld [vmem:[%s4 + $0x4a8] sm:$0xff]
      %v731 = vld [vmem:[%s4 + $0x4b0] sm:$0xff]
      %v732 = vld [vmem:[%s4 + $0x4b8] sm:$0xff]
      %v733 = vld [vmem:[%s4 + $0x4c0] sm:$0xff]
      %v734 = vld [vmem:[%s4 + $0x4c8] sm:$0xff]
      %v735 = vld [vmem:[%s4 + $0x4d0] sm:$0xff]
      %v736 = vld [vmem:[%s4 + $0x4d8] sm:$0xff]
      %v737 = vld [vmem:[%s4 + $0x4e0] sm:$0xff]
      %v738 = vld [vmem:[%s4 + $0x4e8] sm:$0xff]
      %v739 = vld [vmem:[%s4 + $0x4f0] sm:$0xff]
      %v740 = vld [vmem:[%s4 + $0x4f8] sm:$0xff]
      %v741 = vld [vmem:[%s4 + $0x500] sm:$0xff]
      %v742 = vld [vmem:[%s4 + $0x508] sm:$0xff]
      %v743 = vld [vmem:[%s4 + $0x510] sm:$0xff]
      %v744 = vld [vmem:[%s4 + $0x518] sm:$0xff]
      %v745 = vld [vmem:[%s4 + $0x520] sm:$0xff]
      %v746 = vld [vmem:[%s4 + $0x528] sm:$0xff]
      %v747 = vld [vmem:[%s4 + $0x530] sm:$0xff]
      %v748 = vld [vmem:[%s4 + $0x538] sm:$0xff]
      %v749 = vld [vmem:[%s4 + $0x540] sm:$0xff]
      %v750 = vld [vmem:[%s4 + $0x548] sm:$0xff]
      %v751 = vld [vmem:[%s4 + $0x550] sm:$0xff]
      %v752 = vld [vmem:[%s4 + $0x558] sm:$0xff]
      %v753 = vld [vmem:[%s4 + $0x560] sm:$0xff]
      %v754 = vld [vmem:[%s4 + $0x568] sm:$0xff]
      %v755 = vld [vmem:[%s4 + $0x570] sm:$0xff]
      %v756 = vld [vmem:[%s4 + $0x578] sm:$0xff]
      %v757 = vld [vmem:[%s4 + $0x580] sm:$0xff]
      %v758 = vld [vmem:[%s4 + $0x588] sm:$0xff]
      %v759 = vld [vmem:[%s4 + $0x590] sm:$0xff]
      %v760 = vld [vmem:[%s4 + $0x598] sm:$0xff]
      %v761 = vld [vmem:[%s4 + $0x5a0] sm:$0xff]
      %v762 = vld [vmem:[%s4 + $0x5a8] sm:$0xff]
      %v763 = vld [vmem:[%s4 + $0x5b0] sm:$0xff]
      %v764 = vld [vmem:[%s4 + $0x5b8] sm:$0xff]
      %v765 = vld [vmem:[%s4 + $0x5c0] sm:$0xff]
      %v766 = vld [vmem:[%s4 + $0x5c8] sm:$0xff]
      %v767 = vld [vmem:[%s4 + $0x5d0] sm:$0xff]
      %v768 = vld [vmem:[%s4 + $0x5d8] sm:$0xff]
      %v769 = vld [vmem:[%s4 + $0x5e0] sm:$0xff]
      %v770 = vld [vmem:[%s4 + $0x5e8] sm:$0xff]
      %v771 = vld [vmem:[%s4 + $0x5f0] sm:$0xff]
      %v772 = vld [vmem:[%s4 + $0x5f8] sm:$0xff]
      %v773 = vld [vmem:[%s4 + $0x600] sm:$0xff]
      %v774 = vld [vmem:[%s4 + $0x608] sm:$0xff]
      %v775 = vld [vmem:[%s4 + $0x610] sm:$0xff]
      %v776 = vld [vmem:[%s4 + $0x618] sm:$0xff]
      %v777 = vld [vmem:[%s4 + $0x620] sm:$0xff]
      %v778 = vld [vmem:[%s4 + $0x628] sm:$0xff]
      %v779 = vld [vmem:[%s4 + $0x630] sm:$0xff]
      %v780 = vld [vmem:[%s4 + $0x638] sm:$0xff]
      %v781 = vld [vmem:[%s4 + $0x640] sm:$0xff]
      %v782 = vld [vmem:[%s4 + $0x648] sm:$0xff]
      %v783 = vld [vmem:[%s4 + $0x650] sm:$0xff]
      %v784 = vld [vmem:[%s4 + $0x658] sm:$0xff]
      %v785 = vld [vmem:[%s4 + $0x660] sm:$0xff]
      %v786 = vld [vmem:[%s4 + $0x668] sm:$0xff]
      %v787 = vld [vmem:[%s4 + $0x670] sm:$0xff]
      %v788 = vld [vmem:[%s4 + $0x678] sm:$0xff]
      %v789 = vld [vmem:[%s4 + $0x680] sm:$0xff]
      %v790 = vld [vmem:[%s4 + $0x688] sm:$0xff]
      %v791 = vld [vmem:[%s4 + $0x690] sm:$0xff]
      %v792 = vld [vmem:[%s4 + $0x698] sm:$0xff]
      %v793 = vld [vmem:[%s4 + $0x6a0] sm:$0xff]
      %v794 = vld [vmem:[%s4 + $0x6a8] sm:$0xff]
      %v795 = vld [vmem:[%s4 + $0x6b0] sm:$0xff]
      %v796 = vld [vmem:[%s4 + $0x6b8] sm:$0xff]
      %v797 = vld [vmem:[%s4 + $0x6c0] sm:$0xff]
      %v798 = vld [vmem:[%s4 + $0x6c8] sm:$0xff]
      %v799 = vld [vmem:[%s4 + $0x6d0] sm:$0xff]
      %v800 = vld [vmem:[%s4 + $0x6d8] sm:$0xff]
      %v801 = vld [vmem:[%s4 + $0x6e0] sm:$0xff]
      %v802 = vld [vmem:[%s4 + $0x6e8] sm:$0xff]
      %v803 = vld [vmem:[%s4 + $0x6f0] sm:$0xff]
      %v804 = vld [vmem:[%s4 + $0x6f8] sm:$0xff]
      %v805 = vld [vmem:[%s4 + $0x700] sm:$0xff]
      %v806 = vld [vmem:[%s4 + $0x708] sm:$0xff]
      %v807 = vld [vmem:[%s4 + $0x710] sm:$0xff]
      %v808 = vld [vmem:[%s4 + $0x718] sm:$0xff]
      %v809 = vld [vmem:[%s4 + $0x720] sm:$0xff]
      %v810 = vld [vmem:[%s4 + $0x728] sm:$0xff]
      %v811 = vld [vmem:[%s4 + $0x730] sm:$0xff]
      %v812 = vld [vmem:[%s4 + $0x738] sm:$0xff]
      %v813 = vld [vmem:[%s4 + $0x740] sm:$0xff]
      %v814 = vld [vmem:[%s4 + $0x748] sm:$0xff]
      %v815 = vld [vmem:[%s4 + $0x750] sm:$0xff]
      %v816 = vld [vmem:[%s4 + $0x758] sm:$0xff]
      %v817 = vld [vmem:[%s4 + $0x760] sm:$0xff]
      %v818 = vld [vmem:[%s4 + $0x768] sm:$0xff]
      %v819 = vld [vmem:[%s4 + $0x770] sm:$0xff]
      %v820 = vld [vmem:[%s4 + $0x778] sm:$0xff]
      %v821 = vld [vmem:[%s4 + $0x780] sm:$0xff]
      %v822 = vld [vmem:[%s4 + $0x788] sm:$0xff]
      %v823 = vld [vmem:[%s4 + $0x790] sm:$0xff]
      %v824 = vld [vmem:[%s4 + $0x798] sm:$0xff]
      %v825 = vld [vmem:[%s4 + $0x7a0] sm:$0xff]
      %v826 = vld [vmem:[%s4 + $0x7a8] sm:$0xff]
      %v827 = vld [vmem:[%s4 + $0x7b0] sm:$0xff]
      %v828 = vld [vmem:[%s4 + $0x7b8] sm:$0xff]
      %v829 = vld [vmem:[%s4 + $0x7c0] sm:$0xff]
      %v830 = vld [vmem:[%s4 + $0x7c8] sm:$0xff]
      %v831 = vld [vmem:[%s4 + $0x7d0] sm:$0xff]
      %v832 = vld [vmem:[%s4 + $0x7d8] sm:$0xff]
      %v833 = vld [vmem:[%s4 + $0x7e0] sm:$0xff]
      %v834 = vld [vmem:[%s4 + $0x7e8] sm:$0xff]
      %v835 = vld [vmem:[%s4 + $0x7f0] sm:$0xff]
      %v836 = vld [vmem:[%s4 + $0x7f8] sm:$0xff]
      %v837 = vld [vmem:[%s4 + $0x800] sm:$0xff]
      %v838 = vld [vmem:[%s4 + $0x808] sm:$0xff]
      %v839 = vld [vmem:[%s4 + $0x810] sm:$0xff]
      %v840 = vld [vmem:[%s4 + $0x818] sm:$0xff]
      %v841 = vld [vmem:[%s4 + $0x820] sm:$0xff]
      %v842 = vld [vmem:[%s4 + $0x828] sm:$0xff]
      %v843 = vld [vmem:[%s4 + $0x830] sm:$0xff]
      %v844 = vld [vmem:[%s4 + $0x838] sm:$0xff]
      %v845 = vld [vmem:[%s4 + $0x840] sm:$0xff]
      %v846 = vld [vmem:[%s4 + $0x848] sm:$0xff]
      %v847 = vld [vmem:[%s4 + $0x850] sm:$0xff]
      %v848 = vld [vmem:[%s4 + $0x858] sm:$0xff]
      %v849 = vld [vmem:[%s4 + $0x860] sm:$0xff]
      %v850 = vld [vmem:[%s4 + $0x868] sm:$0xff]
      %v851 = vld [vmem:[%s4 + $0x870] sm:$0xff]
      %v852 = vld [vmem:[%s4 + $0x878] sm:$0xff]
      %v853 = vld [vmem:[%s4 + $0x880] sm:$0xff]
      %v854 = vld [vmem:[%s4 + $0x888] sm:$0xff]
      %v855 = vld [vmem:[%s4 + $0x890] sm:$0xff]
      %v856 = vld [vmem:[%s4 + $0x898] sm:$0xff]
      %v857 = vld [vmem:[%s4 + $0x8a0] sm:$0xff]
      %v858 = vld [vmem:[%s4 + $0x8a8] sm:$0xff]
      %v859 = vld [vmem:[%s4 + $0x8b0] sm:$0xff]
      %v860 = vld [vmem:[%s4 + $0x8b8] sm:$0xff]
      %v861 = vld [vmem:[%s4 + $0x8c0] sm:$0xff]
      %v862 = vld [vmem:[%s4 + $0x8c8] sm:$0xff]
      %v863 = vld [vmem:[%s4 + $0x8d0] sm:$0xff]
      %v864 = vld [vmem:[%s4 + $0x8d8] sm:$0xff]
      %v865 = vld [vmem:[%s4 + $0x8e0] sm:$0xff]
      %v866 = vld [vmem:[%s4 + $0x8e8] sm:$0xff]
      %v867 = vld [vmem:[%s4 + $0x8f0] sm:$0xff]
      %v868 = vld [vmem:[%s4 + $0x8f8] sm:$0xff]
      %v869 = vld [vmem:[%s5] sm:$0xf]
      %871 = vset.pattern.permute.xlu0 0
      %872 = vperm.xlu0 %871, %v869
      %v873 = vpop.permute.xlu0 %872
      %876 = vst [vmem:[#allocation1] ss:$4 sm:$0xff] %v576
      %s878 = scalar_lea.vmem [#allocation1], 32
      %879 = vst [vmem:[%s878] ss:$4 sm:$0xff] %v577
      %v880 = vld.sshfl [vmem:[#allocation1] sm:$0xff pattern:$0x73625140]
      %v881 = vld.sshfl [vmem:[#allocation1 + $0x8] sm:$0xff pattern:$0x73625140]
      %v882 = vld.sshfl [vmem:[#allocation1 + $0x10] sm:$0xff pattern:$0x73625140]
      %v883 = vld.sshfl [vmem:[#allocation1 + $0x18] sm:$0xff pattern:$0x73625140]
      %v884 = vld.sshfl [vmem:[#allocation1 + $0x20] sm:$0xff pattern:$0x73625140]
      %v885 = vld.sshfl [vmem:[#allocation1 + $0x28] sm:$0xff pattern:$0x73625140]
      %v886 = vld.sshfl [vmem:[#allocation1 + $0x30] sm:$0xff pattern:$0x73625140]
      %v887 = vld.sshfl [vmem:[#allocation1 + $0x38] sm:$0xff pattern:$0x73625140]
      %889 = vst [vmem:[#allocation1] ss:$4 sm:$0xff] %v578
      %891 = vst [vmem:[%s878] ss:$4 sm:$0xff] %v579
      %v892 = vld.sshfl [vmem:[#allocation1] sm:$0xff pattern:$0x73625140]
      %v893 = vld.sshfl [vmem:[#allocation1 + $0x8] sm:$0xff pattern:$0x73625140]
      %v894 = vld.sshfl [vmem:[#allocation1 + $0x10] sm:$0xff pattern:$0x73625140]
      %v895 = vld.sshfl [vmem:[#allocation1 + $0x18] sm:$0xff pattern:$0x73625140]
      %v896 = vld.sshfl [vmem:[#allocation1 + $0x20] sm:$0xff pattern:$0x73625140]
      %v897 = vld.sshfl [vmem:[#allocation1 + $0x28] sm:$0xff pattern:$0x73625140]
      %v898 = vld.sshfl [vmem:[#allocation1 + $0x30] sm:$0xff pattern:$0x73625140]
      %v899 = vld.sshfl [vmem:[#allocation1 + $0x38] sm:$0xff pattern:$0x73625140]
      %901 = vst [vmem:[#allocation1] ss:$4 sm:$0xff] %v580
      %v902 = vld.sshfl [vmem:[#allocation1] sm:$0xff pattern:$0x73625140]
      %v903 = vld.sshfl [vmem:[#allocation1 + $0x8] sm:$0xff pattern:$0x73625140]
      %v1210 = vunpack.c.l.b16 %v581
      %v1211 = vunpack.c.h.b16 %v581
      %v1212 = vunpack.c.l.b16 %v582
      %v1213 = vunpack.c.h.b16 %v582
      %v1214 = vunpack.c.l.b16 %v583
      %v1215 = vunpack.c.h.b16 %v583
      %v1216 = vunpack.c.l.b16 %v584
      %v1217 = vunpack.c.h.b16 %v584
      %v1218 = vunpack.c.l.b16 %v585
      %v1219 = vunpack.c.h.b16 %v585
      %v1220 = vunpack.c.l.b16 %v586
      %v1221 = vunpack.c.h.b16 %v586
      %v1222 = vunpack.c.l.b16 %v587
      %v1223 = vunpack.c.h.b16 %v587
      %v1224 = vunpack.c.l.b16 %v588
      %v1225 = vunpack.c.h.b16 %v588
      %v1226 = vunpack.c.l.b16 %v589
      %v1227 = vunpack.c.h.b16 %v589
      %v1228 = vunpack.c.l.b16 %v590
      %v1229 = vunpack.c.h.b16 %v590
      %v1230 = vunpack.c.l.b16 %v591
      %v1231 = vunpack.c.h.b16 %v591
      %v1232 = vunpack.c.l.b16 %v592
      %v1233 = vunpack.c.h.b16 %v592
      %v1234 = vunpack.c.l.b16 %v593
      %v1235 = vunpack.c.h.b16 %v593
      %v1236 = vunpack.c.l.b16 %v594
      %v1237 = vunpack.c.h.b16 %v594
      %v1238 = vunpack.c.l.b16 %v595
      %v1239 = vunpack.c.h.b16 %v595
      %v1240 = vunpack.c.l.b16 %v596
      %v1241 = vunpack.c.h.b16 %v596
      %v1242 = vunpack.c.l.b16 %v597
      %v1243 = vunpack.c.h.b16 %v597
      %v1244 = vunpack.c.l.b16 %v598
      %v1245 = vunpack.c.h.b16 %v598
      %v1246 = vunpack.c.l.b16 %v599
      %v1247 = vunpack.c.h.b16 %v599
      %v1248 = vunpack.c.l.b16 %v600
      %v1249 = vunpack.c.h.b16 %v600
      %v1250 = vunpack.c.l.b16 %v601
      %v1251 = vunpack.c.h.b16 %v601
      %v1252 = vunpack.c.l.b16 %v602
      %v1253 = vunpack.c.h.b16 %v602
      %v1254 = vunpack.c.l.b16 %v603
      %v1255 = vunpack.c.h.b16 %v603
      %v1256 = vunpack.c.l.b16 %v604
      %v1257 = vunpack.c.h.b16 %v604
      %v1258 = vunpack.c.l.b16 %v605
      %v1259 = vunpack.c.h.b16 %v605
      %v1260 = vunpack.c.l.b16 %v606
      %v1261 = vunpack.c.h.b16 %v606
      %v1262 = vunpack.c.l.b16 %v607
      %v1263 = vunpack.c.h.b16 %v607
      %v1264 = vunpack.c.l.b16 %v608
      %v1265 = vunpack.c.h.b16 %v608
      %v1266 = vunpack.c.l.b16 %v609
      %v1267 = vunpack.c.h.b16 %v609
      %v1268 = vunpack.c.l.b16 %v610
      %v1269 = vunpack.c.h.b16 %v610
      %v1270 = vunpack.c.l.b16 %v611
      %v1271 = vunpack.c.h.b16 %v611
      %v1272 = vunpack.c.l.b16 %v612
      %v1273 = vunpack.c.h.b16 %v612
      %v1274 = vunpack.c.l.b16 %v613
      %v1275 = vunpack.c.h.b16 %v613
      %v1276 = vunpack.c.l.b16 %v614
      %v1277 = vunpack.c.h.b16 %v614
      %v1278 = vunpack.c.l.b16 %v615
      %v1279 = vunpack.c.h.b16 %v615
      %v1280 = vunpack.c.l.b16 %v616
      %v1281 = vunpack.c.h.b16 %v616
      %v1282 = vunpack.c.l.b16 %v617
      %v1283 = vunpack.c.h.b16 %v617
      %v1284 = vunpack.c.l.b16 %v618
      %v1285 = vunpack.c.h.b16 %v618
      %v1286 = vunpack.c.l.b16 %v619
      %v1287 = vunpack.c.h.b16 %v619
      %v1288 = vunpack.c.l.b16 %v620
      %v1289 = vunpack.c.h.b16 %v620
      %v1290 = vunpack.c.l.b16 %v621
      %v1291 = vunpack.c.h.b16 %v621
      %v1292 = vunpack.c.l.b16 %v622
      %v1293 = vunpack.c.h.b16 %v622
      %v1294 = vunpack.c.l.b16 %v623
      %v1295 = vunpack.c.h.b16 %v623
      %v1296 = vunpack.c.l.b16 %v624
      %v1297 = vunpack.c.h.b16 %v624
      %v1298 = vunpack.c.l.b16 %v625
      %v1299 = vunpack.c.h.b16 %v625
      %v1300 = vunpack.c.l.b16 %v626
      %v1301 = vunpack.c.h.b16 %v626
      %v1302 = vunpack.c.l.b16 %v627
      %v1303 = vunpack.c.h.b16 %v627
      %v1304 = vunpack.c.l.b16 %v628
      %v1305 = vunpack.c.h.b16 %v628
      %v1306 = vunpack.c.l.b16 %v629
      %v1307 = vunpack.c.h.b16 %v629
      %v1308 = vunpack.c.l.b16 %v630
      %v1309 = vunpack.c.h.b16 %v630
      %v1310 = vunpack.c.l.b16 %v631
      %v1311 = vunpack.c.h.b16 %v631
      %v1312 = vunpack.c.l.b16 %v632
      %v1313 = vunpack.c.h.b16 %v632
      %v1314 = vunpack.c.l.b16 %v633
      %v1315 = vunpack.c.h.b16 %v633
      %v1316 = vunpack.c.l.b16 %v634
      %v1317 = vunpack.c.h.b16 %v634
      %v1318 = vunpack.c.l.b16 %v635
      %v1319 = vunpack.c.h.b16 %v635
      %v1320 = vunpack.c.l.b16 %v636
      %v1321 = vunpack.c.h.b16 %v636
      %v1322 = vunpack.c.l.b16 %v637
      %v1323 = vunpack.c.h.b16 %v637
      %v1324 = vunpack.c.l.b16 %v638
      %v1325 = vunpack.c.h.b16 %v638
      %v1326 = vunpack.c.l.b16 %v639
      %v1327 = vunpack.c.h.b16 %v639
      %v1328 = vunpack.c.l.b16 %v640
      %v1329 = vunpack.c.h.b16 %v640
      %v1330 = vunpack.c.l.b16 %v641
      %v1331 = vunpack.c.h.b16 %v641
      %v1332 = vunpack.c.l.b16 %v642
      %v1333 = vunpack.c.h.b16 %v642
      %v1334 = vunpack.c.l.b16 %v643
      %v1335 = vunpack.c.h.b16 %v643
      %v1336 = vunpack.c.l.b16 %v644
      %v1337 = vunpack.c.h.b16 %v644
      %v1338 = vunpack.c.l.b16 %v645
      %v1339 = vunpack.c.h.b16 %v645
      %v1340 = vunpack.c.l.b16 %v646
      %v1341 = vunpack.c.h.b16 %v646
      %v1342 = vunpack.c.l.b16 %v647
      %v1343 = vunpack.c.h.b16 %v647
      %v1344 = vunpack.c.l.b16 %v648
      %v1345 = vunpack.c.h.b16 %v648
      %v1346 = vunpack.c.l.b16 %v649
      %v1347 = vunpack.c.h.b16 %v649
      %v1348 = vunpack.c.l.b16 %v650
      %v1349 = vunpack.c.h.b16 %v650
      %v1350 = vunpack.c.l.b16 %v651
      %v1351 = vunpack.c.h.b16 %v651
      %v1352 = vunpack.c.l.b16 %v652
      %v1353 = vunpack.c.h.b16 %v652
      %v1354 = vunpack.c.l.b16 %v653
      %v1355 = vunpack.c.h.b16 %v653
      %v1356 = vunpack.c.l.b16 %v654
      %v1357 = vunpack.c.h.b16 %v654
      %v1358 = vunpack.c.l.b16 %v655
      %v1359 = vunpack.c.h.b16 %v655
      %v1360 = vunpack.c.l.b16 %v656
      %v1361 = vunpack.c.h.b16 %v656
      %v1362 = vunpack.c.l.b16 %v657
      %v1363 = vunpack.c.h.b16 %v657
      %v1364 = vunpack.c.l.b16 %v658
      %v1365 = vunpack.c.h.b16 %v658
      %v1366 = vunpack.c.l.b16 %v659
      %v1367 = vunpack.c.h.b16 %v659
      %v1368 = vunpack.c.l.b16 %v660
      %v1369 = vunpack.c.h.b16 %v660
      %v1370 = vunpack.c.l.b16 %v661
      %v1371 = vunpack.c.h.b16 %v661
      %v1372 = vunpack.c.l.b16 %v662
      %v1373 = vunpack.c.h.b16 %v662
      %v1374 = vunpack.c.l.b16 %v663
      %v1375 = vunpack.c.h.b16 %v663
      %v1376 = vunpack.c.l.b16 %v664
      %v1377 = vunpack.c.h.b16 %v664
      %v1378 = vunpack.c.l.b16 %v665
      %v1379 = vunpack.c.h.b16 %v665
      %v1380 = vunpack.c.l.b16 %v666
      %v1381 = vunpack.c.h.b16 %v666
      %v1382 = vunpack.c.l.b16 %v667
      %v1383 = vunpack.c.h.b16 %v667
      %v1384 = vunpack.c.l.b16 %v668
      %v1385 = vunpack.c.h.b16 %v668
      %v1386 = vunpack.c.l.b16 %v669
      %v1387 = vunpack.c.h.b16 %v669
      %v1388 = vunpack.c.l.b16 %v670
      %v1389 = vunpack.c.h.b16 %v670
      %v1390 = vunpack.c.l.b16 %v671
      %v1391 = vunpack.c.h.b16 %v671
      %v1392 = vunpack.c.l.b16 %v672
      %v1393 = vunpack.c.h.b16 %v672
      %v1394 = vunpack.c.l.b16 %v673
      %v1395 = vunpack.c.h.b16 %v673
      %v1396 = vunpack.c.l.b16 %v674
      %v1397 = vunpack.c.h.b16 %v674
      %v1398 = vunpack.c.l.b16 %v675
      %v1399 = vunpack.c.h.b16 %v675
      %v1400 = vunpack.c.l.b16 %v676
      %v1401 = vunpack.c.h.b16 %v676
      %v1402 = vunpack.c.l.b16 %v677
      %v1403 = vunpack.c.h.b16 %v677
      %v1404 = vunpack.c.l.b16 %v678
      %v1405 = vunpack.c.h.b16 %v678
      %v1406 = vunpack.c.l.b16 %v679
      %v1407 = vunpack.c.h.b16 %v679
      %v1408 = vunpack.c.l.b16 %v680
      %v1409 = vunpack.c.h.b16 %v680
      %v1410 = vunpack.c.l.b16 %v681
      %v1411 = vunpack.c.h.b16 %v681
      %v1412 = vunpack.c.l.b16 %v682
      %v1413 = vunpack.c.h.b16 %v682
      %v1414 = vunpack.c.l.b16 %v683
      %v1415 = vunpack.c.h.b16 %v683
      %v1416 = vunpack.c.l.b16 %v684
      %v1417 = vunpack.c.h.b16 %v684
      %v1418 = vunpack.c.l.b16 %v685
      %v1419 = vunpack.c.h.b16 %v685
      %v1420 = vunpack.c.l.b16 %v686
      %v1421 = vunpack.c.h.b16 %v686
      %v1422 = vunpack.c.l.b16 %v687
      %v1423 = vunpack.c.h.b16 %v687
      %v1424 = vunpack.c.l.b16 %v688
      %v1425 = vunpack.c.h.b16 %v688
      %v1426 = vunpack.c.l.b16 %v689
      %v1427 = vunpack.c.h.b16 %v689
      %v1428 = vunpack.c.l.b16 %v690
      %v1429 = vunpack.c.h.b16 %v690
      %v1430 = vunpack.c.l.b16 %v691
      %v1431 = vunpack.c.h.b16 %v691
      %v1432 = vunpack.c.l.b16 %v692
      %v1433 = vunpack.c.h.b16 %v692
      %v1434 = vunpack.c.l.b16 %v693
      %v1435 = vunpack.c.h.b16 %v693
      %v1436 = vunpack.c.l.b16 %v694
      %v1437 = vunpack.c.h.b16 %v694
      %v1438 = vunpack.c.l.b16 %v695
      %v1439 = vunpack.c.h.b16 %v695
      %v1440 = vunpack.c.l.b16 %v696
      %v1441 = vunpack.c.h.b16 %v696
      %v1442 = vunpack.c.l.b16 %v697
      %v1443 = vunpack.c.h.b16 %v697
      %v1444 = vunpack.c.l.b16 %v698
      %v1445 = vunpack.c.h.b16 %v698
      %v1446 = vunpack.c.l.b16 %v699
      %v1447 = vunpack.c.h.b16 %v699
      %v1448 = vunpack.c.l.b16 %v700
      %v1449 = vunpack.c.h.b16 %v700
      %v1450 = vunpack.c.l.b16 %v701
      %v1451 = vunpack.c.h.b16 %v701
      %v1452 = vunpack.c.l.b16 %v702
      %v1453 = vunpack.c.h.b16 %v702
      %v1454 = vunpack.c.l.b16 %v703
      %v1455 = vunpack.c.h.b16 %v703
      %v1456 = vunpack.c.l.b16 %v704
      %v1457 = vunpack.c.h.b16 %v704
      %v1458 = vunpack.c.l.b16 %v705
      %v1459 = vunpack.c.h.b16 %v705
      %v1460 = vunpack.c.l.b16 %v706
      %v1461 = vunpack.c.h.b16 %v706
      %v1462 = vunpack.c.l.b16 %v707
      %v1463 = vunpack.c.h.b16 %v707
      %v1464 = vunpack.c.l.b16 %v708
      %v1465 = vunpack.c.h.b16 %v708
      %v1466 = vunpack.c.l.b16 %v709
      %v1467 = vunpack.c.h.b16 %v709
      %v1468 = vunpack.c.l.b16 %v710
      %v1469 = vunpack.c.h.b16 %v710
      %v1470 = vunpack.c.l.b16 %v711
      %v1471 = vunpack.c.h.b16 %v711
      %v1472 = vunpack.c.l.b16 %v712
      %v1473 = vunpack.c.h.b16 %v712
      %v1474 = vunpack.c.l.b16 %v713
      %v1475 = vunpack.c.h.b16 %v713
      %v1476 = vunpack.c.l.b16 %v714
      %v1477 = vunpack.c.h.b16 %v714
      %v1478 = vunpack.c.l.b16 %v715
      %v1479 = vunpack.c.h.b16 %v715
      %v1480 = vunpack.c.l.b16 %v716
      %v1481 = vunpack.c.h.b16 %v716
      %v1482 = vunpack.c.l.b16 %v717
      %v1483 = vunpack.c.h.b16 %v717
      %v1484 = vunpack.c.l.b16 %v718
      %v1485 = vunpack.c.h.b16 %v718
      %v1486 = vunpack.c.l.b16 %v719
      %v1487 = vunpack.c.h.b16 %v719
      %v1488 = vunpack.c.l.b16 %v720
      %v1489 = vunpack.c.h.b16 %v720
      %v1490 = vunpack.c.l.b16 %v721
      %v1491 = vunpack.c.h.b16 %v721
      %v1492 = vunpack.c.l.b16 %v722
      %v1493 = vunpack.c.h.b16 %v722
      %v1494 = vunpack.c.l.b16 %v723
      %v1495 = vunpack.c.h.b16 %v723
      %v1496 = vunpack.c.l.b16 %v724
      %v1497 = vunpack.c.h.b16 %v724
      %v1498 = vunpack.c.l.b16 %v725
      %v1499 = vunpack.c.h.b16 %v725
      %v1500 = vunpack.c.l.b16 %v726
      %v1501 = vunpack.c.h.b16 %v726
      %v1502 = vunpack.c.l.b16 %v727
      %v1503 = vunpack.c.h.b16 %v727
      %v1504 = vunpack.c.l.b16 %v728
      %v1505 = vunpack.c.h.b16 %v728
      %v1506 = vunpack.c.l.b16 %v729
      %v1507 = vunpack.c.h.b16 %v729
      %v1508 = vunpack.c.l.b16 %v730
      %v1509 = vunpack.c.h.b16 %v730
      %v1510 = vunpack.c.l.b16 %v731
      %v1511 = vunpack.c.h.b16 %v731
      %v1512 = vunpack.c.l.b16 %v732
      %v1513 = vunpack.c.h.b16 %v732
      %v1514 = vunpack.c.l.b16 %v733
      %v1515 = vunpack.c.h.b16 %v733
      %v1516 = vunpack.c.l.b16 %v734
      %v1517 = vunpack.c.h.b16 %v734
      %v1518 = vunpack.c.l.b16 %v735
      %v1519 = vunpack.c.h.b16 %v735
      %v1520 = vunpack.c.l.b16 %v736
      %v1521 = vunpack.c.h.b16 %v736
      %v1522 = vunpack.c.l.b16 %v737
      %v1523 = vunpack.c.h.b16 %v737
      %v1524 = vunpack.c.l.b16 %v738
      %v1525 = vunpack.c.h.b16 %v738
      %v1526 = vunpack.c.l.b16 %v739
      %v1527 = vunpack.c.h.b16 %v739
      %v1528 = vunpack.c.l.b16 %v740
      %v1529 = vunpack.c.h.b16 %v740
      %v1530 = vunpack.c.l.b16 %v741
      %v1531 = vunpack.c.h.b16 %v741
      %v1532 = vunpack.c.l.b16 %v742
      %v1533 = vunpack.c.h.b16 %v742
      %v1534 = vunpack.c.l.b16 %v743
      %v1535 = vunpack.c.h.b16 %v743
      %v1536 = vunpack.c.l.b16 %v744
      %v1537 = vunpack.c.h.b16 %v744
      %v1538 = vunpack.c.l.b16 %v745
      %v1539 = vunpack.c.h.b16 %v745
      %v1540 = vunpack.c.l.b16 %v746
      %v1541 = vunpack.c.h.b16 %v746
      %v1542 = vunpack.c.l.b16 %v747
      %v1543 = vunpack.c.h.b16 %v747
      %v1544 = vunpack.c.l.b16 %v748
      %v1545 = vunpack.c.h.b16 %v748
      %v1546 = vunpack.c.l.b16 %v749
      %v1547 = vunpack.c.h.b16 %v749
      %v1548 = vunpack.c.l.b16 %v750
      %v1549 = vunpack.c.h.b16 %v750
      %v1550 = vunpack.c.l.b16 %v751
      %v1551 = vunpack.c.h.b16 %v751
      %v1552 = vunpack.c.l.b16 %v752
      %v1553 = vunpack.c.h.b16 %v752
      %v1554 = vunpack.c.l.b16 %v753
      %v1555 = vunpack.c.h.b16 %v753
      %v1556 = vunpack.c.l.b16 %v754
      %v1557 = vunpack.c.h.b16 %v754
      %v1558 = vunpack.c.l.b16 %v755
      %v1559 = vunpack.c.h.b16 %v755
      %v1560 = vunpack.c.l.b16 %v756
      %v1561 = vunpack.c.h.b16 %v756
      %v1562 = vunpack.c.l.b16 %v757
      %v1563 = vunpack.c.h.b16 %v757
      %v1564 = vunpack.c.l.b16 %v758
      %v1565 = vunpack.c.h.b16 %v758
      %v1566 = vunpack.c.l.b16 %v759
      %v1567 = vunpack.c.h.b16 %v759
      %v1568 = vunpack.c.l.b16 %v760
      %v1569 = vunpack.c.h.b16 %v760
      %v1570 = vunpack.c.l.b16 %v761
      %v1571 = vunpack.c.h.b16 %v761
      %v1572 = vunpack.c.l.b16 %v762
      %v1573 = vunpack.c.h.b16 %v762
      %v1574 = vunpack.c.l.b16 %v763
      %v1575 = vunpack.c.h.b16 %v763
      %v1576 = vunpack.c.l.b16 %v764
      %v1577 = vunpack.c.h.b16 %v764
      %v1578 = vunpack.c.l.b16 %v765
      %v1579 = vunpack.c.h.b16 %v765
      %v1580 = vunpack.c.l.b16 %v766
      %v1581 = vunpack.c.h.b16 %v766
      %v1582 = vunpack.c.l.b16 %v767
      %v1583 = vunpack.c.h.b16 %v767
      %v1584 = vunpack.c.l.b16 %v768
      %v1585 = vunpack.c.h.b16 %v768
      %v1586 = vunpack.c.l.b16 %v769
      %v1587 = vunpack.c.h.b16 %v769
      %v1588 = vunpack.c.l.b16 %v770
      %v1589 = vunpack.c.h.b16 %v770
      %v1590 = vunpack.c.l.b16 %v771
      %v1591 = vunpack.c.h.b16 %v771
      %v1592 = vunpack.c.l.b16 %v772
      %v1593 = vunpack.c.h.b16 %v772
      %v1594 = vunpack.c.l.b16 %v773
      %v1595 = vunpack.c.h.b16 %v773
      %v1596 = vunpack.c.l.b16 %v774
      %v1597 = vunpack.c.h.b16 %v774
      %v1598 = vunpack.c.l.b16 %v775
      %v1599 = vunpack.c.h.b16 %v775
      %v1600 = vunpack.c.l.b16 %v776
      %v1601 = vunpack.c.h.b16 %v776
      %v1602 = vunpack.c.l.b16 %v777
      %v1603 = vunpack.c.h.b16 %v777
      %v1604 = vunpack.c.l.b16 %v778
      %v1605 = vunpack.c.h.b16 %v778
      %v1606 = vunpack.c.l.b16 %v779
      %v1607 = vunpack.c.h.b16 %v779
      %v1608 = vunpack.c.l.b16 %v780
      %v1609 = vunpack.c.h.b16 %v780
      %v1610 = vunpack.c.l.b16 %v781
      %v1611 = vunpack.c.h.b16 %v781
      %v1612 = vunpack.c.l.b16 %v782
      %v1613 = vunpack.c.h.b16 %v782
      %v1614 = vunpack.c.l.b16 %v783
      %v1615 = vunpack.c.h.b16 %v783
      %v1616 = vunpack.c.l.b16 %v784
      %v1617 = vunpack.c.h.b16 %v784
      %v1618 = vunpack.c.l.b16 %v785
      %v1619 = vunpack.c.h.b16 %v785
      %v1620 = vunpack.c.l.b16 %v786
      %v1621 = vunpack.c.h.b16 %v786
      %v1622 = vunpack.c.l.b16 %v787
      %v1623 = vunpack.c.h.b16 %v787
      %v1624 = vunpack.c.l.b16 %v788
      %v1625 = vunpack.c.h.b16 %v788
      %v1626 = vunpack.c.l.b16 %v789
      %v1627 = vunpack.c.h.b16 %v789
      %v1628 = vunpack.c.l.b16 %v790
      %v1629 = vunpack.c.h.b16 %v790
      %v1630 = vunpack.c.l.b16 %v791
      %v1631 = vunpack.c.h.b16 %v791
      %v1632 = vunpack.c.l.b16 %v792
      %v1633 = vunpack.c.h.b16 %v792
      %v1634 = vunpack.c.l.b16 %v793
      %v1635 = vunpack.c.h.b16 %v793
      %v1636 = vunpack.c.l.b16 %v794
      %v1637 = vunpack.c.h.b16 %v794
      %v1638 = vunpack.c.l.b16 %v795
      %v1639 = vunpack.c.h.b16 %v795
      %v1640 = vunpack.c.l.b16 %v796
      %v1641 = vunpack.c.h.b16 %v796
      %v1642 = vunpack.c.l.b16 %v797
      %v1643 = vunpack.c.h.b16 %v797
      %v1644 = vunpack.c.l.b16 %v798
      %v1645 = vunpack.c.h.b16 %v798
      %v1646 = vunpack.c.l.b16 %v799
      %v1647 = vunpack.c.h.b16 %v799
      %v1648 = vunpack.c.l.b16 %v800
      %v1649 = vunpack.c.h.b16 %v800
      %v1650 = vunpack.c.l.b16 %v801
      %v1651 = vunpack.c.h.b16 %v801
      %v1652 = vunpack.c.l.b16 %v802
      %v1653 = vunpack.c.h.b16 %v802
      %v1654 = vunpack.c.l.b16 %v803
      %v1655 = vunpack.c.h.b16 %v803
      %v1656 = vunpack.c.l.b16 %v804
      %v1657 = vunpack.c.h.b16 %v804
      %v1658 = vunpack.c.l.b16 %v805
      %v1659 = vunpack.c.h.b16 %v805
      %v1660 = vunpack.c.l.b16 %v806
      %v1661 = vunpack.c.h.b16 %v806
      %v1662 = vunpack.c.l.b16 %v807
      %v1663 = vunpack.c.h.b16 %v807
      %v1664 = vunpack.c.l.b16 %v808
      %v1665 = vunpack.c.h.b16 %v808
      %v1666 = vunpack.c.l.b16 %v809
      %v1667 = vunpack.c.h.b16 %v809
      %v1668 = vunpack.c.l.b16 %v810
      %v1669 = vunpack.c.h.b16 %v810
      %v1670 = vunpack.c.l.b16 %v811
      %v1671 = vunpack.c.h.b16 %v811
      %v1672 = vunpack.c.l.b16 %v812
      %v1673 = vunpack.c.h.b16 %v812
      %v1674 = vunpack.c.l.b16 %v813
      %v1675 = vunpack.c.h.b16 %v813
      %v1676 = vunpack.c.l.b16 %v814
      %v1677 = vunpack.c.h.b16 %v814
      %v1678 = vunpack.c.l.b16 %v815
      %v1679 = vunpack.c.h.b16 %v815
      %v1680 = vunpack.c.l.b16 %v816
      %v1681 = vunpack.c.h.b16 %v816
      %v1682 = vunpack.c.l.b16 %v817
      %v1683 = vunpack.c.h.b16 %v817
      %v1684 = vunpack.c.l.b16 %v818
      %v1685 = vunpack.c.h.b16 %v818
      %v1686 = vunpack.c.l.b16 %v819
      %v1687 = vunpack.c.h.b16 %v819
      %v1688 = vunpack.c.l.b16 %v820
      %v1689 = vunpack.c.h.b16 %v820
      %v1690 = vunpack.c.l.b16 %v821
      %v1691 = vunpack.c.h.b16 %v821
      %v1692 = vunpack.c.l.b16 %v822
      %v1693 = vunpack.c.h.b16 %v822
      %v1694 = vunpack.c.l.b16 %v823
      %v1695 = vunpack.c.h.b16 %v823
      %v1696 = vunpack.c.l.b16 %v824
      %v1697 = vunpack.c.h.b16 %v824
      %v1698 = vunpack.c.l.b16 %v825
      %v1699 = vunpack.c.h.b16 %v825
      %v1700 = vunpack.c.l.b16 %v826
      %v1701 = vunpack.c.h.b16 %v826
      %v1702 = vunpack.c.l.b16 %v827
      %v1703 = vunpack.c.h.b16 %v827
      %v1704 = vunpack.c.l.b16 %v828
      %v1705 = vunpack.c.h.b16 %v828
      %v1706 = vunpack.c.l.b16 %v829
      %v1707 = vunpack.c.h.b16 %v829
      %v1708 = vunpack.c.l.b16 %v830
      %v1709 = vunpack.c.h.b16 %v830
      %v1710 = vunpack.c.l.b16 %v831
      %v1711 = vunpack.c.h.b16 %v831
      %v1712 = vunpack.c.l.b16 %v832
      %v1713 = vunpack.c.h.b16 %v832
      %v1714 = vunpack.c.l.b16 %v833
      %v1715 = vunpack.c.h.b16 %v833
      %v1716 = vunpack.c.l.b16 %v834
      %v1717 = vunpack.c.h.b16 %v834
      %v1718 = vunpack.c.l.b16 %v835
      %v1719 = vunpack.c.h.b16 %v835
      %v1720 = vunpack.c.l.b16 %v836
      %v1721 = vunpack.c.h.b16 %v836
      %v1722 = vunpack.c.l.b16 %v837
      %v1723 = vunpack.c.h.b16 %v837
      %v1724 = vunpack.c.l.b16 %v838
      %v1725 = vunpack.c.h.b16 %v838
      %v1726 = vunpack.c.l.b16 %v839
      %v1727 = vunpack.c.h.b16 %v839
      %v1728 = vunpack.c.l.b16 %v840
      %v1729 = vunpack.c.h.b16 %v840
      %v1730 = vunpack.c.l.b16 %v841
      %v1731 = vunpack.c.h.b16 %v841
      %v1732 = vunpack.c.l.b16 %v842
      %v1733 = vunpack.c.h.b16 %v842
      %v1734 = vunpack.c.l.b16 %v843
      %v1735 = vunpack.c.h.b16 %v843
      %v1736 = vunpack.c.l.b16 %v844
      %v1737 = vunpack.c.h.b16 %v844
      %v1738 = vunpack.c.l.b16 %v845
      %v1739 = vunpack.c.h.b16 %v845
      %v1740 = vunpack.c.l.b16 %v846
      %v1741 = vunpack.c.h.b16 %v846
      %v1742 = vunpack.c.l.b16 %v847
      %v1743 = vunpack.c.h.b16 %v847
      %v1744 = vunpack.c.l.b16 %v848
      %v1745 = vunpack.c.h.b16 %v848
      %v1746 = vunpack.c.l.b16 %v849
      %v1747 = vunpack.c.h.b16 %v849
      %v1748 = vunpack.c.l.b16 %v850
      %v1749 = vunpack.c.h.b16 %v850
      %v1750 = vunpack.c.l.b16 %v851
      %v1751 = vunpack.c.h.b16 %v851
      %v1752 = vunpack.c.l.b16 %v852
      %v1753 = vunpack.c.h.b16 %v852
      %v1754 = vunpack.c.l.b16 %v853
      %v1755 = vunpack.c.h.b16 %v853
      %v1756 = vunpack.c.l.b16 %v854
      %v1757 = vunpack.c.h.b16 %v854
      %v1758 = vunpack.c.l.b16 %v855
      %v1759 = vunpack.c.h.b16 %v855
      %v1760 = vunpack.c.l.b16 %v856
      %v1761 = vunpack.c.h.b16 %v856
      %v1762 = vunpack.c.l.b16 %v857
      %v1763 = vunpack.c.h.b16 %v857
      %v1764 = vunpack.c.l.b16 %v858
      %v1765 = vunpack.c.h.b16 %v858
      %v1766 = vunpack.c.l.b16 %v859
      %v1767 = vunpack.c.h.b16 %v859
      %v1768 = vunpack.c.l.b16 %v860
      %v1769 = vunpack.c.h.b16 %v860
      %v1770 = vunpack.c.l.b16 %v861
      %v1771 = vunpack.c.h.b16 %v861
      %v1772 = vunpack.c.l.b16 %v862
      %v1773 = vunpack.c.h.b16 %v862
      %v1774 = vunpack.c.l.b16 %v863
      %v1775 = vunpack.c.h.b16 %v863
      %v1776 = vunpack.c.l.b16 %v864
      %v1777 = vunpack.c.h.b16 %v864
      %v1778 = vunpack.c.l.b16 %v865
      %v1779 = vunpack.c.h.b16 %v865
      %v1780 = vunpack.c.l.b16 %v866
      %v1781 = vunpack.c.h.b16 %v866
      %v1782 = vunpack.c.l.b16 %v867
      %v1783 = vunpack.c.h.b16 %v867
      %v1784 = vunpack.c.l.b16 %v868
      %v1785 = vunpack.c.h.b16 %v868
      %v1786 = vpack.c.b16 %v1212, %v1210
      %v1787 = vpack.c.b16 %v1213, %v1211
      %v1788 = vpack.c.b16 %v1216, %v1214
      %v1789 = vpack.c.b16 %v1217, %v1215
      %v1790 = vpack.c.b16 %v1220, %v1218
      %v1791 = vpack.c.b16 %v1221, %v1219
      %v1792 = vpack.c.b16 %v1224, %v1222
      %v1793 = vpack.c.b16 %v1225, %v1223
      %v1794 = vpack.c.b16 %v1228, %v1226
      %v1795 = vpack.c.b16 %v1229, %v1227
      %v1796 = vpack.c.b16 %v1232, %v1230
      %v1797 = vpack.c.b16 %v1233, %v1231
      %v1798 = vpack.c.b16 %v1236, %v1234
      %v1799 = vpack.c.b16 %v1237, %v1235
      %v1800 = vpack.c.b16 %v1240, %v1238
      %v1801 = vpack.c.b16 %v1241, %v1239
      %v1802 = vpack.c.b16 %v1244, %v1242
      %v1803 = vpack.c.b16 %v1245, %v1243
      %v1804 = vpack.c.b16 %v1248, %v1246
      %v1805 = vpack.c.b16 %v1249, %v1247
      %v1806 = vpack.c.b16 %v1252, %v1250
      %v1807 = vpack.c.b16 %v1253, %v1251
      %v1808 = vpack.c.b16 %v1256, %v1254
      %v1809 = vpack.c.b16 %v1257, %v1255
      %v1810 = vpack.c.b16 %v1260, %v1258
      %v1811 = vpack.c.b16 %v1261, %v1259
      %v1812 = vpack.c.b16 %v1264, %v1262
      %v1813 = vpack.c.b16 %v1265, %v1263
      %v1814 = vpack.c.b16 %v1268, %v1266
      %v1815 = vpack.c.b16 %v1269, %v1267
      %v1816 = vpack.c.b16 %v1272, %v1270
      %v1817 = vpack.c.b16 %v1273, %v1271
      %v1818 = vpack.c.b16 %v1276, %v1274
      %v1819 = vpack.c.b16 %v1277, %v1275
      %v1820 = vpack.c.b16 %v1280, %v1278
      %v1821 = vpack.c.b16 %v1281, %v1279
      %v1822 = vpack.c.b16 %v1284, %v1282
      %v1823 = vpack.c.b16 %v1285, %v1283
      %v1824 = vpack.c.b16 %v1288, %v1286
      %v1825 = vpack.c.b16 %v1289, %v1287
      %v1826 = vpack.c.b16 %v1292, %v1290
      %v1827 = vpack.c.b16 %v1293, %v1291
      %v1828 = vpack.c.b16 %v1296, %v1294
      %v1829 = vpack.c.b16 %v1297, %v1295
      %v1830 = vpack.c.b16 %v1300, %v1298
      %v1831 = vpack.c.b16 %v1301, %v1299
      %v1832 = vpack.c.b16 %v1304, %v1302
      %v1833 = vpack.c.b16 %v1305, %v1303
      %v1834 = vpack.c.b16 %v1308, %v1306
      %v1835 = vpack.c.b16 %v1309, %v1307
      %v1836 = vpack.c.b16 %v1312, %v1310
      %v1837 = vpack.c.b16 %v1313, %v1311
      %v1838 = vpack.c.b16 %v1316, %v1314
      %v1839 = vpack.c.b16 %v1317, %v1315
      %v1840 = vpack.c.b16 %v1320, %v1318
      %v1841 = vpack.c.b16 %v1321, %v1319
      %v1842 = vpack.c.b16 %v1324, %v1322
      %v1843 = vpack.c.b16 %v1325, %v1323
      %v1844 = vpack.c.b16 %v1328, %v1326
      %v1845 = vpack.c.b16 %v1329, %v1327
      %v1846 = vpack.c.b16 %v1332, %v1330
      %v1847 = vpack.c.b16 %v1333, %v1331
      %v1848 = vpack.c.b16 %v1336, %v1334
      %v1849 = vpack.c.b16 %v1337, %v1335
      %v1850 = vpack.c.b16 %v1340, %v1338
      %v1851 = vpack.c.b16 %v1341, %v1339
      %v1852 = vpack.c.b16 %v1344, %v1342
      %v1853 = vpack.c.b16 %v1345, %v1343
      %v1854 = vpack.c.b16 %v1348, %v1346
      %v1855 = vpack.c.b16 %v1349, %v1347
      %v1856 = vpack.c.b16 %v1352, %v1350
      %v1857 = vpack.c.b16 %v1353, %v1351
      %v1858 = vpack.c.b16 %v1356, %v1354
      %v1859 = vpack.c.b16 %v1357, %v1355
      %v1860 = vpack.c.b16 %v1360, %v1358
      %v1861 = vpack.c.b16 %v1361, %v1359
      %v1862 = vpack.c.b16 %v1364, %v1362
      %v1863 = vpack.c.b16 %v1365, %v1363
      %v1864 = vpack.c.b16 %v1368, %v1366
      %v1865 = vpack.c.b16 %v1369, %v1367
      %v1866 = vpack.c.b16 %v1372, %v1370
      %v1867 = vpack.c.b16 %v1373, %v1371
      %v1868 = vpack.c.b16 %v1376, %v1374
      %v1869 = vpack.c.b16 %v1377, %v1375
      %v1870 = vpack.c.b16 %v1380, %v1378
      %v1871 = vpack.c.b16 %v1381, %v1379
      %v1872 = vpack.c.b16 %v1384, %v1382
      %v1873 = vpack.c.b16 %v1385, %v1383
      %v1874 = vpack.c.b16 %v1388, %v1386
      %v1875 = vpack.c.b16 %v1389, %v1387
      %v1876 = vpack.c.b16 %v1392, %v1390
      %v1877 = vpack.c.b16 %v1393, %v1391
      %v1878 = vpack.c.b16 %v1396, %v1394
      %v1879 = vpack.c.b16 %v1397, %v1395
      %v1880 = vpack.c.b16 %v1400, %v1398
      %v1881 = vpack.c.b16 %v1401, %v1399
      %v1882 = vpack.c.b16 %v1404, %v1402
      %v1883 = vpack.c.b16 %v1405, %v1403
      %v1884 = vpack.c.b16 %v1408, %v1406
      %v1885 = vpack.c.b16 %v1409, %v1407
      %v1886 = vpack.c.b16 %v1412, %v1410
      %v1887 = vpack.c.b16 %v1413, %v1411
      %v1888 = vpack.c.b16 %v1416, %v1414
      %v1889 = vpack.c.b16 %v1417, %v1415
      %v1890 = vpack.c.b16 %v1420, %v1418
      %v1891 = vpack.c.b16 %v1421, %v1419
      %v1892 = vpack.c.b16 %v1424, %v1422
      %v1893 = vpack.c.b16 %v1425, %v1423
      %v1894 = vpack.c.b16 %v1428, %v1426
      %v1895 = vpack.c.b16 %v1429, %v1427
      %v1896 = vpack.c.b16 %v1432, %v1430
      %v1897 = vpack.c.b16 %v1433, %v1431
      %v1898 = vpack.c.b16 %v1436, %v1434
      %v1899 = vpack.c.b16 %v1437, %v1435
      %v1900 = vpack.c.b16 %v1440, %v1438
      %v1901 = vpack.c.b16 %v1441, %v1439
      %v1902 = vpack.c.b16 %v1444, %v1442
      %v1903 = vpack.c.b16 %v1445, %v1443
      %v1904 = vpack.c.b16 %v1448, %v1446
      %v1905 = vpack.c.b16 %v1449, %v1447
      %v1906 = vpack.c.b16 %v1452, %v1450
      %v1907 = vpack.c.b16 %v1453, %v1451
      %v1908 = vpack.c.b16 %v1456, %v1454
      %v1909 = vpack.c.b16 %v1457, %v1455
      %v1910 = vpack.c.b16 %v1460, %v1458
      %v1911 = vpack.c.b16 %v1461, %v1459
      %v1912 = vpack.c.b16 %v1464, %v1462
      %v1913 = vpack.c.b16 %v1465, %v1463
      %v1914 = vpack.c.b16 %v1468, %v1466
      %v1915 = vpack.c.b16 %v1469, %v1467
      %v1916 = vpack.c.b16 %v1472, %v1470
      %v1917 = vpack.c.b16 %v1473, %v1471
      %v1918 = vpack.c.b16 %v1476, %v1474
      %v1919 = vpack.c.b16 %v1477, %v1475
      %v1920 = vpack.c.b16 %v1480, %v1478
      %v1921 = vpack.c.b16 %v1481, %v1479
      %v1922 = vpack.c.b16 %v1484, %v1482
      %v1923 = vpack.c.b16 %v1485, %v1483
      %v1924 = vpack.c.b16 %v1488, %v1486
      %v1925 = vpack.c.b16 %v1489, %v1487
      %v1926 = vpack.c.b16 %v1492, %v1490
      %v1927 = vpack.c.b16 %v1493, %v1491
      %v1928 = vpack.c.b16 %v1496, %v1494
      %v1929 = vpack.c.b16 %v1497, %v1495
      %v1930 = vpack.c.b16 %v1500, %v1498
      %v1931 = vpack.c.b16 %v1501, %v1499
      %v1932 = vpack.c.b16 %v1504, %v1502
      %v1933 = vpack.c.b16 %v1505, %v1503
      %v1934 = vpack.c.b16 %v1508, %v1506
      %v1935 = vpack.c.b16 %v1509, %v1507
      %v1936 = vpack.c.b16 %v1512, %v1510
      %v1937 = vpack.c.b16 %v1513, %v1511
      %v1938 = vpack.c.b16 %v1516, %v1514
      %v1939 = vpack.c.b16 %v1517, %v1515
      %v1940 = vpack.c.b16 %v1520, %v1518
      %v1941 = vpack.c.b16 %v1521, %v1519
      %v1942 = vpack.c.b16 %v1524, %v1522
      %v1943 = vpack.c.b16 %v1525, %v1523
      %v1944 = vpack.c.b16 %v1528, %v1526
      %v1945 = vpack.c.b16 %v1529, %v1527
      %v1946 = vpack.c.b16 %v1532, %v1530
      %v1947 = vpack.c.b16 %v1533, %v1531
      %v1948 = vpack.c.b16 %v1536, %v1534
      %v1949 = vpack.c.b16 %v1537, %v1535
      %v1950 = vpack.c.b16 %v1540, %v1538
      %v1951 = vpack.c.b16 %v1541, %v1539
      %v1952 = vpack.c.b16 %v1544, %v1542
      %v1953 = vpack.c.b16 %v1545, %v1543
      %v1954 = vpack.c.b16 %v1548, %v1546
      %v1955 = vpack.c.b16 %v1549, %v1547
      %v1956 = vpack.c.b16 %v1552, %v1550
      %v1957 = vpack.c.b16 %v1553, %v1551
      %v1958 = vpack.c.b16 %v1556, %v1554
      %v1959 = vpack.c.b16 %v1557, %v1555
      %v1960 = vpack.c.b16 %v1560, %v1558
      %v1961 = vpack.c.b16 %v1561, %v1559
      %v1962 = vpack.c.b16 %v1564, %v1562
      %v1963 = vpack.c.b16 %v1565, %v1563
      %v1964 = vpack.c.b16 %v1568, %v1566
      %v1965 = vpack.c.b16 %v1569, %v1567
      %v1966 = vpack.c.b16 %v1572, %v1570
      %v1967 = vpack.c.b16 %v1573, %v1571
      %v1968 = vpack.c.b16 %v1576, %v1574
      %v1969 = vpack.c.b16 %v1577, %v1575
      %v1970 = vpack.c.b16 %v1580, %v1578
      %v1971 = vpack.c.b16 %v1581, %v1579
      %v1972 = vpack.c.b16 %v1584, %v1582
      %v1973 = vpack.c.b16 %v1585, %v1583
      %v1974 = vpack.c.b16 %v1588, %v1586
      %v1975 = vpack.c.b16 %v1589, %v1587
      %v1976 = vpack.c.b16 %v1592, %v1590
      %v1977 = vpack.c.b16 %v1593, %v1591
      %v1978 = vpack.c.b16 %v1596, %v1594
      %v1979 = vpack.c.b16 %v1597, %v1595
      %v1980 = vpack.c.b16 %v1600, %v1598
      %v1981 = vpack.c.b16 %v1601, %v1599
      %v1982 = vpack.c.b16 %v1604, %v1602
      %v1983 = vpack.c.b16 %v1605, %v1603
      %v1984 = vpack.c.b16 %v1608, %v1606
      %v1985 = vpack.c.b16 %v1609, %v1607
      %v1986 = vpack.c.b16 %v1612, %v1610
      %v1987 = vpack.c.b16 %v1613, %v1611
      %v1988 = vpack.c.b16 %v1616, %v1614
      %v1989 = vpack.c.b16 %v1617, %v1615
      %v1990 = vpack.c.b16 %v1620, %v1618
      %v1991 = vpack.c.b16 %v1621, %v1619
      %v1992 = vpack.c.b16 %v1624, %v1622
      %v1993 = vpack.c.b16 %v1625, %v1623
      %v1994 = vpack.c.b16 %v1628, %v1626
      %v1995 = vpack.c.b16 %v1629, %v1627
      %v1996 = vpack.c.b16 %v1632, %v1630
      %v1997 = vpack.c.b16 %v1633, %v1631
      %v1998 = vpack.c.b16 %v1636, %v1634
      %v1999 = vpack.c.b16 %v1637, %v1635
      %v2000 = vpack.c.b16 %v1640, %v1638
      %v2001 = vpack.c.b16 %v1641, %v1639
      %v2002 = vpack.c.b16 %v1644, %v1642
      %v2003 = vpack.c.b16 %v1645, %v1643
      %v2004 = vpack.c.b16 %v1648, %v1646
      %v2005 = vpack.c.b16 %v1649, %v1647
      %v2006 = vpack.c.b16 %v1652, %v1650
      %v2007 = vpack.c.b16 %v1653, %v1651
      %v2008 = vpack.c.b16 %v1656, %v1654
      %v2009 = vpack.c.b16 %v1657, %v1655
      %v2010 = vpack.c.b16 %v1660, %v1658
      %v2011 = vpack.c.b16 %v1661, %v1659
      %v2012 = vpack.c.b16 %v1664, %v1662
      %v2013 = vpack.c.b16 %v1665, %v1663
      %v2014 = vpack.c.b16 %v1668, %v1666
      %v2015 = vpack.c.b16 %v1669, %v1667
      %v2016 = vpack.c.b16 %v1672, %v1670
      %v2017 = vpack.c.b16 %v1673, %v1671
      %v2018 = vpack.c.b16 %v1676, %v1674
      %v2019 = vpack.c.b16 %v1677, %v1675
      %v2020 = vpack.c.b16 %v1680, %v1678
      %v2021 = vpack.c.b16 %v1681, %v1679
      %v2022 = vpack.c.b16 %v1684, %v1682
      %v2023 = vpack.c.b16 %v1685, %v1683
      %v2024 = vpack.c.b16 %v1688, %v1686
      %v2025 = vpack.c.b16 %v1689, %v1687
      %v2026 = vpack.c.b16 %v1692, %v1690
      %v2027 = vpack.c.b16 %v1693, %v1691
      %v2028 = vpack.c.b16 %v1696, %v1694
      %v2029 = vpack.c.b16 %v1697, %v1695
      %v2030 = vpack.c.b16 %v1700, %v1698
      %v2031 = vpack.c.b16 %v1701, %v1699
      %v2032 = vpack.c.b16 %v1704, %v1702
      %v2033 = vpack.c.b16 %v1705, %v1703
      %v2034 = vpack.c.b16 %v1708, %v1706
      %v2035 = vpack.c.b16 %v1709, %v1707
      %v2036 = vpack.c.b16 %v1712, %v1710
      %v2037 = vpack.c.b16 %v1713, %v1711
      %v2038 = vpack.c.b16 %v1716, %v1714
      %v2039 = vpack.c.b16 %v1717, %v1715
      %v2040 = vpack.c.b16 %v1720, %v1718
      %v2041 = vpack.c.b16 %v1721, %v1719
      %v2042 = vpack.c.b16 %v1724, %v1722
      %v2043 = vpack.c.b16 %v1725, %v1723
      %v2044 = vpack.c.b16 %v1728, %v1726
      %v2045 = vpack.c.b16 %v1729, %v1727
      %v2046 = vpack.c.b16 %v1732, %v1730
      %v2047 = vpack.c.b16 %v1733, %v1731
      %v2048 = vpack.c.b16 %v1736, %v1734
      %v2049 = vpack.c.b16 %v1737, %v1735
      %v2050 = vpack.c.b16 %v1740, %v1738
      %v2051 = vpack.c.b16 %v1741, %v1739
      %v2052 = vpack.c.b16 %v1744, %v1742
      %v2053 = vpack.c.b16 %v1745, %v1743
      %v2054 = vpack.c.b16 %v1748, %v1746
      %v2055 = vpack.c.b16 %v1749, %v1747
      %v2056 = vpack.c.b16 %v1752, %v1750
      %v2057 = vpack.c.b16 %v1753, %v1751
      %v2058 = vpack.c.b16 %v1756, %v1754
      %v2059 = vpack.c.b16 %v1757, %v1755
      %v2060 = vpack.c.b16 %v1760, %v1758
      %v2061 = vpack.c.b16 %v1761, %v1759
      %v2062 = vpack.c.b16 %v1764, %v1762
      %v2063 = vpack.c.b16 %v1765, %v1763
      %v2064 = vpack.c.b16 %v1768, %v1766
      %v2065 = vpack.c.b16 %v1769, %v1767
      %v2066 = vpack.c.b16 %v1772, %v1770
      %v2067 = vpack.c.b16 %v1773, %v1771
      %v2068 = vpack.c.b16 %v1776, %v1774
      %v2069 = vpack.c.b16 %v1777, %v1775
      %v2070 = vpack.c.b16 %v1780, %v1778
      %v2071 = vpack.c.b16 %v1781, %v1779
      %v2072 = vpack.c.b16 %v1784, %v1782
      %v2073 = vpack.c.b16 %v1785, %v1783
      %2362 = vmatpush.bf16.msra.mxu0 %v1800
      %2363 = vmatpush.bf16.msra.mxu0 %v1798
      %2364 = vmatpush.bf16.msra.mxu0 %v1796
      %2365 = vmatpush.bf16.msra.mxu0 %v1794
      %2366 = vmatpush.bf16.msra.mxu0 %v1792
      %2367 = vmatpush.bf16.msra.mxu0 %v1790
      %2368 = vmatpush.bf16.msra.mxu0 %v1788
      %2369 = vmatpush.bf16.msra.mxu0 %v1786
      %2370 = vmatmul.bf16.gmra.mxu0 %v880
      %v2371 = vpop.f32.mrf.mxu0
      %v2372 = vadd.f32 %v873, %v2371
      %v2373 = vpop.f32.mrf.mxu0
      %2374 = vdwg.mxu0
      %2375 = vmatpush.bf16.msra.mxu0 %v1816
      %2376 = vmatpush.bf16.msra.mxu0 %v1814
      %2377 = vmatpush.bf16.msra.mxu0 %v1812
      %2378 = vmatpush.bf16.msra.mxu0 %v1810
      %2379 = vmatpush.bf16.msra.mxu0 %v1808
      %2380 = vmatpush.bf16.msra.mxu0 %v1806
      %2381 = vmatpush.bf16.msra.mxu0 %v1804
      %2382 = vmatpush.bf16.msra.mxu0 %v1802
      %2383 = vmatmul.bf16.gmra.mxu0 %v881
      %v2384 = vpop.f32.mrf.mxu0
      %v2385 = vadd.f32 %v2372, %v2384
      %v2386 = vpop.f32.mrf.mxu0
      %2387 = vdwg.mxu0
      %2388 = vmatpush.bf16.msra.mxu0 %v1832
      %2389 = vmatpush.bf16.msra.mxu0 %v1830
      %2390 = vmatpush.bf16.msra.mxu0 %v1828
      %2391 = vmatpush.bf16.msra.mxu0 %v1826
      %2392 = vmatpush.bf16.msra.mxu0 %v1824
      %2393 = vmatpush.bf16.msra.mxu0 %v1822
      %2394 = vmatpush.bf16.msra.mxu0 %v1820
      %2395 = vmatpush.bf16.msra.mxu0 %v1818
      %2396 = vmatmul.bf16.gmra.mxu0 %v882
      %v2397 = vpop.f32.mrf.mxu0
      %v2398 = vadd.f32 %v2385, %v2397
      %v2399 = vpop.f32.mrf.mxu0
      %2400 = vdwg.mxu0
      %2401 = vmatpush.bf16.msra.mxu0 %v1848
      %2402 = vmatpush.bf16.msra.mxu0 %v1846
      %2403 = vmatpush.bf16.msra.mxu0 %v1844
      %2404 = vmatpush.bf16.msra.mxu0 %v1842
      %2405 = vmatpush.bf16.msra.mxu0 %v1840
      %2406 = vmatpush.bf16.msra.mxu0 %v1838
      %2407 = vmatpush.bf16.msra.mxu0 %v1836
      %2408 = vmatpush.bf16.msra.mxu0 %v1834
      %2409 = vmatmul.bf16.gmra.mxu0 %v883
      %v2410 = vpop.f32.mrf.mxu0
      %v2411 = vadd.f32 %v2398, %v2410
      %v2412 = vpop.f32.mrf.mxu0
      %2413 = vdwg.mxu0
      %2414 = vmatpush.bf16.msra.mxu0 %v1864
      %2415 = vmatpush.bf16.msra.mxu0 %v1862
      %2416 = vmatpush.bf16.msra.mxu0 %v1860
      %2417 = vmatpush.bf16.msra.mxu0 %v1858
      %2418 = vmatpush.bf16.msra.mxu0 %v1856
      %2419 = vmatpush.bf16.msra.mxu0 %v1854
      %2420 = vmatpush.bf16.msra.mxu0 %v1852
      %2421 = vmatpush.bf16.msra.mxu0 %v1850
      %2422 = vmatmul.bf16.gmra.mxu0 %v884
      %v2423 = vpop.f32.mrf.mxu0
      %v2424 = vadd.f32 %v2411, %v2423
      %v2425 = vpop.f32.mrf.mxu0
      %2426 = vdwg.mxu0
      %2427 = vmatpush.bf16.msra.mxu0 %v1880
      %2428 = vmatpush.bf16.msra.mxu0 %v1878
      %2429 = vmatpush.bf16.msra.mxu0 %v1876
      %2430 = vmatpush.bf16.msra.mxu0 %v1874
      %2431 = vmatpush.bf16.msra.mxu0 %v1872
      %2432 = vmatpush.bf16.msra.mxu0 %v1870
      %2433 = vmatpush.bf16.msra.mxu0 %v1868
      %2434 = vmatpush.bf16.msra.mxu0 %v1866
      %2435 = vmatmul.bf16.gmra.mxu0 %v885
      %v2436 = vpop.f32.mrf.mxu0
      %v2437 = vadd.f32 %v2424, %v2436
      %v2438 = vpop.f32.mrf.mxu0
      %2439 = vdwg.mxu0
      %2440 = vmatpush.bf16.msra.mxu0 %v1896
      %2441 = vmatpush.bf16.msra.mxu0 %v1894
      %2442 = vmatpush.bf16.msra.mxu0 %v1892
      %2443 = vmatpush.bf16.msra.mxu0 %v1890
      %2444 = vmatpush.bf16.msra.mxu0 %v1888
      %2445 = vmatpush.bf16.msra.mxu0 %v1886
      %2446 = vmatpush.bf16.msra.mxu0 %v1884
      %2447 = vmatpush.bf16.msra.mxu0 %v1882
      %2448 = vmatmul.bf16.gmra.mxu0 %v886
      %v2449 = vpop.f32.mrf.mxu0
      %v2450 = vadd.f32 %v2437, %v2449
      %v2451 = vpop.f32.mrf.mxu0
      %2452 = vdwg.mxu0
      %2453 = vmatpush.bf16.msra.mxu0 %v1912
      %2454 = vmatpush.bf16.msra.mxu0 %v1910
      %2455 = vmatpush.bf16.msra.mxu0 %v1908
      %2456 = vmatpush.bf16.msra.mxu0 %v1906
      %2457 = vmatpush.bf16.msra.mxu0 %v1904
      %2458 = vmatpush.bf16.msra.mxu0 %v1902
      %2459 = vmatpush.bf16.msra.mxu0 %v1900
      %2460 = vmatpush.bf16.msra.mxu0 %v1898
      %2461 = vmatmul.bf16.gmra.mxu0 %v887
      %v2462 = vpop.f32.mrf.mxu0
      %v2463 = vadd.f32 %v2450, %v2462
      %v2464 = vpop.f32.mrf.mxu0
      %2465 = vdwg.mxu0
      %2466 = vmatpush.bf16.msra.mxu0 %v1928
      %2467 = vmatpush.bf16.msra.mxu0 %v1926
      %2468 = vmatpush.bf16.msra.mxu0 %v1924
      %2469 = vmatpush.bf16.msra.mxu0 %v1922
      %2470 = vmatpush.bf16.msra.mxu0 %v1920
      %2471 = vmatpush.bf16.msra.mxu0 %v1918
      %2472 = vmatpush.bf16.msra.mxu0 %v1916
      %2473 = vmatpush.bf16.msra.mxu0 %v1914
      %2474 = vmatmul.bf16.gmra.mxu0 %v892
      %v2475 = vpop.f32.mrf.mxu0
      %v2476 = vadd.f32 %v2463, %v2475
      %v2477 = vpop.f32.mrf.mxu0
      %2478 = vdwg.mxu0
      %2479 = vmatpush.bf16.msra.mxu0 %v1944
      %2480 = vmatpush.bf16.msra.mxu0 %v1942
      %2481 = vmatpush.bf16.msra.mxu0 %v1940
      %2482 = vmatpush.bf16.msra.mxu0 %v1938
      %2483 = vmatpush.bf16.msra.mxu0 %v1936
      %2484 = vmatpush.bf16.msra.mxu0 %v1934
      %2485 = vmatpush.bf16.msra.mxu0 %v1932
      %2486 = vmatpush.bf16.msra.mxu0 %v1930
      %2487 = vmatmul.bf16.gmra.mxu0 %v893
      %v2488 = vpop.f32.mrf.mxu0
      %v2489 = vadd.f32 %v2476, %v2488
      %v2490 = vpop.f32.mrf.mxu0
      %2491 = vdwg.mxu0
      %2492 = vmatpush.bf16.msra.mxu0 %v1960
      %2493 = vmatpush.bf16.msra.mxu0 %v1958
      %2494 = vmatpush.bf16.msra.mxu0 %v1956
      %2495 = vmatpush.bf16.msra.mxu0 %v1954
      %2496 = vmatpush.bf16.msra.mxu0 %v1952
      %2497 = vmatpush.bf16.msra.mxu0 %v1950
      %2498 = vmatpush.bf16.msra.mxu0 %v1948
      %2499 = vmatpush.bf16.msra.mxu0 %v1946
      %2500 = vmatmul.bf16.gmra.mxu0 %v894
      %v2501 = vpop.f32.mrf.mxu0
      %v2502 = vadd.f32 %v2489, %v2501
      %v2503 = vpop.f32.mrf.mxu0
      %2504 = vdwg.mxu0
      %2505 = vmatpush.bf16.msra.mxu0 %v1976
      %2506 = vmatpush.bf16.msra.mxu0 %v1974
      %2507 = vmatpush.bf16.msra.mxu0 %v1972
      %2508 = vmatpush.bf16.msra.mxu0 %v1970
      %2509 = vmatpush.bf16.msra.mxu0 %v1968
      %2510 = vmatpush.bf16.msra.mxu0 %v1966
      %2511 = vmatpush.bf16.msra.mxu0 %v1964
      %2512 = vmatpush.bf16.msra.mxu0 %v1962
      %2513 = vmatmul.bf16.gmra.mxu0 %v895
      %v2514 = vpop.f32.mrf.mxu0
      %v2515 = vadd.f32 %v2502, %v2514
      %v2516 = vpop.f32.mrf.mxu0
      %2517 = vdwg.mxu0
      %2518 = vmatpush.bf16.msra.mxu0 %v1992
      %2519 = vmatpush.bf16.msra.mxu0 %v1990
      %2520 = vmatpush.bf16.msra.mxu0 %v1988
      %2521 = vmatpush.bf16.msra.mxu0 %v1986
      %2522 = vmatpush.bf16.msra.mxu0 %v1984
      %2523 = vmatpush.bf16.msra.mxu0 %v1982
      %2524 = vmatpush.bf16.msra.mxu0 %v1980
      %2525 = vmatpush.bf16.msra.mxu0 %v1978
      %2526 = vmatmul.bf16.gmra.mxu0 %v896
      %v2527 = vpop.f32.mrf.mxu0
      %v2528 = vadd.f32 %v2515, %v2527
      %v2529 = vpop.f32.mrf.mxu0
      %2530 = vdwg.mxu0
      %2531 = vmatpush.bf16.msra.mxu0 %v2008
      %2532 = vmatpush.bf16.msra.mxu0 %v2006
      %2533 = vmatpush.bf16.msra.mxu0 %v2004
      %2534 = vmatpush.bf16.msra.mxu0 %v2002
      %2535 = vmatpush.bf16.msra.mxu0 %v2000
      %2536 = vmatpush.bf16.msra.mxu0 %v1998
      %2537 = vmatpush.bf16.msra.mxu0 %v1996
      %2538 = vmatpush.bf16.msra.mxu0 %v1994
      %2539 = vmatmul.bf16.gmra.mxu0 %v897
      %v2540 = vpop.f32.mrf.mxu0
      %v2541 = vadd.f32 %v2528, %v2540
      %v2542 = vpop.f32.mrf.mxu0
      %2543 = vdwg.mxu0
      %2544 = vmatpush.bf16.msra.mxu0 %v2024
      %2545 = vmatpush.bf16.msra.mxu0 %v2022
      %2546 = vmatpush.bf16.msra.mxu0 %v2020
      %2547 = vmatpush.bf16.msra.mxu0 %v2018
      %2548 = vmatpush.bf16.msra.mxu0 %v2016
      %2549 = vmatpush.bf16.msra.mxu0 %v2014
      %2550 = vmatpush.bf16.msra.mxu0 %v2012
      %2551 = vmatpush.bf16.msra.mxu0 %v2010
      %2552 = vmatmul.bf16.gmra.mxu0 %v898
      %v2553 = vpop.f32.mrf.mxu0
      %v2554 = vadd.f32 %v2541, %v2553
      %v2555 = vpop.f32.mrf.mxu0
      %2556 = vdwg.mxu0
      %2557 = vmatpush.bf16.msra.mxu0 %v2040
      %2558 = vmatpush.bf16.msra.mxu0 %v2038
      %2559 = vmatpush.bf16.msra.mxu0 %v2036
      %2560 = vmatpush.bf16.msra.mxu0 %v2034
      %2561 = vmatpush.bf16.msra.mxu0 %v2032
      %2562 = vmatpush.bf16.msra.mxu0 %v2030
      %2563 = vmatpush.bf16.msra.mxu0 %v2028
      %2564 = vmatpush.bf16.msra.mxu0 %v2026
      %2565 = vmatmul.bf16.gmra.mxu0 %v899
      %v2566 = vpop.f32.mrf.mxu0
      %v2567 = vadd.f32 %v2554, %v2566
      %v2568 = vpop.f32.mrf.mxu0
      %2569 = vdwg.mxu0
      %2570 = vmatpush.bf16.msra.mxu0 %v2056
      %2571 = vmatpush.bf16.msra.mxu0 %v2054
      %2572 = vmatpush.bf16.msra.mxu0 %v2052
      %2573 = vmatpush.bf16.msra.mxu0 %v2050
      %2574 = vmatpush.bf16.msra.mxu0 %v2048
      %2575 = vmatpush.bf16.msra.mxu0 %v2046
      %2576 = vmatpush.bf16.msra.mxu0 %v2044
      %2577 = vmatpush.bf16.msra.mxu0 %v2042
      %2578 = vmatmul.bf16.gmra.mxu0 %v902
      %v2579 = vpop.f32.mrf.mxu0
      %v2580 = vadd.f32 %v2567, %v2579
      %v2581 = vpop.f32.mrf.mxu0
      %2582 = vdwg.mxu0
      %2583 = vmatpush.bf16.msra.mxu0 %v2072
      %2584 = vmatpush.bf16.msra.mxu0 %v2070
      %2585 = vmatpush.bf16.msra.mxu0 %v2068
      %2586 = vmatpush.bf16.msra.mxu0 %v2066
      %2587 = vmatpush.bf16.msra.mxu0 %v2064
      %2588 = vmatpush.bf16.msra.mxu0 %v2062
      %2589 = vmatpush.bf16.msra.mxu0 %v2060
      %2590 = vmatpush.bf16.msra.mxu0 %v2058
      %2591 = vmatmul.bf16.gmra.mxu0 %v903
      %v2592 = vpop.f32.mrf.mxu0
      %v2593 = vadd.f32 %v2580, %v2592
      %v2594 = vpop.f32.mrf.mxu0
      %2595 = vdwg.mxu0
      %2596 = vmatpush.bf16.msra.mxu0 %v1801
      %2597 = vmatpush.bf16.msra.mxu0 %v1799
      %2598 = vmatpush.bf16.msra.mxu0 %v1797
      %2599 = vmatpush.bf16.msra.mxu0 %v1795
      %2600 = vmatpush.bf16.msra.mxu0 %v1793
      %2601 = vmatpush.bf16.msra.mxu0 %v1791
      %2602 = vmatpush.bf16.msra.mxu0 %v1789
      %2603 = vmatpush.bf16.msra.mxu0 %v1787
      %2604 = vmatmul.bf16.gmra.mxu0 %v880
      %v2605 = vpop.f32.mrf.mxu0
      %v2606 = vadd.f32 %v873, %v2605
      %v2607 = vpop.f32.mrf.mxu0
      %2608 = vdwg.mxu0
      %2609 = vmatpush.bf16.msra.mxu0 %v1817
      %2610 = vmatpush.bf16.msra.mxu0 %v1815
      %2611 = vmatpush.bf16.msra.mxu0 %v1813
      %2612 = vmatpush.bf16.msra.mxu0 %v1811
      %2613 = vmatpush.bf16.msra.mxu0 %v1809
      %2614 = vmatpush.bf16.msra.mxu0 %v1807
      %2615 = vmatpush.bf16.msra.mxu0 %v1805
      %2616 = vmatpush.bf16.msra.mxu0 %v1803
      %2617 = vmatmul.bf16.gmra.mxu0 %v881
      %v2618 = vpop.f32.mrf.mxu0
      %v2619 = vadd.f32 %v2606, %v2618
      %v2620 = vpop.f32.mrf.mxu0
      %2621 = vdwg.mxu0
      %2622 = vmatpush.bf16.msra.mxu0 %v1833
      %2623 = vmatpush.bf16.msra.mxu0 %v1831
      %2624 = vmatpush.bf16.msra.mxu0 %v1829
      %2625 = vmatpush.bf16.msra.mxu0 %v1827
      %2626 = vmatpush.bf16.msra.mxu0 %v1825
      %2627 = vmatpush.bf16.msra.mxu0 %v1823
      %2628 = vmatpush.bf16.msra.mxu0 %v1821
      %2629 = vmatpush.bf16.msra.mxu0 %v1819
      %2630 = vmatmul.bf16.gmra.mxu0 %v882
      %v2631 = vpop.f32.mrf.mxu0
      %v2632 = vadd.f32 %v2619, %v2631
      %v2633 = vpop.f32.mrf.mxu0
      %2634 = vdwg.mxu0
      %2635 = vmatpush.bf16.msra.mxu0 %v1849
      %2636 = vmatpush.bf16.msra.mxu0 %v1847
      %2637 = vmatpush.bf16.msra.mxu0 %v1845
      %2638 = vmatpush.bf16.msra.mxu0 %v1843
      %2639 = vmatpush.bf16.msra.mxu0 %v1841
      %2640 = vmatpush.bf16.msra.mxu0 %v1839
      %2641 = vmatpush.bf16.msra.mxu0 %v1837
      %2642 = vmatpush.bf16.msra.mxu0 %v1835
      %2643 = vmatmul.bf16.gmra.mxu0 %v883
      %v2644 = vpop.f32.mrf.mxu0
      %v2645 = vadd.f32 %v2632, %v2644
      %v2646 = vpop.f32.mrf.mxu0
      %2647 = vdwg.mxu0
      %2648 = vmatpush.bf16.msra.mxu0 %v1865
      %2649 = vmatpush.bf16.msra.mxu0 %v1863
      %2650 = vmatpush.bf16.msra.mxu0 %v1861
      %2651 = vmatpush.bf16.msra.mxu0 %v1859
      %2652 = vmatpush.bf16.msra.mxu0 %v1857
      %2653 = vmatpush.bf16.msra.mxu0 %v1855
      %2654 = vmatpush.bf16.msra.mxu0 %v1853
      %2655 = vmatpush.bf16.msra.mxu0 %v1851
      %2656 = vmatmul.bf16.gmra.mxu0 %v884
      %v2657 = vpop.f32.mrf.mxu0
      %v2658 = vadd.f32 %v2645, %v2657
      %v2659 = vpop.f32.mrf.mxu0
      %2660 = vdwg.mxu0
      %2661 = vmatpush.bf16.msra.mxu0 %v1881
      %2662 = vmatpush.bf16.msra.mxu0 %v1879
      %2663 = vmatpush.bf16.msra.mxu0 %v1877
      %2664 = vmatpush.bf16.msra.mxu0 %v1875
      %2665 = vmatpush.bf16.msra.mxu0 %v1873
      %2666 = vmatpush.bf16.msra.mxu0 %v1871
      %2667 = vmatpush.bf16.msra.mxu0 %v1869
      %2668 = vmatpush.bf16.msra.mxu0 %v1867
      %2669 = vmatmul.bf16.gmra.mxu0 %v885
      %v2670 = vpop.f32.mrf.mxu0
      %v2671 = vadd.f32 %v2658, %v2670
      %v2672 = vpop.f32.mrf.mxu0
      %2673 = vdwg.mxu0
      %2674 = vmatpush.bf16.msra.mxu0 %v1897
      %2675 = vmatpush.bf16.msra.mxu0 %v1895
      %2676 = vmatpush.bf16.msra.mxu0 %v1893
      %2677 = vmatpush.bf16.msra.mxu0 %v1891
      %2678 = vmatpush.bf16.msra.mxu0 %v1889
      %2679 = vmatpush.bf16.msra.mxu0 %v1887
      %2680 = vmatpush.bf16.msra.mxu0 %v1885
      %2681 = vmatpush.bf16.msra.mxu0 %v1883
      %2682 = vmatmul.bf16.gmra.mxu0 %v886
      %v2683 = vpop.f32.mrf.mxu0
      %v2684 = vadd.f32 %v2671, %v2683
      %v2685 = vpop.f32.mrf.mxu0
      %2686 = vdwg.mxu0
      %2687 = vmatpush.bf16.msra.mxu0 %v1913
      %2688 = vmatpush.bf16.msra.mxu0 %v1911
      %2689 = vmatpush.bf16.msra.mxu0 %v1909
      %2690 = vmatpush.bf16.msra.mxu0 %v1907
      %2691 = vmatpush.bf16.msra.mxu0 %v1905
      %2692 = vmatpush.bf16.msra.mxu0 %v1903
      %2693 = vmatpush.bf16.msra.mxu0 %v1901
      %2694 = vmatpush.bf16.msra.mxu0 %v1899
      %2695 = vmatmul.bf16.gmra.mxu0 %v887
      %v2696 = vpop.f32.mrf.mxu0
      %v2697 = vadd.f32 %v2684, %v2696
      %v2698 = vpop.f32.mrf.mxu0
      %2699 = vdwg.mxu0
      %2700 = vmatpush.bf16.msra.mxu0 %v1929
      %2701 = vmatpush.bf16.msra.mxu0 %v1927
      %2702 = vmatpush.bf16.msra.mxu0 %v1925
      %2703 = vmatpush.bf16.msra.mxu0 %v1923
      %2704 = vmatpush.bf16.msra.mxu0 %v1921
      %2705 = vmatpush.bf16.msra.mxu0 %v1919
      %2706 = vmatpush.bf16.msra.mxu0 %v1917
      %2707 = vmatpush.bf16.msra.mxu0 %v1915
      %2708 = vmatmul.bf16.gmra.mxu0 %v892
      %v2709 = vpop.f32.mrf.mxu0
      %v2710 = vadd.f32 %v2697, %v2709
      %v2711 = vpop.f32.mrf.mxu0
      %2712 = vdwg.mxu0
      %2713 = vmatpush.bf16.msra.mxu0 %v1945
      %2714 = vmatpush.bf16.msra.mxu0 %v1943
      %2715 = vmatpush.bf16.msra.mxu0 %v1941
      %2716 = vmatpush.bf16.msra.mxu0 %v1939
      %2717 = vmatpush.bf16.msra.mxu0 %v1937
      %2718 = vmatpush.bf16.msra.mxu0 %v1935
      %2719 = vmatpush.bf16.msra.mxu0 %v1933
      %2720 = vmatpush.bf16.msra.mxu0 %v1931
      %2721 = vmatmul.bf16.gmra.mxu0 %v893
      %v2722 = vpop.f32.mrf.mxu0
      %v2723 = vadd.f32 %v2710, %v2722
      %v2724 = vpop.f32.mrf.mxu0
      %2725 = vdwg.mxu0
      %2726 = vmatpush.bf16.msra.mxu0 %v1961
      %2727 = vmatpush.bf16.msra.mxu0 %v1959
      %2728 = vmatpush.bf16.msra.mxu0 %v1957
      %2729 = vmatpush.bf16.msra.mxu0 %v1955
      %2730 = vmatpush.bf16.msra.mxu0 %v1953
      %2731 = vmatpush.bf16.msra.mxu0 %v1951
      %2732 = vmatpush.bf16.msra.mxu0 %v1949
      %2733 = vmatpush.bf16.msra.mxu0 %v1947
      %2734 = vmatmul.bf16.gmra.mxu0 %v894
      %v2735 = vpop.f32.mrf.mxu0
      %v2736 = vadd.f32 %v2723, %v2735
      %v2737 = vpop.f32.mrf.mxu0
      %2738 = vdwg.mxu0
      %2739 = vmatpush.bf16.msra.mxu0 %v1977
      %2740 = vmatpush.bf16.msra.mxu0 %v1975
      %2741 = vmatpush.bf16.msra.mxu0 %v1973
      %2742 = vmatpush.bf16.msra.mxu0 %v1971
      %2743 = vmatpush.bf16.msra.mxu0 %v1969
      %2744 = vmatpush.bf16.msra.mxu0 %v1967
      %2745 = vmatpush.bf16.msra.mxu0 %v1965
      %2746 = vmatpush.bf16.msra.mxu0 %v1963
      %2747 = vmatmul.bf16.gmra.mxu0 %v895
      %v2748 = vpop.f32.mrf.mxu0
      %v2749 = vadd.f32 %v2736, %v2748
      %v2750 = vpop.f32.mrf.mxu0
      %2751 = vdwg.mxu0
      %2752 = vmatpush.bf16.msra.mxu0 %v1993
      %2753 = vmatpush.bf16.msra.mxu0 %v1991
      %2754 = vmatpush.bf16.msra.mxu0 %v1989
      %2755 = vmatpush.bf16.msra.mxu0 %v1987
      %2756 = vmatpush.bf16.msra.mxu0 %v1985
      %2757 = vmatpush.bf16.msra.mxu0 %v1983
      %2758 = vmatpush.bf16.msra.mxu0 %v1981
      %2759 = vmatpush.bf16.msra.mxu0 %v1979
      %2760 = vmatmul.bf16.gmra.mxu0 %v896
      %v2761 = vpop.f32.mrf.mxu0
      %v2762 = vadd.f32 %v2749, %v2761
      %v2763 = vpop.f32.mrf.mxu0
      %2764 = vdwg.mxu0
      %2765 = vmatpush.bf16.msra.mxu0 %v2009
      %2766 = vmatpush.bf16.msra.mxu0 %v2007
      %2767 = vmatpush.bf16.msra.mxu0 %v2005
      %2768 = vmatpush.bf16.msra.mxu0 %v2003
      %2769 = vmatpush.bf16.msra.mxu0 %v2001
      %2770 = vmatpush.bf16.msra.mxu0 %v1999
      %2771 = vmatpush.bf16.msra.mxu0 %v1997
      %2772 = vmatpush.bf16.msra.mxu0 %v1995
      %2773 = vmatmul.bf16.gmra.mxu0 %v897
      %v2774 = vpop.f32.mrf.mxu0
      %v2775 = vadd.f32 %v2762, %v2774
      %v2776 = vpop.f32.mrf.mxu0
      %2777 = vdwg.mxu0
      %2778 = vmatpush.bf16.msra.mxu0 %v2025
      %2779 = vmatpush.bf16.msra.mxu0 %v2023
      %2780 = vmatpush.bf16.msra.mxu0 %v2021
      %2781 = vmatpush.bf16.msra.mxu0 %v2019
      %2782 = vmatpush.bf16.msra.mxu0 %v2017
      %2783 = vmatpush.bf16.msra.mxu0 %v2015
      %2784 = vmatpush.bf16.msra.mxu0 %v2013
      %2785 = vmatpush.bf16.msra.mxu0 %v2011
      %2786 = vmatmul.bf16.gmra.mxu0 %v898
      %v2787 = vpop.f32.mrf.mxu0
      %v2788 = vadd.f32 %v2775, %v2787
      %v2789 = vpop.f32.mrf.mxu0
      %2790 = vdwg.mxu0
      %2791 = vmatpush.bf16.msra.mxu0 %v2041
      %2792 = vmatpush.bf16.msra.mxu0 %v2039
      %2793 = vmatpush.bf16.msra.mxu0 %v2037
      %2794 = vmatpush.bf16.msra.mxu0 %v2035
      %2795 = vmatpush.bf16.msra.mxu0 %v2033
      %2796 = vmatpush.bf16.msra.mxu0 %v2031
      %2797 = vmatpush.bf16.msra.mxu0 %v2029
      %2798 = vmatpush.bf16.msra.mxu0 %v2027
      %2799 = vmatmul.bf16.gmra.mxu0 %v899
      %v2800 = vpop.f32.mrf.mxu0
      %v2801 = vadd.f32 %v2788, %v2800
      %v2802 = vpop.f32.mrf.mxu0
      %2803 = vdwg.mxu0
      %2804 = vmatpush.bf16.msra.mxu0 %v2057
      %2805 = vmatpush.bf16.msra.mxu0 %v2055
      %2806 = vmatpush.bf16.msra.mxu0 %v2053
      %2807 = vmatpush.bf16.msra.mxu0 %v2051
      %2808 = vmatpush.bf16.msra.mxu0 %v2049
      %2809 = vmatpush.bf16.msra.mxu0 %v2047
      %2810 = vmatpush.bf16.msra.mxu0 %v2045
      %2811 = vmatpush.bf16.msra.mxu0 %v2043
      %2812 = vmatmul.bf16.gmra.mxu0 %v902
      %v2813 = vpop.f32.mrf.mxu0
      %v2814 = vadd.f32 %v2801, %v2813
      %v2815 = vpop.f32.mrf.mxu0
      %2816 = vdwg.mxu0
      %2817 = vmatpush.bf16.msra.mxu0 %v2073
      %2818 = vmatpush.bf16.msra.mxu0 %v2071
      %2819 = vmatpush.bf16.msra.mxu0 %v2069
      %2820 = vmatpush.bf16.msra.mxu0 %v2067
      %2821 = vmatpush.bf16.msra.mxu0 %v2065
      %2822 = vmatpush.bf16.msra.mxu0 %v2063
      %2823 = vmatpush.bf16.msra.mxu0 %v2061
      %2824 = vmatpush.bf16.msra.mxu0 %v2059
      %2825 = vmatmul.bf16.gmra.mxu0 %v903
      %v2826 = vpop.f32.mrf.mxu0
      %v2827 = vadd.f32 %v2814, %v2826
      %v2828 = vpop.f32.mrf.mxu0
      %2829 = vdwg.mxu0
      %v2830 = vmax.f32 %v2593, 0.0
      %v2831 = vmax.f32 %v2827, 0.0
      %v2832 = vld [vmem:[%s6] sm:$0xf]
      %v2833 = vld [vmem:[%s6 + $0x4] sm:$0xf]
      %v2834 = vpack.c.bf16 %v2830, %v2830
      %v2835 = vpack.c.bf16 %v2831, %v2831
      %v2836 = vld [vmem:[%s7] sm:$0xff]
      %v2837 = vld [vmem:[%s7 + $0x8] sm:$0xff]
      %2839 = vset.pattern.permute.xlu0 0
      %2840 = vperm.xlu0 %2839, %v2836
      %v2841 = vpop.permute.xlu0 %2840
      %2844 = vset.pattern.permute.xlu0 0
      %2845 = vperm.xlu0 %2844, %v2837
      %v2846 = vpop.permute.xlu0 %2845
      %v2850 = vunpack.c.l.b16 %v2832
      %v2851 = vunpack.c.l.b16 %v2833
      %v2852 = vpack.c.b16 %v2851, %v2850
      %v2854 = vsel %vm453, %v2852, 0
      %v2857 = vsel %vm463, %v2834, 0
      %v2860 = vsel %vm463, %v2835, 0
      %2862 = vmatpush.bf16.msra.mxu0 0
      %2863 = vmatpush.bf16.msra.mxu0 0
      %2864 = vmatpush.bf16.msra.mxu0 0
      %2865 = vmatpush.bf16.msra.mxu0 0
      %2866 = vmatpush.bf16.msra.mxu0 0
      %2867 = vmatpush.bf16.msra.mxu0 0
      %2868 = vmatpush.bf16.msra.mxu0 0
      %2869 = vmatpush.bf16.msra.mxu0 %v2857
      %2870 = vmatmul.bf16.gmra.mxu0 %v2854
      %v2871 = vpop.f32.mrf.mxu0
      %v2872 = vadd.f32 %v2841, %v2871
      %v2873 = vpop.f32.mrf.mxu0
      %v2874 = vadd.f32 %v2846, %v2873
      %2875 = vdwg.mxu0
      %2876 = vmatpush.bf16.msra.mxu0 0
      %2877 = vmatpush.bf16.msra.mxu0 0
      %2878 = vmatpush.bf16.msra.mxu0 0
      %2879 = vmatpush.bf16.msra.mxu0 0
      %2880 = vmatpush.bf16.msra.mxu0 0
      %2881 = vmatpush.bf16.msra.mxu0 0
      %2882 = vmatpush.bf16.msra.mxu0 0
      %2883 = vmatpush.bf16.msra.mxu0 %v2860
      %2884 = vmatmul.bf16.gmra.mxu0 %v2854
      %v2885 = vpop.f32.mrf.mxu0
      %v2886 = vadd.f32 %v2841, %v2885
      %v2887 = vpop.f32.mrf.mxu0
      %v2888 = vadd.f32 %v2846, %v2887
      %2889 = vdwg.mxu0
      %v2890 = vadd.f32 %v2872, %v2886
      %2891 = vadd.xlane.f32.xlu0 %v2890
      %v2892 = vpop.xlane.xlu0 %2891
      %v2893 = vadd.f32 %v2874, %v2888
      %2894 = vadd.xlane.f32.xlu0 %v2893
      %v2895 = vpop.xlane.xlu0 %2894
      %v2896 = vrcp.pop 256.0
      %v2897 = vmul.f32 256.0, %v2896
      %v2898 = vsub.f32 1.0, %v2897
      %v2899 = vmul.f32 %v2896, %v2898
      %v2900 = vadd.f32 %v2896, %v2899
      %vm2901 = vweird.f32 %v2896
      %v2902 = vsel %vm2901, %v2896, %v2900
      %v2903 = vmul.f32 %v2892, %v2902
      %v2904 = vmul.f32 %v2895, %v2902
      %v2905 = vmax.f32 %v2872, %v2886
      %2906 = vmax.xlane.f32.xlu0 %v2905
      %v2907 = vpop.xlane.xlu0 %2906
      %v2908 = vmax.f32 %v2874, %v2888
      %2909 = vmax.xlane.f32.xlu0 %v2908
      %v2910 = vpop.xlane.xlu0 %2909
      %vm2911 = vcmask 7168
      %v2912 = vsel %vm2911, %v2903, %v2907
      %v2913 = vsel %vm2911, %v2904, %v2910
      %v2914 = vld [vmem:[%s8] sm:$0x1]
      %v2915 = vpack.c.bf16 %v2913, %v2912
      %v2917 = vsel %vm401, %v2914, 0
      %2919 = vmatpush.bf16.msra.mxu0 0
      %2920 = vmatpush.bf16.msra.mxu0 0
      %2921 = vmatpush.bf16.msra.mxu0 0
      %2922 = vmatpush.bf16.msra.mxu0 0
      %2923 = vmatpush.bf16.msra.mxu0 0
      %2924 = vmatpush.bf16.msra.mxu0 0
      %2925 = vmatpush.bf16.msra.mxu0 0
      %2926 = vmatpush.bf16.msra.mxu0 %v2915
      %2927 = vmatmul.bf16.gmra.mxu0 %v2917
      %v2928 = vpop.f32.mrf.mxu0
      %v2929 = vadd.f32 0.0, %v2928
      %v2930 = vpop.f32.mrf.mxu0
      %2931 = vdwg.mxu0
      %v2932 = vmax.f32 %v2929, 0.0
      %v2933 = vld [vmem:[%s9] sm:$0xf]
      %v2934 = vld [vmem:[%s9 + $0x4] sm:$0xf]
      %v2935 = vpack.c.bf16 %v2932, %v2932
      %v2938 = vunpack.c.l.b16 %v2933
      %v2939 = vunpack.c.l.b16 %v2934
      %v2940 = vpack.c.b16 %v2939, %v2938
      %v2942 = vsel %vm2911, %v2940, 0
      %vm2944 = vcmask 1040384
      %v2945 = vsel 0, 4294967295, 65535
      %v2946 = vsel %vm2944, %v2945, 0
      %v2948 = vand.u32 %v2935, %v2946
      %2950 = vmatpush.bf16.msra.mxu0 0
      %2951 = vmatpush.bf16.msra.mxu0 0
      %2952 = vmatpush.bf16.msra.mxu0 0
      %2953 = vmatpush.bf16.msra.mxu0 0
      %2954 = vmatpush.bf16.msra.mxu0 0
      %2955 = vmatpush.bf16.msra.mxu0 0
      %2956 = vmatpush.bf16.msra.mxu0 0
      %2957 = vmatpush.bf16.msra.mxu0 %v2948
      %2958 = vmatmul.bf16.gmra.mxu0 %v2942
      %v2959 = vpop.f32.mrf.mxu0
      %v2960 = vadd.f32 0.0, %v2959
      %v2961 = vpop.f32.mrf.mxu0
      %v2962 = vadd.f32 0.0, %v2961
      %2963 = vdwg.mxu0
      %2966 = vrot.lane.b32.xlu0 %v2960, 127
      %v2967 = vpop.permute.xlu0 %2966
      %2968 = vrot.lane.b32.xlu0 %v2962, 127
      %v2969 = vpop.permute.xlu0 %2968
      %v2972 = vadd.f32 %v2960, %v2967
      %v2973 = vadd.f32 %v2962, %v2969
      %v2974 = vxor.u32 %v2972, 2147483648
      %v2975 = vxor.u32 %v2973, 2147483648
      %v2976 = vmul.f32 %v2974, 1.442695
      %v2977 = vpow.pop %v2976
      %v2978 = vmul.f32 %v2975, 1.442695
      %v2979 = vpow.pop %v2978
      %v2980 = vadd.f32 %v2977, 1.0
      %v2981 = vadd.f32 %v2979, 1.0
      %v2982 = vrcp.pop %v2980
      %v2983 = vmul.f32 %v2980, %v2982
      %v2984 = vsub.f32 1.0, %v2983
      %v2985 = vmul.f32 %v2982, %v2984
      %v2986 = vadd.f32 %v2982, %v2985
      %vm2987 = vweird.f32 %v2980
      %vm2988 = vweird.f32 %v2982
      %vm2989 = vmor %vm2987, %vm2988
      %v2990 = vsel %vm2989, %v2982, %v2986
      %v2991 = vand.u32 2147483647, %v2980
      %vm2992 = vcmp.eq.f32.partialorder %v2991, 8.507059e+37
      %v2993 = vand.u32 %v2980, 2147483648
      %v2994 = vor.u32 1.1754944e-38, %v2993
      %v2995 = vsel %vm2992, %v2994, %v2990
      %v2996 = vmul.f32 1.0, %v2995
      %v2997 = vrcp.pop %v2981
      %v2998 = vmul.f32 %v2981, %v2997
      %v2999 = vsub.f32 1.0, %v2998
      %v3000 = vmul.f32 %v2997, %v2999
      %v3001 = vadd.f32 %v2997, %v3000
      %vm3002 = vweird.f32 %v2981
      %vm3003 = vweird.f32 %v2997
      %vm3004 = vmor %vm3002, %vm3003
      %v3005 = vsel %vm3004, %v2997, %v3001
      %v3006 = vand.u32 2147483647, %v2981
      %vm3007 = vcmp.eq.f32.partialorder %v3006, 8.507059e+37
      %v3008 = vand.u32 %v2981, 2147483648
      %v3009 = vor.u32 1.1754944e-38, %v3008
      %v3010 = vsel %vm3007, %v3009, %v3005
      %v3011 = vmul.f32 1.0, %v3010
      %3013 = vset.pattern.permute.xlu0 0
      %3014 = vperm.xlu0 %3013, %v2996
      %v3015 = vpop.permute.xlu0 %3014
      %3018 = vset.pattern.permute.xlu0 0
      %3019 = vperm.xlu0 %3018, %v3011
      %v3020 = vpop.permute.xlu0 %3019
      %v3022 = vmul.f32 %v2872, %v3015
      %v3023 = vmul.f32 %v2886, %v3015
      %v3024 = vmul.f32 %v2874, %v3020
      %v3025 = vmul.f32 %v2888, %v3020
      %v3026 = vadd.f32 %v3022, %v3024
      %v3027 = vrot.slane %v3026, 4
      %v3028 = vadd.f32 %v3026, %v3027
      %v3029 = vrot.slane %v3028, 2
      %v3030 = vadd.f32 %v3028, %v3029
      %v3031 = vrot.slane %v3030, 1
      %v3032 = vadd.f32 %v3030, %v3031
      %v3033 = vadd.f32 %v3023, %v3025
      %v3034 = vrot.slane %v3033, 4
      %v3035 = vadd.f32 %v3033, %v3034
      %v3036 = vrot.slane %v3035, 2
      %v3037 = vadd.f32 %v3035, %v3036
      %v3038 = vrot.slane %v3037, 1
      %v3039 = vadd.f32 %v3037, %v3038
      %v3040 = vrcp.pop 16.0
      %v3041 = vmul.f32 16.0, %v3040
      %v3042 = vsub.f32 1.0, %v3041
      %v3043 = vmul.f32 %v3040, %v3042
      %v3044 = vadd.f32 %v3040, %v3043
      %vm3045 = vweird.f32 %v3040
      %v3046 = vsel %vm3045, %v3040, %v3044
      %v3047 = vmul.f32 %v3032, %v3046
      %v3048 = vmul.f32 %v3039, %v3046
      %v3049 = vmax.f32 %v3022, %v3024
      %v3050 = vrot.slane %v3049, 4
      %v3051 = vmax.f32 %v3049, %v3050
      %v3052 = vrot.slane %v3051, 2
      %v3053 = vmax.f32 %v3051, %v3052
      %v3054 = vrot.slane %v3053, 1
      %v3055 = vmax.f32 %v3053, %v3054
      %v3056 = vmax.f32 %v3023, %v3025
      %v3057 = vrot.slane %v3056, 4
      %v3058 = vmax.f32 %v3056, %v3057
      %v3059 = vrot.slane %v3058, 2
      %v3060 = vmax.f32 %v3058, %v3059
      %v3061 = vrot.slane %v3060, 1
      %v3062 = vmax.f32 %v3060, %v3061
      %v3063 = vpack.c.bf16 %v3047, %v3047
      %v3064 = vpack.c.bf16 %v3048, %v3048
      %v3065 = vpack.c.bf16 %v3055, %v3055
      %v3066 = vpack.c.bf16 %v3062, %v3062
      %v3067 = vld [vmem:[%s10] sm:$0xff]
      %v3068 = vld [vmem:[%s10 + $0x8] sm:$0xff]
      %v3069 = vld [vmem:[%s10 + $0x10] sm:$0xff]
      %v3070 = vld [vmem:[%s10 + $0x18] sm:$0xff]
      %v3071 = vld [vmem:[%s10 + $0x20] sm:$0xff]
      %v3072 = vld [vmem:[%s10 + $0x28] sm:$0xff]
      %v3073 = vld [vmem:[%s10 + $0x30] sm:$0xff]
      %v3074 = vld [vmem:[%s10 + $0x38] sm:$0xff]
      %v3075 = vld [vmem:[%s10 + $0x40] sm:$0xff]
      %v3076 = vld [vmem:[%s10 + $0x48] sm:$0xff]
      %v3077 = vld [vmem:[%s10 + $0x50] sm:$0xff]
      %v3078 = vld [vmem:[%s10 + $0x58] sm:$0xff]
      %v3079 = vld [vmem:[%s10 + $0x60] sm:$0xff]
      %v3080 = vld [vmem:[%s10 + $0x68] sm:$0xff]
      %v3081 = vld [vmem:[%s10 + $0x70] sm:$0xff]
      %v3082 = vld [vmem:[%s10 + $0x78] sm:$0xff]
      %v3083 = vld [vmem:[%s10 + $0x80] sm:$0xff]
      %v3084 = vld [vmem:[%s10 + $0x88] sm:$0xff]
      %v3085 = vld [vmem:[%s10 + $0x90] sm:$0xff]
      %v3086 = vld [vmem:[%s10 + $0x98] sm:$0xff]
      %v3087 = vld [vmem:[%s10 + $0xa0] sm:$0xff]
      %v3088 = vld [vmem:[%s10 + $0xa8] sm:$0xff]
      %v3089 = vld [vmem:[%s10 + $0xb0] sm:$0xff]
      %v3090 = vld [vmem:[%s10 + $0xb8] sm:$0xff]
      %v3091 = vld [vmem:[%s10 + $0xc0] sm:$0xff]
      %v3092 = vld [vmem:[%s10 + $0xc8] sm:$0xff]
      %v3093 = vld [vmem:[%s10 + $0xd0] sm:$0xff]
      %v3094 = vld [vmem:[%s10 + $0xd8] sm:$0xff]
      %v3095 = vld [vmem:[%s10 + $0xe0] sm:$0xff]
      %v3096 = vld [vmem:[%s10 + $0xe8] sm:$0xff]
      %v3097 = vld [vmem:[%s10 + $0xf0] sm:$0xff]
      %v3098 = vld [vmem:[%s10 + $0xf8] sm:$0xff]
      %v3099 = vld [vmem:[%s10 + $0x100] sm:$0xff]
      %v3100 = vld [vmem:[%s10 + $0x108] sm:$0xff]
      %v3101 = vld [vmem:[%s10 + $0x110] sm:$0xff]
      %v3102 = vld [vmem:[%s10 + $0x118] sm:$0xff]
      %v3103 = vld [vmem:[%s10 + $0x120] sm:$0xff]
      %v3104 = vld [vmem:[%s10 + $0x128] sm:$0xff]
      %v3105 = vld [vmem:[%s10 + $0x130] sm:$0xff]
      %v3106 = vld [vmem:[%s10 + $0x138] sm:$0xff]
      %v3107 = vld [vmem:[%s10 + $0x140] sm:$0xff]
      %v3108 = vld [vmem:[%s10 + $0x148] sm:$0xff]
      %v3109 = vld [vmem:[%s10 + $0x150] sm:$0xff]
      %v3110 = vld [vmem:[%s10 + $0x158] sm:$0xff]
      %v3111 = vld [vmem:[%s10 + $0x160] sm:$0xff]
      %v3112 = vld [vmem:[%s10 + $0x168] sm:$0xff]
      %v3113 = vld [vmem:[%s10 + $0x170] sm:$0xff]
      %v3114 = vld [vmem:[%s10 + $0x178] sm:$0xff]
      %v3115 = vld [vmem:[%s10 + $0x180] sm:$0xff]
      %v3116 = vld [vmem:[%s10 + $0x188] sm:$0xff]
      %v3117 = vld [vmem:[%s10 + $0x190] sm:$0xff]
      %v3118 = vld [vmem:[%s10 + $0x198] sm:$0xff]
      %v3119 = vld [vmem:[%s10 + $0x1a0] sm:$0xff]
      %v3120 = vld [vmem:[%s10 + $0x1a8] sm:$0xff]
      %v3121 = vld [vmem:[%s10 + $0x1b0] sm:$0xff]
      %v3122 = vld [vmem:[%s10 + $0x1b8] sm:$0xff]
      %v3123 = vld [vmem:[%s10 + $0x1c0] sm:$0xff]
      %v3124 = vld [vmem:[%s10 + $0x1c8] sm:$0xff]
      %v3125 = vld [vmem:[%s10 + $0x1d0] sm:$0xff]
      %v3126 = vld [vmem:[%s10 + $0x1d8] sm:$0xff]
      %v3127 = vld [vmem:[%s10 + $0x1e0] sm:$0xff]
      %v3128 = vld [vmem:[%s10 + $0x1e8] sm:$0xff]
      %v3129 = vld [vmem:[%s10 + $0x1f0] sm:$0xff]
      %v3130 = vld [vmem:[%s10 + $0x1f8] sm:$0xff]
      %v3195 = vunpack.c.l.b16 %v3067
      %v3196 = vunpack.c.h.b16 %v3067
      %v3197 = vunpack.c.l.b16 %v3068
      %v3198 = vunpack.c.h.b16 %v3068
      %v3199 = vunpack.c.l.b16 %v3069
      %v3200 = vunpack.c.h.b16 %v3069
      %v3201 = vunpack.c.l.b16 %v3070
      %v3202 = vunpack.c.h.b16 %v3070
      %v3203 = vunpack.c.l.b16 %v3071
      %v3204 = vunpack.c.h.b16 %v3071
      %v3205 = vunpack.c.l.b16 %v3072
      %v3206 = vunpack.c.h.b16 %v3072
      %v3207 = vunpack.c.l.b16 %v3073
      %v3208 = vunpack.c.h.b16 %v3073
      %v3209 = vunpack.c.l.b16 %v3074
      %v3210 = vunpack.c.h.b16 %v3074
      %v3211 = vunpack.c.l.b16 %v3075
      %v3212 = vunpack.c.h.b16 %v3075
      %v3213 = vunpack.c.l.b16 %v3076
      %v3214 = vunpack.c.h.b16 %v3076
      %v3215 = vunpack.c.l.b16 %v3077
      %v3216 = vunpack.c.h.b16 %v3077
      %v3217 = vunpack.c.l.b16 %v3078
      %v3218 = vunpack.c.h.b16 %v3078
      %v3219 = vunpack.c.l.b16 %v3079
      %v3220 = vunpack.c.h.b16 %v3079
      %v3221 = vunpack.c.l.b16 %v3080
      %v3222 = vunpack.c.h.b16 %v3080
      %v3223 = vunpack.c.l.b16 %v3081
      %v3224 = vunpack.c.h.b16 %v3081
      %v3225 = vunpack.c.l.b16 %v3082
      %v3226 = vunpack.c.h.b16 %v3082
      %v3227 = vunpack.c.l.b16 %v3083
      %v3228 = vunpack.c.h.b16 %v3083
      %v3229 = vunpack.c.l.b16 %v3084
      %v3230 = vunpack.c.h.b16 %v3084
      %v3231 = vunpack.c.l.b16 %v3085
      %v3232 = vunpack.c.h.b16 %v3085
      %v3233 = vunpack.c.l.b16 %v3086
      %v3234 = vunpack.c.h.b16 %v3086
      %v3235 = vunpack.c.l.b16 %v3087
      %v3236 = vunpack.c.h.b16 %v3087
      %v3237 = vunpack.c.l.b16 %v3088
      %v3238 = vunpack.c.h.b16 %v3088
      %v3239 = vunpack.c.l.b16 %v3089
      %v3240 = vunpack.c.h.b16 %v3089
      %v3241 = vunpack.c.l.b16 %v3090
      %v3242 = vunpack.c.h.b16 %v3090
      %v3243 = vunpack.c.l.b16 %v3091
      %v3244 = vunpack.c.h.b16 %v3091
      %v3245 = vunpack.c.l.b16 %v3092
      %v3246 = vunpack.c.h.b16 %v3092
      %v3247 = vunpack.c.l.b16 %v3093
      %v3248 = vunpack.c.h.b16 %v3093
      %v3249 = vunpack.c.l.b16 %v3094
      %v3250 = vunpack.c.h.b16 %v3094
      %v3251 = vunpack.c.l.b16 %v3095
      %v3252 = vunpack.c.h.b16 %v3095
      %v3253 = vunpack.c.l.b16 %v3096
      %v3254 = vunpack.c.h.b16 %v3096
      %v3255 = vunpack.c.l.b16 %v3097
      %v3256 = vunpack.c.h.b16 %v3097
      %v3257 = vunpack.c.l.b16 %v3098
      %v3258 = vunpack.c.h.b16 %v3098
      %v3259 = vunpack.c.l.b16 %v3099
      %v3260 = vunpack.c.h.b16 %v3099
      %v3261 = vunpack.c.l.b16 %v3100
      %v3262 = vunpack.c.h.b16 %v3100
      %v3263 = vunpack.c.l.b16 %v3101
      %v3264 = vunpack.c.h.b16 %v3101
      %v3265 = vunpack.c.l.b16 %v3102
      %v3266 = vunpack.c.h.b16 %v3102
      %v3267 = vunpack.c.l.b16 %v3103
      %v3268 = vunpack.c.h.b16 %v3103
      %v3269 = vunpack.c.l.b16 %v3104
      %v3270 = vunpack.c.h.b16 %v3104
      %v3271 = vunpack.c.l.b16 %v3105
      %v3272 = vunpack.c.h.b16 %v3105
      %v3273 = vunpack.c.l.b16 %v3106
      %v3274 = vunpack.c.h.b16 %v3106
      %v3275 = vunpack.c.l.b16 %v3107
      %v3276 = vunpack.c.h.b16 %v3107
      %v3277 = vunpack.c.l.b16 %v3108
      %v3278 = vunpack.c.h.b16 %v3108
      %v3279 = vunpack.c.l.b16 %v3109
      %v3280 = vunpack.c.h.b16 %v3109
      %v3281 = vunpack.c.l.b16 %v3110
      %v3282 = vunpack.c.h.b16 %v3110
      %v3283 = vunpack.c.l.b16 %v3111
      %v3284 = vunpack.c.h.b16 %v3111
      %v3285 = vunpack.c.l.b16 %v3112
      %v3286 = vunpack.c.h.b16 %v3112
      %v3287 = vunpack.c.l.b16 %v3113
      %v3288 = vunpack.c.h.b16 %v3113
      %v3289 = vunpack.c.l.b16 %v3114
      %v3290 = vunpack.c.h.b16 %v3114
      %v3291 = vunpack.c.l.b16 %v3115
      %v3292 = vunpack.c.h.b16 %v3115
      %v3293 = vunpack.c.l.b16 %v3116
      %v3294 = vunpack.c.h.b16 %v3116
      %v3295 = vunpack.c.l.b16 %v3117
      %v3296 = vunpack.c.h.b16 %v3117
      %v3297 = vunpack.c.l.b16 %v3118
      %v3298 = vunpack.c.h.b16 %v3118
      %v3299 = vunpack.c.l.b16 %v3119
      %v3300 = vunpack.c.h.b16 %v3119
      %v3301 = vunpack.c.l.b16 %v3120
      %v3302 = vunpack.c.h.b16 %v3120
      %v3303 = vunpack.c.l.b16 %v3121
      %v3304 = vunpack.c.h.b16 %v3121
      %v3305 = vunpack.c.l.b16 %v3122
      %v3306 = vunpack.c.h.b16 %v3122
      %v3307 = vunpack.c.l.b16 %v3123
      %v3308 = vunpack.c.h.b16 %v3123
      %v3309 = vunpack.c.l.b16 %v3124
      %v3310 = vunpack.c.h.b16 %v3124
      %v3311 = vunpack.c.l.b16 %v3125
      %v3312 = vunpack.c.h.b16 %v3125
      %v3313 = vunpack.c.l.b16 %v3126
      %v3314 = vunpack.c.h.b16 %v3126
      %v3315 = vunpack.c.l.b16 %v3127
      %v3316 = vunpack.c.h.b16 %v3127
      %v3317 = vunpack.c.l.b16 %v3128
      %v3318 = vunpack.c.h.b16 %v3128
      %v3319 = vunpack.c.l.b16 %v3129
      %v3320 = vunpack.c.h.b16 %v3129
      %v3321 = vunpack.c.l.b16 %v3130
      %v3322 = vunpack.c.h.b16 %v3130
      %v3323 = vpack.c.b16 %v3197, %v3195
      %v3324 = vpack.c.b16 %v3198, %v3196
      %v3325 = vpack.c.b16 %v3201, %v3199
      %v3326 = vpack.c.b16 %v3202, %v3200
      %v3327 = vpack.c.b16 %v3205, %v3203
      %v3328 = vpack.c.b16 %v3206, %v3204
      %v3329 = vpack.c.b16 %v3209, %v3207
      %v3330 = vpack.c.b16 %v3210, %v3208
      %v3331 = vpack.c.b16 %v3213, %v3211
      %v3332 = vpack.c.b16 %v3214, %v3212
      %v3333 = vpack.c.b16 %v3217, %v3215
      %v3334 = vpack.c.b16 %v3218, %v3216
      %v3335 = vpack.c.b16 %v3221, %v3219
      %v3336 = vpack.c.b16 %v3222, %v3220
      %v3337 = vpack.c.b16 %v3225, %v3223
      %v3338 = vpack.c.b16 %v3226, %v3224
      %v3339 = vpack.c.b16 %v3229, %v3227
      %v3340 = vpack.c.b16 %v3230, %v3228
      %v3341 = vpack.c.b16 %v3233, %v3231
      %v3342 = vpack.c.b16 %v3234, %v3232
      %v3343 = vpack.c.b16 %v3237, %v3235
      %v3344 = vpack.c.b16 %v3238, %v3236
      %v3345 = vpack.c.b16 %v3241, %v3239
      %v3346 = vpack.c.b16 %v3242, %v3240
      %v3347 = vpack.c.b16 %v3245, %v3243
      %v3348 = vpack.c.b16 %v3246, %v3244
      %v3349 = vpack.c.b16 %v3249, %v3247
      %v3350 = vpack.c.b16 %v3250, %v3248
      %v3351 = vpack.c.b16 %v3253, %v3251
      %v3352 = vpack.c.b16 %v3254, %v3252
      %v3353 = vpack.c.b16 %v3257, %v3255
      %v3354 = vpack.c.b16 %v3258, %v3256
      %v3355 = vpack.c.b16 %v3261, %v3259
      %v3356 = vpack.c.b16 %v3262, %v3260
      %v3357 = vpack.c.b16 %v3265, %v3263
      %v3358 = vpack.c.b16 %v3266, %v3264
      %v3359 = vpack.c.b16 %v3269, %v3267
      %v3360 = vpack.c.b16 %v3270, %v3268
      %v3361 = vpack.c.b16 %v3273, %v3271
      %v3362 = vpack.c.b16 %v3274, %v3272
      %v3363 = vpack.c.b16 %v3277, %v3275
      %v3364 = vpack.c.b16 %v3278, %v3276
      %v3365 = vpack.c.b16 %v3281, %v3279
      %v3366 = vpack.c.b16 %v3282, %v3280
      %v3367 = vpack.c.b16 %v3285, %v3283
      %v3368 = vpack.c.b16 %v3286, %v3284
      %v3369 = vpack.c.b16 %v3289, %v3287
      %v3370 = vpack.c.b16 %v3290, %v3288
      %v3371 = vpack.c.b16 %v3293, %v3291
      %v3372 = vpack.c.b16 %v3294, %v3292
      %v3373 = vpack.c.b16 %v3297, %v3295
      %v3374 = vpack.c.b16 %v3298, %v3296
      %v3375 = vpack.c.b16 %v3301, %v3299
      %v3376 = vpack.c.b16 %v3302, %v3300
      %v3377 = vpack.c.b16 %v3305, %v3303
      %v3378 = vpack.c.b16 %v3306, %v3304
      %v3379 = vpack.c.b16 %v3309, %v3307
      %v3380 = vpack.c.b16 %v3310, %v3308
      %v3381 = vpack.c.b16 %v3313, %v3311
      %v3382 = vpack.c.b16 %v3314, %v3312
      %v3383 = vpack.c.b16 %v3317, %v3315
      %v3384 = vpack.c.b16 %v3318, %v3316
      %v3385 = vpack.c.b16 %v3321, %v3319
      %v3386 = vpack.c.b16 %v3322, %v3320
      %3451 = vmatpush.bf16.msra.mxu0 %v3337
      %3452 = vmatpush.bf16.msra.mxu0 %v3335
      %3453 = vmatpush.bf16.msra.mxu0 %v3333
      %3454 = vmatpush.bf16.msra.mxu0 %v3331
      %3455 = vmatpush.bf16.msra.mxu0 %v3329
      %3456 = vmatpush.bf16.msra.mxu0 %v3327
      %3457 = vmatpush.bf16.msra.mxu0 %v3325
      %3458 = vmatpush.bf16.msra.mxu0 %v3323
      %3459 = vmatmul.bf16.gmra.mxu0 %v3063
      %v3460 = vpop.f32.mrf.mxu0
      %v3461 = vadd.f32 0.0, %v3460
      %v3462 = vpop.f32.mrf.mxu0
      %3463 = vdwg.mxu0
      %3464 = vmatpush.bf16.msra.mxu0 %v3353
      %3465 = vmatpush.bf16.msra.mxu0 %v3351
      %3466 = vmatpush.bf16.msra.mxu0 %v3349
      %3467 = vmatpush.bf16.msra.mxu0 %v3347
      %3468 = vmatpush.bf16.msra.mxu0 %v3345
      %3469 = vmatpush.bf16.msra.mxu0 %v3343
      %3470 = vmatpush.bf16.msra.mxu0 %v3341
      %3471 = vmatpush.bf16.msra.mxu0 %v3339
      %3472 = vmatmul.bf16.gmra.mxu0 %v3064
      %v3473 = vpop.f32.mrf.mxu0
      %v3474 = vadd.f32 %v3461, %v3473
      %v3475 = vpop.f32.mrf.mxu0
      %3476 = vdwg.mxu0
      %3477 = vmatpush.bf16.msra.mxu0 %v3369
      %3478 = vmatpush.bf16.msra.mxu0 %v3367
      %3479 = vmatpush.bf16.msra.mxu0 %v3365
      %3480 = vmatpush.bf16.msra.mxu0 %v3363
      %3481 = vmatpush.bf16.msra.mxu0 %v3361
      %3482 = vmatpush.bf16.msra.mxu0 %v3359
      %3483 = vmatpush.bf16.msra.mxu0 %v3357
      %3484 = vmatpush.bf16.msra.mxu0 %v3355
      %3485 = vmatmul.bf16.gmra.mxu0 %v3065
      %v3486 = vpop.f32.mrf.mxu0
      %v3487 = vadd.f32 %v3474, %v3486
      %v3488 = vpop.f32.mrf.mxu0
      %3489 = vdwg.mxu0
      %3490 = vmatpush.bf16.msra.mxu0 %v3385
      %3491 = vmatpush.bf16.msra.mxu0 %v3383
      %3492 = vmatpush.bf16.msra.mxu0 %v3381
      %3493 = vmatpush.bf16.msra.mxu0 %v3379
      %3494 = vmatpush.bf16.msra.mxu0 %v3377
      %3495 = vmatpush.bf16.msra.mxu0 %v3375
      %3496 = vmatpush.bf16.msra.mxu0 %v3373
      %3497 = vmatpush.bf16.msra.mxu0 %v3371
      %3498 = vmatmul.bf16.gmra.mxu0 %v3066
      %v3499 = vpop.f32.mrf.mxu0
      %v3500 = vadd.f32 %v3487, %v3499
      %v3501 = vpop.f32.mrf.mxu0
      %3502 = vdwg.mxu0
      %3503 = vmatpush.bf16.msra.mxu0 %v3338
      %3504 = vmatpush.bf16.msra.mxu0 %v3336
      %3505 = vmatpush.bf16.msra.mxu0 %v3334
      %3506 = vmatpush.bf16.msra.mxu0 %v3332
      %3507 = vmatpush.bf16.msra.mxu0 %v3330
      %3508 = vmatpush.bf16.msra.mxu0 %v3328
      %3509 = vmatpush.bf16.msra.mxu0 %v3326
      %3510 = vmatpush.bf16.msra.mxu0 %v3324
      %3511 = vmatmul.bf16.gmra.mxu0 %v3063
      %v3512 = vpop.f32.mrf.mxu0
      %v3513 = vadd.f32 0.0, %v3512
      %v3514 = vpop.f32.mrf.mxu0
      %3515 = vdwg.mxu0
      %3516 = vmatpush.bf16.msra.mxu0 %v3354
      %3517 = vmatpush.bf16.msra.mxu0 %v3352
      %3518 = vmatpush.bf16.msra.mxu0 %v3350
      %3519 = vmatpush.bf16.msra.mxu0 %v3348
      %3520 = vmatpush.bf16.msra.mxu0 %v3346
      %3521 = vmatpush.bf16.msra.mxu0 %v3344
      %3522 = vmatpush.bf16.msra.mxu0 %v3342
      %3523 = vmatpush.bf16.msra.mxu0 %v3340
      %3524 = vmatmul.bf16.gmra.mxu0 %v3064
      %v3525 = vpop.f32.mrf.mxu0
      %v3526 = vadd.f32 %v3513, %v3525
      %v3527 = vpop.f32.mrf.mxu0
      %3528 = vdwg.mxu0
      %3529 = vmatpush.bf16.msra.mxu0 %v3370
      %3530 = vmatpush.bf16.msra.mxu0 %v3368
      %3531 = vmatpush.bf16.msra.mxu0 %v3366
      %3532 = vmatpush.bf16.msra.mxu0 %v3364
      %3533 = vmatpush.bf16.msra.mxu0 %v3362
      %3534 = vmatpush.bf16.msra.mxu0 %v3360
      %3535 = vmatpush.bf16.msra.mxu0 %v3358
      %3536 = vmatpush.bf16.msra.mxu0 %v3356
      %3537 = vmatmul.bf16.gmra.mxu0 %v3065
      %v3538 = vpop.f32.mrf.mxu0
      %v3539 = vadd.f32 %v3526, %v3538
      %v3540 = vpop.f32.mrf.mxu0
      %3541 = vdwg.mxu0
      %3542 = vmatpush.bf16.msra.mxu0 %v3386
      %3543 = vmatpush.bf16.msra.mxu0 %v3384
      %3544 = vmatpush.bf16.msra.mxu0 %v3382
      %3545 = vmatpush.bf16.msra.mxu0 %v3380
      %3546 = vmatpush.bf16.msra.mxu0 %v3378
      %3547 = vmatpush.bf16.msra.mxu0 %v3376
      %3548 = vmatpush.bf16.msra.mxu0 %v3374
      %3549 = vmatpush.bf16.msra.mxu0 %v3372
      %3550 = vmatmul.bf16.gmra.mxu0 %v3066
      %v3551 = vpop.f32.mrf.mxu0
      %v3552 = vadd.f32 %v3539, %v3551
      %v3553 = vpop.f32.mrf.mxu0
      %3554 = vdwg.mxu0
      %v3555 = vxor.u32 %v3500, 2147483648
      %v3556 = vxor.u32 %v3552, 2147483648
      %v3557 = vmul.f32 %v3555, 1.442695
      %v3558 = vpow.pop %v3557
      %v3559 = vmul.f32 %v3556, 1.442695
      %v3560 = vpow.pop %v3559
      %v3561 = vadd.f32 %v3558, 1.0
      %v3562 = vadd.f32 %v3560, 1.0
      %v3563 = vrcp.pop %v3561
      %v3564 = vmul.f32 %v3561, %v3563
      %v3565 = vsub.f32 1.0, %v3564
      %v3566 = vmul.f32 %v3563, %v3565
      %v3567 = vadd.f32 %v3563, %v3566
      %vm3568 = vweird.f32 %v3561
      %vm3569 = vweird.f32 %v3563
      %vm3570 = vmor %vm3568, %vm3569
      %v3571 = vsel %vm3570, %v3563, %v3567
      %v3572 = vand.u32 2147483647, %v3561
      %vm3573 = vcmp.eq.f32.partialorder %v3572, 8.507059e+37
      %v3574 = vand.u32 %v3561, 2147483648
      %v3575 = vor.u32 1.1754944e-38, %v3574
      %v3576 = vsel %vm3573, %v3575, %v3571
      %v3577 = vmul.f32 1.0, %v3576
      %v3578 = vrcp.pop %v3562
      %v3579 = vmul.f32 %v3562, %v3578
      %v3580 = vsub.f32 1.0, %v3579
      %v3581 = vmul.f32 %v3578, %v3580
      %v3582 = vadd.f32 %v3578, %v3581
      %vm3583 = vweird.f32 %v3562
      %vm3584 = vweird.f32 %v3578
      %vm3585 = vmor %vm3583, %vm3584
      %v3586 = vsel %vm3585, %v3578, %v3582
      %v3587 = vand.u32 2147483647, %v3562
      %vm3588 = vcmp.eq.f32.partialorder %v3587, 8.507059e+37
      %v3589 = vand.u32 %v3562, 2147483648
      %v3590 = vor.u32 1.1754944e-38, %v3589
      %v3591 = vsel %vm3588, %v3590, %v3586
      %v3592 = vmul.f32 1.0, %v3591
      %v3593 = vperm.slane %v3577, 0
      %v3594 = vperm.slane %v3592, 0
      %v3595 = vmul.f32 %v3022, %v3593
      %v3596 = vmul.f32 %v3023, %v3594
      %v3597 = vmul.f32 %v3024, %v3593
      %v3598 = vmul.f32 %v3025, %v3594
      %v3599 = vadd.f32 %v3595, %v388
      %v3600 = vadd.f32 %v3596, %v389
      %v3601 = vadd.f32 %v3597, %v390
      %v3602 = vadd.f32 %v3598, %v391
      %v3603 = vmax.f32 %v3599, 0.0
      %v3604 = vmax.f32 %v3600, 0.0
      %v3605 = vmax.f32 %v3601, 0.0
      %v3606 = vmax.f32 %v3602, 0.0
      %3607 = vst [vmem:[%s386] sm:$0xff] %v3603
      %3608 = vst [vmem:[%s386 + $0x8] sm:$0xff] %v3604
      %3609 = vst [vmem:[%s386 + $0x10] sm:$0xff] %v3605
      %3610 = vst [vmem:[%s386 + $0x18] sm:$0xff] %v3606
      %p3611 = scmp.lt.s32.totalorder %s22, 1
      %s3612 = scalar_select %p3611, %s22, 1
      %s3613 = smul.addr %s3612, 4
      %s3614 = smul.addr %s3613, 8
      %s3615 = scalar_lea.vmem %s11, %s3614
      // Predicated region
      $region65: #{_forward_impl.1} parent=63 // pred_check
        %p3616 = pneg %p276
      $region66: #{_forward_impl.1} parent=63 // pred_check_branch
        %3618 = sbr.rel (%p3616) target = $region68
      $region67: #{_forward_impl.1} parent=63 // pred_region
        _
      $region68: #{_forward_impl.1} parent=63 // pred_fallthru
        _
    $region64: #{_forward_impl.1} parent=5 // pred_fallthru
      _
    %p3619 = scmp.le.s32.totalorder 2, %s17
    // Predicated region
    $region69: #{_forward_impl.1} parent=5 // pred_check
      %p3620 = pneg %p3619
    $region70: #{_forward_impl.1} parent=5 // pred_check_branch
      %3622 = sbr.rel (%p3620) target = $region72
    $region71: #{_forward_impl.1} parent=5 // pred_region
      %s3623 = ssub.s32 %s17, 2
      // Predicated region
      $region73: #{_forward_impl.1} parent=71 // pred_check
        %p3624 = pneg %p282
      $region74: #{_forward_impl.1} parent=71 // pred_check_branch
        %3626 = sbr.rel (%p3624) target = $region76
      $region75: #{_forward_impl.1} parent=71 // pred_region
        %p3627 = scmp.lt.s32.totalorder %s23, 1
        %s3628 = scalar_select %p3627, %s23, 1
        %s3629 = smul.addr %s3628, 4
        %s3630 = smul.addr %s3629, 8
        %s3631 = scalar_lea.vmem %s11, %s3630
      $region76: #{_forward_impl.1} parent=71 // pred_fallthru
        _
    $region72: #{_forward_impl.1} parent=5 // pred_fallthru
      _
  $region6: #{_forward_impl.1} parent=0 // loop_footer
    %s21 = sadd.s32 1, %s17
  $region7: #{_forward_impl.1} parent=0 // loop_footer_branch
    %16 = sbr.rel target = $region3
  $region8: #{_forward_impl.1} parent=0 // loop_exit
    _

</llo_original>
